<compile_context>
chip_gen: v6e
topology: v6e:2x2x1
jax: 0.10.0
libtpu: 0.0.40
codegen_flags: <defaults>
</compile_context>

<pallas_src>
import functools
import math
from typing import NamedTuple

import numpy as np
import jax
import jax.numpy as jnp
from jax.experimental import pallas as pl
from jax.experimental.pallas import tpu as pltpu


_GAT_NAMES = ("w1", "a1", "b1", "w2", "a2", "b2")
_HEAD_NAMES = ("w1c", "b1c", "w2p", "b2c", "linw", "linb",
               "a1w", "a1b", "a2w", "a2b", "qw", "qb", "wl", "bl")


class Meta(NamedTuple):
    """Static (hashable) kernel metadata: slab layouts + conv-head geometry."""
    kw: int                  # conv2 kernel width (== number of pooled positions, lout == 1)
    gstride: int             # sublane stride between pool-position blocks in the selection
    gcn_layout: tuple        # ((row_off, rows, cols), ...) for [W, b] per GCN layer
    gat_layout: tuple        # per _GAT_NAMES
    head_layout: tuple       # per _HEAD_NAMES


def _vmem():
    return pl.BlockSpec(memory_space=pltpu.MemorySpace.VMEM)


def _pack_rows(pieces, width):
    """Pack 2-D arrays into one (R, width) f32 slab; every piece starts at an 8-aligned row."""
    layout, off = [], 0
    for a in pieces:
        a = np.asarray(a, np.float32)
        layout.append((int(off), int(a.shape[0]), int(a.shape[1])))
        off += -(-a.shape[0] // 8) * 8
    slab = np.zeros((max(off, 8), width), np.float32)
    for (o, r, c), a in zip(layout, pieces):
        slab[o:o + r, :c] = np.asarray(a, np.float32)
    return jnp.asarray(slab), tuple(layout)


def _cut(slab, spec):
    o, r, c = spec
    return slab[o:o + r, 0:c]


# ------------------------------ the fused kernel -----------------------------

def _bsal4_kernel(data_ref, knn_ref, sel_ref, psel_ref, gcn_ref, gat_ref, head_ref,
                  o_ref, *, meta):
    f32 = jnp.float32
    n = data_ref.shape[0]                 # nodes in the batched DGCNN graph
    nk = knn_ref.shape[0]                 # nodes in the knn graph
    B = sel_ref.shape[0]                  # number of graphs / link pairs
    gcn_layout = meta.gcn_layout
    in_ch = gcn_layout[0][1]
    hl = dict(zip(_HEAD_NAMES, meta.head_layout))
    gl = dict(zip(_GAT_NAMES, meta.gat_layout))

    data = data_ref[...]                  # [ S | x | batch ]
    S = data[:, 0:n]
    h = data[:, n:n + in_ch]
    bcol = data[:, n + in_ch:n + in_ch + 1]

    # ---- DGCNN GCN stack: h_{l+1} = tanh(S @ (h_l @ W_l) + b_l); concat all outputs ----
    gcn = gcn_ref[...]
    hs = []
    for li in range(len(gcn_layout) // 2):
        w = _cut(gcn, gcn_layout[2 * li])
        b = _cut(gcn, gcn_layout[2 * li + 1])
        h = jnp.tanh(jnp.dot(S, jnp.dot(h, w, preferred_element_type=f32),
                             preferred_element_type=f32) + b)
        hs.append(h)
    hcat = jnp.concatenate(hs, axis=1)            # (n, latent_pad); padded cols are exactly 0
    key = hs[-1][:, 0:1]                          # (n, 1) sort key = last real channel

    # ---- global_sort_pool: dense per-graph rank + one-hot selection (all matmul/VPU) ----
    brow = bcol.T                                 # (1, n)
    krow = key.T                                  # (1, n)
    same = bcol == brow                           # (n, n)  [j, i]: same graph
    jj = jax.lax.broadcasted_iota(jnp.int32, (n, n), 0)
    ii = jax.lax.broadcasted_iota(jnp.int32, (n, n), 1)
    beats = (key > krow) | ((key == krow) & (jj < ii))   # node j sorts before node i (desc, stable)
    cmp = jnp.where(same & beats, 1.0, 0.0)
    rank = jnp.dot(jnp.ones((1, n), f32), cmp, preferred_element_type=f32)   # (1, n)

    ps = psel_ref[...]                            # (R, 3): [graph id | even rank | odd rank]
    g_col, t_even, t_odd = ps[:, 0:1], ps[:, 1:2], ps[:, 2:3]
    gmatch = brow == g_col                        # (R, n)
    p_even = jnp.where(gmatch & (rank == t_even), 1.0, 0.0)
    p_odd = jnp.where(gmatch & (rank == t_odd), 1.0, 0.0)

    # ---- Conv1d(1,c1,latent,stride=latent) folded through the selection, MaxPool1d(2,2),
    #      Conv1d(c1,c2,kw) as ONE matmul (lout == 1), Linear -> emb_1 ----
    hd = head_ref[...]
    h1 = jnp.dot(hcat, _cut(hd, hl["w1c"]), preferred_element_type=f32)       # (n, c1)
    s_even = jnp.dot(p_even, h1, preferred_element_type=f32)                  # (R, c1)
    s_odd = jnp.dot(p_odd, h1, preferred_element_type=f32)
    pool = jnp.maximum(jnp.maximum(s_even, s_odd) + _cut(hd, hl["b1c"]), 0.0)  # relu(max(.)+b)
    gs = meta.gstride
    z = jnp.concatenate([pool[q * gs:q * gs + B, :] for q in range(meta.kw)], axis=1)  # (B, kw*c1)
    y2 = jnp.maximum(jnp.dot(z, _cut(hd, hl["w2p"]), preferred_element_type=f32)
                     + _cut(hd, hl["b2c"]), 0.0)                              # (B, c2)
    e1 = jnp.dot(y2, _cut(hd, hl["linw"]), preferred_element_type=f32) + _cut(hd, hl["linb"])

    # ---- GAT branch on the knn graph + target-node gather / pairwise add ----
    knn = knn_ref[...]                            # [ knn_x | additive mask bias ]
    feat = gl["w1"][1]
    kx = knn[:, 0:feat]
    abias = knn[:, feat:feat + nk]                # 0 on edges/self loops, -1e30 elsewhere
    ga = gat_ref[...]

    def gat_layer(hin, wn, an, bn, relu):
        hw = jnp.dot(hin, _cut(ga, gl[wn]), preferred_element_type=f32)       # (nk, F)
        sc = jnp.dot(hw, _cut(ga, gl[an]), preferred_element_type=f32)        # (nk, 2) [src|dst]
        e = sc[:, 1:2] + sc[:, 0:1].T                                         # e[i,j] = dst_i + src_j
        e = jnp.where(e > 0, e, 0.2 * e) + abias                              # LeakyReLU + mask bias
        e = e - jnp.max(e, axis=-1, keepdims=True)
        p = jnp.exp(e)
        attn = p / jnp.sum(p, axis=-1, keepdims=True)                         # exact softmax
        y = jnp.dot(attn, hw, preferred_element_type=f32) + _cut(ga, gl[bn])
        return jnp.maximum(y, 0.0) if relu else y

    g2 = gat_layer(kx, "w1", "a1", "b1", True)
    g2 = gat_layer(g2, "w2", "a2", "b2", False)
    e2 = jnp.dot(sel_ref[...], g2, preferred_element_type=f32)                # (B, out)

    # ---- attention fusion (stabilized, exact) + block-diagonal heads, single store ----
    t1 = jnp.tanh(jnp.dot(e1, _cut(hd, hl["a1w"]), preferred_element_type=f32) + _cut(hd, hl["a1b"]))
    t2 = jnp.tanh(jnp.dot(e2, _cut(hd, hl["a2w"]), preferred_element_type=f32) + _cut(hd, hl["a2b"]))
    q1 = jnp.dot(t1, _cut(hd, hl["qw"]), preferred_element_type=f32) + _cut(hd, hl["qb"])
    q2 = jnp.dot(t2, _cut(hd, hl["qw"]), preferred_element_type=f32) + _cut(hd, hl["qb"])
    m = jnp.maximum(q1, q2)
    x1 = jnp.exp(q1 - m)
    x2 = jnp.exp(q2 - m)
    inv = 1.0 / (x1 + x2)
    xf = (x1 * inv) * e1 + (x2 * inv) * e2
    cat = jnp.concatenate([e1, e2, xf], axis=1)                               # (B, 3*out)
    o_ref[...] = jnp.dot(cat, _cut(hd, hl["wl"]), preferred_element_type=f32) + _cut(hd, hl["bl"])


def bsal4_fused(data_slab, knn_slab, sel, pp, meta):
    args = (data_slab, knn_slab, sel, pp["psel"], pp["gcn_slab"], pp["gat_slab"], pp["head_slab"])
    return pl.pallas_call(
        functools.partial(_bsal4_kernel, meta=meta),
        out_shape=jax.ShapeDtypeStruct((sel.shape[0], 3), jnp.float32),
        in_specs=[_vmem() for _ in args],
        out_specs=_vmem(),
    )(*args)


# --------------------------------- JAX glue ----------------------------------

def dense_gcn_adj(edge_index, num_nodes):
    src = jnp.asarray(edge_index[0])
    dst = jnp.asarray(edge_index[1])
    A = jnp.zeros((num_nodes, num_nodes), jnp.float32).at[dst, src].set(1.0)
    A = A + jnp.eye(num_nodes, dtype=jnp.float32)                # self loops
    deg = jnp.sum(A, axis=1)
    dinv = 1.0 / jnp.sqrt(deg)
    return A * dinv[:, None] * dinv[None, :]


def gat_mask_bias(edge_index, num_nodes):
    """Additive attention-mask bias: 0 on edges / self loops, -1e30 elsewhere."""
    src = jnp.asarray(edge_index[0])
    dst = jnp.asarray(edge_index[1])
    M = jnp.zeros((num_nodes, num_nodes), jnp.float32).at[dst, src].set(1.0)
    M = jnp.maximum(M, jnp.eye(num_nodes, dtype=jnp.float32))
    return jnp.where(M > 0, 0.0, -1e30)


def prepare_params(params, k, num_graphs):
    """Pack all weights (once, host-side) into lane/sublane-aligned VMEM slabs."""
    f32 = np.float32
    hid = int(params["gcn_convs"][0][0].shape[1])
    num_gcn = len(params["gcn_convs"])

    # --- GCN slab (width = hid); final 1-channel layer zero-padded to hid columns ---
    gcn_pieces = []
    for (w, b) in params["gcn_convs"]:
        w = np.asarray(w, f32)
        b = np.asarray(b, f32).reshape(1, -1)
        if w.shape[1] < hid:
            w = np.pad(w, ((0, 0), (0, hid - w.shape[1])))
            b = np.pad(b, ((0, 0), (0, hid - b.shape[1])))
        gcn_pieces += [w, b]
    gcn_slab, gcn_layout = _pack_rows(gcn_pieces, hid)

    # --- GAT slab ---
    gat_pieces = []
    for name in ("gat1", "gat2"):
        w, a_s, a_d, b = params[name]
        gat_pieces += [np.asarray(w, f32),
                       np.stack([np.asarray(a_s, f32), np.asarray(a_d, f32)], axis=1),  # (F, 2)
                       np.asarray(b, f32).reshape(1, -1)]
    gat_slab, gat_layout = _pack_rows(gat_pieces, max(p.shape[1] for p in gat_pieces))

    # --- conv head / fusion / output-head slab ---
    c1, _, latent = (int(s) for s in params["conv1_w"].shape)       # (Cout, 1, KW)
    latent_pad = num_gcn * hid
    w1c = np.asarray(params["conv1_w"], f32).reshape(c1, latent).T  # (latent, c1)
    w1c = np.pad(w1c, ((0, latent_pad - latent), (0, 0)))           # zero rows for padded channels
    b1c = np.asarray(params["conv1_b"], f32).reshape(1, -1)
    c2, c1_in, kw = (int(s) for s in params["conv2_w"].shape)
    w2p = np.asarray(params["conv2_w"], f32).transpose(2, 1, 0).reshape(kw * c1_in, c2)
    b2c = np.asarray(params["conv2_b"], f32).reshape(1, -1)
    linw = np.asarray(params["dgcnn_lin_w"], f32)
    linb = np.asarray(params["dgcnn_lin_b"], f32).reshape(1, -1)
    out_ch = linw.shape[1]
    wl = np.zeros((3 * out_ch, 3), f32)                             # block-diagonal output heads
    wl[0:out_ch, 0:1] = np.asarray(params["lin1_w"], f32)
    wl[out_ch:2 * out_ch, 1:2] = np.asarray(params["lin2_w"], f32)
    wl[2 * out_ch:, 2:3] = np.asarray(params["lin3_w"], f32)
    bl = np.concatenate([np.asarray(params["lin1_b"], f32),
                         np.asarray(params["lin2_b"], f32),
                         np.asarray(params["lin3_b"], f32)]).reshape(1, 3)
    head_pieces = [w1c, b1c, w2p, b2c, linw, linb,
                   np.asarray(params["att1_w"], f32), np.asarray(params["att1_b"], f32).reshape(1, -1),
                   np.asarray(params["att2_w"], f32), np.asarray(params["att2_b"], f32).reshape(1, -1),
                   np.asarray(params["query_w"], f32), np.asarray(params["query_b"], f32).reshape(1, -1),
                   wl, bl]
    head_slab, head_layout = _pack_rows(head_pieces, max(p.shape[1] for p in head_pieces))

    # --- sort-pool selection constants: row r = q*gstride + g picks rank 2q / 2q+1 in graph g ---
    kpool = k // 2
    if kpool - kw + 1 != 1:
        raise NotImplementedError("head fusion is specialized to lout == 1")
    gstride = ((num_graphs + 7) // 8) * 8
    psel = np.zeros((kpool * gstride, 3), f32)
    for q in range(kpool):
        for j in range(gstride):
            r = q * gstride + j
            psel[r, 0] = j if j < num_graphs else -1.0
            psel[r, 1] = 2 * q
            psel[r, 2] = 2 * q + 1

    pp = dict(gcn_slab=gcn_slab, gat_slab=gat_slab, head_slab=head_slab, psel=jnp.asarray(psel))
    meta = Meta(kw=int(kw), gstride=int(gstride),
                gcn_layout=gcn_layout, gat_layout=gat_layout, head_layout=head_layout)
    return pp, meta


@functools.partial(jax.jit, static_argnames=("meta",))
def bsal4_forward(pp, x, S, batch, knn_x, gat_bias, target_nodes, *, meta):
    num_graphs = target_nodes.shape[0] // 2
    # Per-call data packed into two slabs (keeps the single kernel at 7 operands).
    data_slab = jnp.concatenate(
        [S, x.astype(jnp.float32), batch.astype(jnp.float32)[:, None]], axis=1)
    knn_slab = jnp.concatenate([knn_x.astype(jnp.float32), gat_bias], axis=1)
    pair = jnp.arange(target_nodes.shape[0], dtype=jnp.int32) // 2
    sel = jnp.zeros((num_graphs, knn_x.shape[0]), jnp.float32).at[pair, target_nodes].add(1.0)
    out = bsal4_fused(data_slab, knn_slab, sel, pp, meta)          # (B, 3)
    return out[:, 0:1], out[:, 1:2], out[:, 2:3]


# ----------------------------------- main ------------------------------------

def _init(key, shape, scale=0.1):
    return scale * jax.random.normal(key, shape, jnp.float32)


if __name__ == "__main__":
    key = jax.random.PRNGKey(0)
    in_channels, hidden_channels, out_channels, num_layers = 4, 8, 16, 3

    # k as in DGCNN.__init__ (k=0.6) with a synthetic train_dataset of node counts
    train_num_nodes = sorted([8, 9, 10])
    k = train_num_nodes[int(math.ceil(0.6 * len(train_num_nodes))) - 1]
    k = int(max(10, k))                              # -> 10
    latent = hidden_channels * num_layers + 1        # 25
    dense_dim = int((k - 2) / 2 + 1)
    dense_dim = (dense_dim - 5 + 1) * 32             # 32

    # ---- deterministic parameters ----
    keys = jax.random.split(key, 64)
    ki = iter(keys)
    gcn_dims = ([(in_channels, hidden_channels)]
                + [(hidden_channels, hidden_channels)] * (num_layers - 1)
                + [(hidden_channels, 1)])
    params = {}
    params["gcn_convs"] = [(_init(next(ki), (a, b)), _init(next(ki), (b,)))
                           for (a, b) in gcn_dims]
    params["conv1_w"] = _init(next(ki), (16, 1, latent))     # torch Conv1d layout (Cout, Cin, KW)
    params["conv1_b"] = _init(next(ki), (16,))
    params["conv2_w"] = _init(next(ki), (32, 16, 5))
    params["conv2_b"] = _init(next(ki), (32,))
    params["dgcnn_lin_w"] = _init(next(ki), (dense_dim, out_channels))
    params["dgcnn_lin_b"] = _init(next(ki), (out_channels,))
    params["gat1"] = (_init(next(ki), (32, 8)), _init(next(ki), (8,)),
                      _init(next(ki), (8,)), _init(next(ki), (8,)))
    params["gat2"] = (_init(next(ki), (8, out_channels)), _init(next(ki), (out_channels,)),
                      _init(next(ki), (out_channels,)), _init(next(ki), (out_channels,)))
    for name, shp in [("att1", (out_channels, 16)), ("att2", (out_channels, 16)),
                      ("query", (16, 1)), ("lin1", (out_channels, 1)),
                      ("lin2", (out_channels, 1)), ("lin3", (out_channels, 1))]:
        params[name + "_w"] = _init(next(ki), shp)
        params[name + "_b"] = _init(next(ki), (shp[1],))

    # ---- deterministic example inputs ----
    graph_sizes = [12, 11]
    num_graphs = len(graph_sizes)
    num_nodes = sum(graph_sizes)
    kx, kk2 = jax.random.split(keys[-1])
    x = jax.random.normal(kx, (num_nodes, in_channels), jnp.float32)

    src, dst, batch = [], [], []
    off = 0
    for g, n in enumerate(graph_sizes):               # ring graph per component
        for i in range(n):
            j = (i + 1) % n
            src += [off + i, off + j]
            dst += [off + j, off + i]
        batch += [g] * n
        off += n
    edge_index = np.array([src, dst], dtype=np.int32)
    batch = jnp.asarray(np.array(batch, dtype=np.int32))

    n_knn = 12
    knn_x = jax.random.normal(kk2, (n_knn, 32), jnp.float32)
    ksrc, kdst = [], []
    for i in range(n_knn):
        j = (i + 1) % n_knn
        ksrc += [i, j]
        kdst += [j, i]
    knn_edge_index = np.array([ksrc, kdst], dtype=np.int32)
    target_nodes = jnp.asarray(np.array([0, 3, 5, 9], dtype=np.int32))   # 2 * num_graphs

    # input prep (edge lists -> dense adjacency / mask bias) stays as thin XLA glue.
    S_data = dense_gcn_adj(edge_index, num_nodes)
    gat_bias = gat_mask_bias(knn_edge_index, n_knn)

    pp, meta = prepare_params(params, k, num_graphs)

    o1, o2, o3 = bsal4_forward(pp, x, S_data, batch, knn_x, gat_bias, target_nodes, meta=meta)
    jax.block_until_ready((o1, o2, o3))
    assert o1.shape == (num_graphs, 1)
    assert o2.shape == (num_graphs, 1)
    assert o3.shape == (num_graphs, 1)
    print("KERNEL_OK")
</pallas_src>

<mosaic_0001>
module attributes {stable_mosaic.version = 11 : i64} {
  func.func @_bsal4_kernel(%arg0: memref<23x28xf32, #tpu.memory_space<vmem>>, %arg1: memref<12x44xf32, #tpu.memory_space<vmem>>, %arg2: memref<2x12xf32, #tpu.memory_space<vmem>>, %arg3: memref<40x3xf32, #tpu.memory_space<vmem>>, %arg4: memref<64x8xf32, #tpu.memory_space<vmem>>, %arg5: memref<80x16xf32, #tpu.memory_space<vmem>>, %arg6: memref<296x32xf32, #tpu.memory_space<vmem>>, %arg7: memref<2x3xf32, #tpu.memory_space<vmem>>) attributes {dimension_semantics = [], scalar_prefetch = 0 : i64, scratch_operands = 0 : i64, tpu.core_type = #tpu.core_type<tc>} {
    %c0 = arith.constant 0 : index
    %c0_0 = arith.constant 0 : index
    %0 = vector.load %arg0[%c0, %c0_0] : memref<23x28xf32, #tpu.memory_space<vmem>>, vector<23x28xf32>
    %1 = vector.extract_strided_slice %0 {offsets = [0, 0], sizes = [23, 23], strides = [1, 1]} : vector<23x28xf32> to vector<23x23xf32>
    %2 = vector.extract_strided_slice %0 {offsets = [0, 23], sizes = [23, 4], strides = [1, 1]} : vector<23x28xf32> to vector<23x4xf32>
    %3 = vector.extract_strided_slice %0 {offsets = [0, 27], sizes = [23, 1], strides = [1, 1]} : vector<23x28xf32> to vector<23x1xf32>
    %c0_1 = arith.constant 0 : index
    %c0_2 = arith.constant 0 : index
    %4 = vector.load %arg4[%c0_1, %c0_2] : memref<64x8xf32, #tpu.memory_space<vmem>>, vector<64x8xf32>
    %5 = vector.extract_strided_slice %4 {offsets = [0, 0], sizes = [4, 8], strides = [1, 1]} : vector<64x8xf32> to vector<4x8xf32>
    %6 = vector.extract_strided_slice %4 {offsets = [8, 0], sizes = [1, 8], strides = [1, 1]} : vector<64x8xf32> to vector<1x8xf32>
    %cst = arith.constant dense<0.000000e+00> : vector<23x8xf32>
    %7 = tpu.matmul %2, %5, %cst {dimension_numbers = #tpu.dot_dimension_numbers<[1], [0], [0], [1], [0, 0, 1, 1], [], []>} : vector<23x4xf32>, vector<4x8xf32>, vector<23x8xf32> -> vector<23x8xf32>
    %cst_3 = arith.constant dense<0.000000e+00> : vector<23x8xf32>
    %8 = tpu.matmul %1, %7, %cst_3 {dimension_numbers = #tpu.dot_dimension_numbers<[1], [0], [0], [1], [0, 0, 1, 1], [], []>} : vector<23x23xf32>, vector<23x8xf32>, vector<23x8xf32> -> vector<23x8xf32>
    %9 = vector.broadcast %6 : vector<1x8xf32> to vector<23x8xf32>
    %10 = arith.addf %8, %9 : vector<23x8xf32>
    %11 = math.tanh %10 : vector<23x8xf32>
    %12 = vector.extract_strided_slice %4 {offsets = [16, 0], sizes = [8, 8], strides = [1, 1]} : vector<64x8xf32> to vector<8x8xf32>
    %13 = vector.extract_strided_slice %4 {offsets = [24, 0], sizes = [1, 8], strides = [1, 1]} : vector<64x8xf32> to vector<1x8xf32>
    %cst_4 = arith.constant dense<0.000000e+00> : vector<23x8xf32>
    %14 = tpu.matmul %11, %12, %cst_4 {dimension_numbers = #tpu.dot_dimension_numbers<[1], [0], [0], [1], [0, 0, 1, 1], [], []>} : vector<23x8xf32>, vector<8x8xf32>, vector<23x8xf32> -> vector<23x8xf32>
    %cst_5 = arith.constant dense<0.000000e+00> : vector<23x8xf32>
    %15 = tpu.matmul %1, %14, %cst_5 {dimension_numbers = #tpu.dot_dimension_numbers<[1], [0], [0], [1], [0, 0, 1, 1], [], []>} : vector<23x23xf32>, vector<23x8xf32>, vector<23x8xf32> -> vector<23x8xf32>
    %16 = vector.broadcast %13 : vector<1x8xf32> to vector<23x8xf32>
    %17 = arith.addf %15, %16 : vector<23x8xf32>
    %18 = math.tanh %17 : vector<23x8xf32>
    %19 = vector.extract_strided_slice %4 {offsets = [32, 0], sizes = [8, 8], strides = [1, 1]} : vector<64x8xf32> to vector<8x8xf32>
    %20 = vector.extract_strided_slice %4 {offsets = [40, 0], sizes = [1, 8], strides = [1, 1]} : vector<64x8xf32> to vector<1x8xf32>
    %cst_6 = arith.constant dense<0.000000e+00> : vector<23x8xf32>
    %21 = tpu.matmul %18, %19, %cst_6 {dimension_numbers = #tpu.dot_dimension_numbers<[1], [0], [0], [1], [0, 0, 1, 1], [], []>} : vector<23x8xf32>, vector<8x8xf32>, vector<23x8xf32> -> vector<23x8xf32>
    %cst_7 = arith.constant dense<0.000000e+00> : vector<23x8xf32>
    %22 = tpu.matmul %1, %21, %cst_7 {dimension_numbers = #tpu.dot_dimension_numbers<[1], [0], [0], [1], [0, 0, 1, 1], [], []>} : vector<23x23xf32>, vector<23x8xf32>, vector<23x8xf32> -> vector<23x8xf32>
    %23 = vector.broadcast %20 : vector<1x8xf32> to vector<23x8xf32>
    %24 = arith.addf %22, %23 : vector<23x8xf32>
    %25 = math.tanh %24 : vector<23x8xf32>
    %26 = vector.extract_strided_slice %4 {offsets = [48, 0], sizes = [8, 8], strides = [1, 1]} : vector<64x8xf32> to vector<8x8xf32>
    %27 = vector.extract_strided_slice %4 {offsets = [56, 0], sizes = [1, 8], strides = [1, 1]} : vector<64x8xf32> to vector<1x8xf32>
    %cst_8 = arith.constant dense<0.000000e+00> : vector<23x8xf32>
    %28 = tpu.matmul %25, %26, %cst_8 {dimension_numbers = #tpu.dot_dimension_numbers<[1], [0], [0], [1], [0, 0, 1, 1], [], []>} : vector<23x8xf32>, vector<8x8xf32>, vector<23x8xf32> -> vector<23x8xf32>
    %cst_9 = arith.constant dense<0.000000e+00> : vector<23x8xf32>
    %29 = tpu.matmul %1, %28, %cst_9 {dimension_numbers = #tpu.dot_dimension_numbers<[1], [0], [0], [1], [0, 0, 1, 1], [], []>} : vector<23x23xf32>, vector<23x8xf32>, vector<23x8xf32> -> vector<23x8xf32>
    %30 = vector.broadcast %27 : vector<1x8xf32> to vector<23x8xf32>
    %31 = arith.addf %29, %30 : vector<23x8xf32>
    %32 = math.tanh %31 : vector<23x8xf32>
    %33 = tpu.concatenate %11, %18, %25, %32 in 1 : vector<23x8xf32>, vector<23x8xf32>, vector<23x8xf32>, vector<23x8xf32> -> vector<23x32xf32>
    %34 = vector.extract_strided_slice %32 {offsets = [0, 0], sizes = [23, 1], strides = [1, 1]} : vector<23x8xf32> to vector<23x1xf32>
    %35 = tpu.transpose %3, [1, 0] : vector<23x1xf32> -> vector<1x23xf32>
    %36 = tpu.transpose %34, [1, 0] : vector<23x1xf32> -> vector<1x23xf32>
    %37 = vector.broadcast %3 : vector<23x1xf32> to vector<23x23xf32>
    %38 = vector.broadcast %35 : vector<1x23xf32> to vector<23x23xf32>
    %39 = arith.cmpf oeq, %37, %38 : vector<23x23xf32>
    %40 = tpu.iota {dimensions = array<i32: 0>} : vector<23x23xi32>
    %41 = tpu.iota {dimensions = array<i32: 1>} : vector<23x23xi32>
    %42 = vector.broadcast %34 : vector<23x1xf32> to vector<23x23xf32>
    %43 = vector.broadcast %36 : vector<1x23xf32> to vector<23x23xf32>
    %44 = arith.cmpf ogt, %42, %43 : vector<23x23xf32>
    %45 = vector.broadcast %34 : vector<23x1xf32> to vector<23x23xf32>
    %46 = vector.broadcast %36 : vector<1x23xf32> to vector<23x23xf32>
    %47 = arith.cmpf oeq, %45, %46 : vector<23x23xf32>
    %48 = arith.cmpi slt, %40, %41 : vector<23x23xi32>
    %49 = arith.andi %47, %48 : vector<23x23xi1>
    %50 = arith.ori %44, %49 : vector<23x23xi1>
    %51 = arith.andi %39, %50 : vector<23x23xi1>
    %cst_10 = arith.constant 1.000000e+00 : f32
    %cst_11 = arith.constant 0.000000e+00 : f32
    %52 = vector.broadcast %cst_10 : f32 to vector<23x23xf32>
    %53 = vector.broadcast %cst_11 : f32 to vector<23x23xf32>
    %54 = arith.select %51, %52, %53 : vector<23x23xi1>, vector<23x23xf32>
    %cst_12 = arith.constant 1.000000e+00 : f32
    %55 = vector.broadcast %cst_12 : f32 to vector<1x23xf32>
    %cst_13 = arith.constant dense<0.000000e+00> : vector<1x23xf32>
    %56 = tpu.matmul %55, %54, %cst_13 {dimension_numbers = #tpu.dot_dimension_numbers<[1], [0], [0], [1], [0, 0, 1, 1], [], []>} : vector<1x23xf32>, vector<23x23xf32>, vector<1x23xf32> -> vector<1x23xf32>
    %c0_14 = arith.constant 0 : index
    %c0_15 = arith.constant 0 : index
    %57 = vector.load %arg3[%c0_14, %c0_15] : memref<40x3xf32, #tpu.memory_space<vmem>>, vector<40x3xf32>
    %58 = vector.extract_strided_slice %57 {offsets = [0, 0], sizes = [40, 1], strides = [1, 1]} : vector<40x3xf32> to vector<40x1xf32>
    %59 = vector.extract_strided_slice %57 {offsets = [0, 1], sizes = [40, 1], strides = [1, 1]} : vector<40x3xf32> to vector<40x1xf32>
    %60 = vector.extract_strided_slice %57 {offsets = [0, 2], sizes = [40, 1], strides = [1, 1]} : vector<40x3xf32> to vector<40x1xf32>
    %61 = vector.broadcast %35 : vector<1x23xf32> to vector<40x23xf32>
    %62 = vector.broadcast %58 : vector<40x1xf32> to vector<40x23xf32>
    %63 = arith.cmpf oeq, %61, %62 : vector<40x23xf32>
    %64 = vector.broadcast %56 : vector<1x23xf32> to vector<40x23xf32>
    %65 = vector.broadcast %59 : vector<40x1xf32> to vector<40x23xf32>
    %66 = arith.cmpf oeq, %64, %65 : vector<40x23xf32>
    %67 = arith.andi %63, %66 : vector<40x23xi1>
    %cst_16 = arith.constant 1.000000e+00 : f32
    %cst_17 = arith.constant 0.000000e+00 : f32
    %68 = vector.broadcast %cst_16 : f32 to vector<40x23xf32>
    %69 = vector.broadcast %cst_17 : f32 to vector<40x23xf32>
    %70 = arith.select %67, %68, %69 : vector<40x23xi1>, vector<40x23xf32>
    %71 = vector.broadcast %56 : vector<1x23xf32> to vector<40x23xf32>
    %72 = vector.broadcast %60 : vector<40x1xf32> to vector<40x23xf32>
    %73 = arith.cmpf oeq, %71, %72 : vector<40x23xf32>
    %74 = arith.andi %63, %73 : vector<40x23xi1>
    %cst_18 = arith.constant 1.000000e+00 : f32
    %cst_19 = arith.constant 0.000000e+00 : f32
    %75 = vector.broadcast %cst_18 : f32 to vector<40x23xf32>
    %76 = vector.broadcast %cst_19 : f32 to vector<40x23xf32>
    %77 = arith.select %74, %75, %76 : vector<40x23xi1>, vector<40x23xf32>
    %c0_20 = arith.constant 0 : index
    %c0_21 = arith.constant 0 : index
    %78 = vector.load %arg6[%c0_20, %c0_21] : memref<296x32xf32, #tpu.memory_space<vmem>>, vector<296x32xf32>
    %79 = vector.extract_strided_slice %78 {offsets = [0, 0], sizes = [32, 16], strides = [1, 1]} : vector<296x32xf32> to vector<32x16xf32>
    %cst_22 = arith.constant dense<0.000000e+00> : vector<23x16xf32>
    %80 = tpu.matmul %33, %79, %cst_22 {dimension_numbers = #tpu.dot_dimension_numbers<[1], [0], [0], [1], [0, 0, 1, 1], [], []>} : vector<23x32xf32>, vector<32x16xf32>, vector<23x16xf32> -> vector<23x16xf32>
    %cst_23 = arith.constant dense<0.000000e+00> : vector<40x16xf32>
    %81 = tpu.matmul %70, %80, %cst_23 {dimension_numbers = #tpu.dot_dimension_numbers<[1], [0], [0], [1], [0, 0, 1, 1], [], []>} : vector<40x23xf32>, vector<23x16xf32>, vector<40x16xf32> -> vector<40x16xf32>
    %cst_24 = arith.constant dense<0.000000e+00> : vector<40x16xf32>
    %82 = tpu.matmul %77, %80, %cst_24 {dimension_numbers = #tpu.dot_dimension_numbers<[1], [0], [0], [1], [0, 0, 1, 1], [], []>} : vector<40x23xf32>, vector<23x16xf32>, vector<40x16xf32> -> vector<40x16xf32>
    %83 = arith.maximumf %81, %82 : vector<40x16xf32>
    %84 = vector.extract_strided_slice %78 {offsets = [32, 0], sizes = [1, 16], strides = [1, 1]} : vector<296x32xf32> to vector<1x16xf32>
    %85 = vector.broadcast %84 : vector<1x16xf32> to vector<40x16xf32>
    %86 = arith.addf %83, %85 : vector<40x16xf32>
    %cst_25 = arith.constant 0.000000e+00 : f32
    %87 = vector.broadcast %cst_25 : f32 to vector<40x16xf32>
    %88 = arith.maximumf %86, %87 : vector<40x16xf32>
    %89 = vector.extract_strided_slice %88 {offsets = [0, 0], sizes = [2, 16], strides = [1, 1]} : vector<40x16xf32> to vector<2x16xf32>
    %90 = vector.extract_strided_slice %88 {offsets = [8, 0], sizes = [2, 16], strides = [1, 1]} : vector<40x16xf32> to vector<2x16xf32>
    %91 = vector.extract_strided_slice %88 {offsets = [16, 0], sizes = [2, 16], strides = [1, 1]} : vector<40x16xf32> to vector<2x16xf32>
    %92 = vector.extract_strided_slice %88 {offsets = [24, 0], sizes = [2, 16], strides = [1, 1]} : vector<40x16xf32> to vector<2x16xf32>
    %93 = vector.extract_strided_slice %88 {offsets = [32, 0], sizes = [2, 16], strides = [1, 1]} : vector<40x16xf32> to vector<2x16xf32>
    %94 = tpu.concatenate %89, %90, %91, %92, %93 in 1 : vector<2x16xf32>, vector<2x16xf32>, vector<2x16xf32>, vector<2x16xf32>, vector<2x16xf32> -> vector<2x80xf32>
    %95 = vector.extract_strided_slice %78 {offsets = [40, 0], sizes = [80, 32], strides = [1, 1]} : vector<296x32xf32> to vector<80x32xf32>
    %cst_26 = arith.constant dense<0.000000e+00> : vector<2x32xf32>
    %96 = tpu.matmul %94, %95, %cst_26 {dimension_numbers = #tpu.dot_dimension_numbers<[1], [0], [0], [1], [0, 0, 1, 1], [], []>} : vector<2x80xf32>, vector<80x32xf32>, vector<2x32xf32> -> vector<2x32xf32>
    %97 = vector.extract_strided_slice %78 {offsets = [120, 0], sizes = [1, 32], strides = [1, 1]} : vector<296x32xf32> to vector<1x32xf32>
    %98 = vector.broadcast %97 : vector<1x32xf32> to vector<2x32xf32>
    %99 = arith.addf %96, %98 : vector<2x32xf32>
    %cst_27 = arith.constant 0.000000e+00 : f32
    %100 = vector.broadcast %cst_27 : f32 to vector<2x32xf32>
    %101 = arith.maximumf %99, %100 : vector<2x32xf32>
    %102 = vector.extract_strided_slice %78 {offsets = [128, 0], sizes = [32, 16], strides = [1, 1]} : vector<296x32xf32> to vector<32x16xf32>
    %cst_28 = arith.constant dense<0.000000e+00> : vector<2x16xf32>
    %103 = tpu.matmul %101, %102, %cst_28 {dimension_numbers = #tpu.dot_dimension_numbers<[1], [0], [0], [1], [0, 0, 1, 1], [], []>} : vector<2x32xf32>, vector<32x16xf32>, vector<2x16xf32> -> vector<2x16xf32>
    %104 = vector.extract_strided_slice %78 {offsets = [160, 0], sizes = [1, 16], strides = [1, 1]} : vector<296x32xf32> to vector<1x16xf32>
    %105 = vector.broadcast %104 : vector<1x16xf32> to vector<2x16xf32>
    %106 = arith.addf %103, %105 : vector<2x16xf32>
    %c0_29 = arith.constant 0 : index
    %c0_30 = arith.constant 0 : index
    %107 = vector.load %arg1[%c0_29, %c0_30] : memref<12x44xf32, #tpu.memory_space<vmem>>, vector<12x44xf32>
    %108 = vector.extract_strided_slice %107 {offsets = [0, 0], sizes = [12, 32], strides = [1, 1]} : vector<12x44xf32> to vector<12x32xf32>
    %109 = vector.extract_strided_slice %107 {offsets = [0, 32], sizes = [12, 12], strides = [1, 1]} : vector<12x44xf32> to vector<12x12xf32>
    %c0_31 = arith.constant 0 : index
    %c0_32 = arith.constant 0 : index
    %110 = vector.load %arg5[%c0_31, %c0_32] : memref<80x16xf32, #tpu.memory_space<vmem>>, vector<80x16xf32>
    %111 = vector.extract_strided_slice %110 {offsets = [0, 0], sizes = [32, 8], strides = [1, 1]} : vector<80x16xf32> to vector<32x8xf32>
    %cst_33 = arith.constant dense<0.000000e+00> : vector<12x8xf32>
    %112 = tpu.matmul %108, %111, %cst_33 {dimension_numbers = #tpu.dot_dimension_numbers<[1], [0], [0], [1], [0, 0, 1, 1], [], []>} : vector<12x32xf32>, vector<32x8xf32>, vector<12x8xf32> -> vector<12x8xf32>
    %113 = vector.extract_strided_slice %110 {offsets = [32, 0], sizes = [8, 2], strides = [1, 1]} : vector<80x16xf32> to vector<8x2xf32>
    %cst_34 = arith.constant dense<0.000000e+00> : vector<12x2xf32>
    %114 = tpu.matmul %112, %113, %cst_34 {dimension_numbers = #tpu.dot_dimension_numbers<[1], [0], [0], [1], [0, 0, 1, 1], [], []>} : vector<12x8xf32>, vector<8x2xf32>, vector<12x2xf32> -> vector<12x2xf32>
    %115 = vector.extract_strided_slice %114 {offsets = [0, 1], sizes = [12, 1], strides = [1, 1]} : vector<12x2xf32> to vector<12x1xf32>
    %116 = vector.extract_strided_slice %114 {offsets = [0, 0], sizes = [12, 1], strides = [1, 1]} : vector<12x2xf32> to vector<12x1xf32>
    %117 = tpu.transpose %116, [1, 0] : vector<12x1xf32> -> vector<1x12xf32>
    %118 = vector.broadcast %115 : vector<12x1xf32> to vector<12x12xf32>
    %119 = vector.broadcast %117 : vector<1x12xf32> to vector<12x12xf32>
    %120 = arith.addf %118, %119 : vector<12x12xf32>
    %cst_35 = arith.constant 0.000000e+00 : f32
    %121 = vector.broadcast %cst_35 : f32 to vector<12x12xf32>
    %122 = arith.cmpf ogt, %120, %121 : vector<12x12xf32>
    %cst_36 = arith.constant 2.000000e-01 : f32
    %123 = vector.broadcast %cst_36 : f32 to vector<12x12xf32>
    %124 = arith.mulf %123, %120 : vector<12x12xf32>
    %125 = arith.select %122, %120, %124 : vector<12x12xi1>, vector<12x12xf32>
    %126 = arith.addf %125, %109 : vector<12x12xf32>
    %cst_37 = arith.constant dense<0xFF800000> : vector<12xf32>
    %127 = vector.multi_reduction <maximumf>, %126, %cst_37 [1] : vector<12x12xf32> to vector<12xf32>
    %128 = vector.shape_cast %127 : vector<12xf32> to vector<12x1xf32>
    %129 = vector.broadcast %128 : vector<12x1xf32> to vector<12x12xf32>
    %130 = arith.subf %126, %129 : vector<12x12xf32>
    %131 = math.exp %130 : vector<12x12xf32>
    %cst_38 = arith.constant dense<0.000000e+00> : vector<12xf32>
    %132 = vector.multi_reduction <add>, %131, %cst_38 [1] : vector<12x12xf32> to vector<12xf32>
    %133 = vector.shape_cast %132 : vector<12xf32> to vector<12x1xf32>
    %134 = vector.broadcast %133 : vector<12x1xf32> to vector<12x12xf32>
    %135 = arith.divf %131, %134 : vector<12x12xf32>
    %cst_39 = arith.constant dense<0.000000e+00> : vector<12x8xf32>
    %136 = tpu.matmul %135, %112, %cst_39 {dimension_numbers = #tpu.dot_dimension_numbers<[1], [0], [0], [1], [0, 0, 1, 1], [], []>} : vector<12x12xf32>, vector<12x8xf32>, vector<12x8xf32> -> vector<12x8xf32>
    %137 = vector.extract_strided_slice %110 {offsets = [40, 0], sizes = [1, 8], strides = [1, 1]} : vector<80x16xf32> to vector<1x8xf32>
    %138 = vector.broadcast %137 : vector<1x8xf32> to vector<12x8xf32>
    %139 = arith.addf %136, %138 : vector<12x8xf32>
    %cst_40 = arith.constant 0.000000e+00 : f32
    %140 = vector.broadcast %cst_40 : f32 to vector<12x8xf32>
    %141 = arith.maximumf %139, %140 : vector<12x8xf32>
    %142 = vector.extract_strided_slice %110 {offsets = [48, 0], sizes = [8, 16], strides = [1, 1]} : vector<80x16xf32> to vector<8x16xf32>
    %cst_41 = arith.constant dense<0.000000e+00> : vector<12x16xf32>
    %143 = tpu.matmul %141, %142, %cst_41 {dimension_numbers = #tpu.dot_dimension_numbers<[1], [0], [0], [1], [0, 0, 1, 1], [], []>} : vector<12x8xf32>, vector<8x16xf32>, vector<12x16xf32> -> vector<12x16xf32>
    %144 = vector.extract_strided_slice %110 {offsets = [56, 0], sizes = [16, 2], strides = [1, 1]} : vector<80x16xf32> to vector<16x2xf32>
    %cst_42 = arith.constant dense<0.000000e+00> : vector<12x2xf32>
    %145 = tpu.matmul %143, %144, %cst_42 {dimension_numbers = #tpu.dot_dimension_numbers<[1], [0], [0], [1], [0, 0, 1, 1], [], []>} : vector<12x16xf32>, vector<16x2xf32>, vector<12x2xf32> -> vector<12x2xf32>
    %146 = vector.extract_strided_slice %145 {offsets = [0, 1], sizes = [12, 1], strides = [1, 1]} : vector<12x2xf32> to vector<12x1xf32>
    %147 = vector.extract_strided_slice %145 {offsets = [0, 0], sizes = [12, 1], strides = [1, 1]} : vector<12x2xf32> to vector<12x1xf32>
    %148 = tpu.transpose %147, [1, 0] : vector<12x1xf32> -> vector<1x12xf32>
    %149 = vector.broadcast %146 : vector<12x1xf32> to vector<12x12xf32>
    %150 = vector.broadcast %148 : vector<1x12xf32> to vector<12x12xf32>
    %151 = arith.addf %149, %150 : vector<12x12xf32>
    %cst_43 = arith.constant 0.000000e+00 : f32
    %152 = vector.broadcast %cst_43 : f32 to vector<12x12xf32>
    %153 = arith.cmpf ogt, %151, %152 : vector<12x12xf32>
    %cst_44 = arith.constant 2.000000e-01 : f32
    %154 = vector.broadcast %cst_44 : f32 to vector<12x12xf32>
    %155 = arith.mulf %154, %151 : vector<12x12xf32>
    %156 = arith.select %153, %151, %155 : vector<12x12xi1>, vector<12x12xf32>
    %157 = arith.addf %156, %109 : vector<12x12xf32>
    %cst_45 = arith.constant dense<0xFF800000> : vector<12xf32>
    %158 = vector.multi_reduction <maximumf>, %157, %cst_45 [1] : vector<12x12xf32> to vector<12xf32>
    %159 = vector.shape_cast %158 : vector<12xf32> to vector<12x1xf32>
    %160 = vector.broadcast %159 : vector<12x1xf32> to vector<12x12xf32>
    %161 = arith.subf %157, %160 : vector<12x12xf32>
    %162 = math.exp %161 : vector<12x12xf32>
    %cst_46 = arith.constant dense<0.000000e+00> : vector<12xf32>
    %163 = vector.multi_reduction <add>, %162, %cst_46 [1] : vector<12x12xf32> to vector<12xf32>
    %164 = vector.shape_cast %163 : vector<12xf32> to vector<12x1xf32>
    %165 = vector.broadcast %164 : vector<12x1xf32> to vector<12x12xf32>
    %166 = arith.divf %162, %165 : vector<12x12xf32>
    %cst_47 = arith.constant dense<0.000000e+00> : vector<12x16xf32>
    %167 = tpu.matmul %166, %143, %cst_47 {dimension_numbers = #tpu.dot_dimension_numbers<[1], [0], [0], [1], [0, 0, 1, 1], [], []>} : vector<12x12xf32>, vector<12x16xf32>, vector<12x16xf32> -> vector<12x16xf32>
    %168 = vector.extract_strided_slice %110 {offsets = [72, 0], sizes = [1, 16], strides = [1, 1]} : vector<80x16xf32> to vector<1x16xf32>
    %169 = vector.broadcast %168 : vector<1x16xf32> to vector<12x16xf32>
    %170 = arith.addf %167, %169 : vector<12x16xf32>
    %c0_48 = arith.constant 0 : index
    %c0_49 = arith.constant 0 : index
    %171 = vector.load %arg2[%c0_48, %c0_49] : memref<2x12xf32, #tpu.memory_space<vmem>>, vector<2x12xf32>
    %cst_50 = arith.constant dense<0.000000e+00> : vector<2x16xf32>
    %172 = tpu.matmul %171, %170, %cst_50 {dimension_numbers = #tpu.dot_dimension_numbers<[1], [0], [0], [1], [0, 0, 1, 1], [], []>} : vector<2x12xf32>, vector<12x16xf32>, vector<2x16xf32> -> vector<2x16xf32>
    %173 = vector.extract_strided_slice %78 {offsets = [168, 0], sizes = [16, 16], strides = [1, 1]} : vector<296x32xf32> to vector<16x16xf32>
    %cst_51 = arith.constant dense<0.000000e+00> : vector<2x16xf32>
    %174 = tpu.matmul %106, %173, %cst_51 {dimension_numbers = #tpu.dot_dimension_numbers<[1], [0], [0], [1], [0, 0, 1, 1], [], []>} : vector<2x16xf32>, vector<16x16xf32>, vector<2x16xf32> -> vector<2x16xf32>
    %175 = vector.extract_strided_slice %78 {offsets = [184, 0], sizes = [1, 16], strides = [1, 1]} : vector<296x32xf32> to vector<1x16xf32>
    %176 = vector.broadcast %175 : vector<1x16xf32> to vector<2x16xf32>
    %177 = arith.addf %174, %176 : vector<2x16xf32>
    %178 = math.tanh %177 : vector<2x16xf32>
    %179 = vector.extract_strided_slice %78 {offsets = [192, 0], sizes = [16, 16], strides = [1, 1]} : vector<296x32xf32> to vector<16x16xf32>
    %cst_52 = arith.constant dense<0.000000e+00> : vector<2x16xf32>
    %180 = tpu.matmul %172, %179, %cst_52 {dimension_numbers = #tpu.dot_dimension_numbers<[1], [0], [0], [1], [0, 0, 1, 1], [], []>} : vector<2x16xf32>, vector<16x16xf32>, vector<2x16xf32> -> vector<2x16xf32>
    %181 = vector.extract_strided_slice %78 {offsets = [208, 0], sizes = [1, 16], strides = [1, 1]} : vector<296x32xf32> to vector<1x16xf32>
    %182 = vector.broadcast %181 : vector<1x16xf32> to vector<2x16xf32>
    %183 = arith.addf %180, %182 : vector<2x16xf32>
    %184 = math.tanh %183 : vector<2x16xf32>
    %185 = vector.extract_strided_slice %78 {offsets = [216, 0], sizes = [16, 1], strides = [1, 1]} : vector<296x32xf32> to vector<16x1xf32>
    %cst_53 = arith.constant dense<0.000000e+00> : vector<2x1xf32>
    %186 = tpu.matmul %178, %185, %cst_53 {dimension_numbers = #tpu.dot_dimension_numbers<[1], [0], [0], [1], [0, 0, 1, 1], [], []>} : vector<2x16xf32>, vector<16x1xf32>, vector<2x1xf32> -> vector<2x1xf32>
    %187 = vector.extract_strided_slice %78 {offsets = [232, 0], sizes = [1, 1], strides = [1, 1]} : vector<296x32xf32> to vector<1x1xf32>
    %188 = vector.broadcast %187 : vector<1x1xf32> to vector<2x1xf32>
    %189 = arith.addf %186, %188 : vector<2x1xf32>
    %190 = vector.extract_strided_slice %78 {offsets = [216, 0], sizes = [16, 1], strides = [1, 1]} : vector<296x32xf32> to vector<16x1xf32>
    %cst_54 = arith.constant dense<0.000000e+00> : vector<2x1xf32>
    %191 = tpu.matmul %184, %190, %cst_54 {dimension_numbers = #tpu.dot_dimension_numbers<[1], [0], [0], [1], [0, 0, 1, 1], [], []>} : vector<2x16xf32>, vector<16x1xf32>, vector<2x1xf32> -> vector<2x1xf32>
    %192 = vector.extract_strided_slice %78 {offsets = [232, 0], sizes = [1, 1], strides = [1, 1]} : vector<296x32xf32> to vector<1x1xf32>
    %193 = vector.broadcast %192 : vector<1x1xf32> to vector<2x1xf32>
    %194 = arith.addf %191, %193 : vector<2x1xf32>
    %195 = arith.maximumf %189, %194 : vector<2x1xf32>
    %196 = arith.subf %189, %195 : vector<2x1xf32>
    %197 = math.exp %196 : vector<2x1xf32>
    %198 = arith.subf %194, %195 : vector<2x1xf32>
    %199 = math.exp %198 : vector<2x1xf32>
    %200 = arith.addf %197, %199 : vector<2x1xf32>
    %cst_55 = arith.constant 1.000000e+00 : f32
    %201 = vector.broadcast %cst_55 : f32 to vector<2x1xf32>
    %202 = arith.divf %201, %200 : vector<2x1xf32>
    %203 = arith.mulf %197, %202 : vector<2x1xf32>
    %204 = vector.broadcast %203 : vector<2x1xf32> to vector<2x16xf32>
    %205 = arith.mulf %204, %106 : vector<2x16xf32>
    %206 = arith.mulf %199, %202 : vector<2x1xf32>
    %207 = vector.broadcast %206 : vector<2x1xf32> to vector<2x16xf32>
    %208 = arith.mulf %207, %172 : vector<2x16xf32>
    %209 = arith.addf %205, %208 : vector<2x16xf32>
    %210 = tpu.concatenate %106, %172, %209 in 1 : vector<2x16xf32>, vector<2x16xf32>, vector<2x16xf32> -> vector<2x48xf32>
    %211 = vector.extract_strided_slice %78 {offsets = [240, 0], sizes = [48, 3], strides = [1, 1]} : vector<296x32xf32> to vector<48x3xf32>
    %cst_56 = arith.constant dense<0.000000e+00> : vector<2x3xf32>
    %212 = tpu.matmul %210, %211, %cst_56 {dimension_numbers = #tpu.dot_dimension_numbers<[1], [0], [0], [1], [0, 0, 1, 1], [], []>} : vector<2x48xf32>, vector<48x3xf32>, vector<2x3xf32> -> vector<2x3xf32>
    %213 = vector.extract_strided_slice %78 {offsets = [288, 0], sizes = [1, 3], strides = [1, 1]} : vector<296x32xf32> to vector<1x3xf32>
    %214 = vector.broadcast %213 : vector<1x3xf32> to vector<2x3xf32>
    %215 = arith.addf %212, %214 : vector<2x3xf32>
    %c0_57 = arith.constant 0 : index
    %c0_58 = arith.constant 0 : index
    %216 = vector.load %arg7[%c0_57, %c0_58] : memref<2x3xf32, #tpu.memory_space<vmem>>, vector<2x3xf32>
    tpu.vector_store %arg7[%c0_57, %c0_58], %215 {strides = array<i32>} : memref<2x3xf32, #tpu.memory_space<vmem>>, vector<2x3xf32>,
    return
  }
}

</mosaic_0001>

<llo_original>
// kernel: bsal4_forward.1
$region0: #{bsal4_forward.1}
  #allocation0 [shape = 'u32[]', space=smem, size = 0x4, offset = 0x4, fixed_abs, tag = 'smem constant byte address 0x4 - core index']
  #allocation1 [shape = 'u32[144,128]{1,0:T(1,128)}', space=vmem, size = 0x12000, scoped, tag = 'internal scratch']
  %s0 = inlined_call_operand.vmem [shape: f32[23,28], index: 0, kind: input, shape index: {}]
  %s1 = inlined_call_operand.vmem [shape: f32[12,44], index: 1, kind: input, shape index: {}]
  %s2 = inlined_call_operand.vmem [shape: f32[2,12], index: 2, kind: input, shape index: {}]
  %s3 = inlined_call_operand.vmem [shape: f32[40,3], index: 3, kind: input, shape index: {}]
  %s4 = inlined_call_operand.vmem [shape: f32[64,8], index: 4, kind: input, shape index: {}]
  %s5 = inlined_call_operand.vmem [shape: f32[80,16], index: 5, kind: input, shape index: {}]
  %s6 = inlined_call_operand.vmem [shape: f32[296,32], index: 6, kind: input, shape index: {}]
  %s7 = inlined_call_operand.vmem [shape: f32[2,3], index: 7, kind: output, shape index: {}]
  %s8 = sld [smem:[#allocation0]]
  $region38: #{bsal4_forward.1} parent=0
    _
  %s10 = ssub.s32 1, %s8
  %s11 = scalar_select 0, %s10, %s8
  // Predicated region
  $region2: #{bsal4_forward.1} parent=0 // pred_check
    _
  $region3: #{bsal4_forward.1} parent=0 // pred_check_branch
    %13 = sbr.rel (0) target = $region5
  $region4: #{bsal4_forward.1} parent=0 // pred_region
    _
  $region5: #{bsal4_forward.1} parent=0 // pred_fallthru
    _
  // Predicated region
  $region6: #{bsal4_forward.1} parent=0 // pred_check
    _
  $region7: #{bsal4_forward.1} parent=0 // pred_check_branch
    %15 = sbr.rel (0) target = $region9
  $region8: #{bsal4_forward.1} parent=0 // pred_region
    _
  $region9: #{bsal4_forward.1} parent=0 // pred_fallthru
    _
  // Predicated region
  $region10: #{bsal4_forward.1} parent=0 // pred_check
    _
  $region11: #{bsal4_forward.1} parent=0 // pred_check_branch
    %17 = sbr.rel (0) target = $region13
  $region12: #{bsal4_forward.1} parent=0 // pred_region
    _
  $region13: #{bsal4_forward.1} parent=0 // pred_fallthru
    _
  // Predicated region
  $region14: #{bsal4_forward.1} parent=0 // pred_check
    _
  $region15: #{bsal4_forward.1} parent=0 // pred_check_branch
    %19 = sbr.rel (0) target = $region17
  $region16: #{bsal4_forward.1} parent=0 // pred_region
    _
  $region17: #{bsal4_forward.1} parent=0 // pred_fallthru
    _
  // Predicated region
  $region18: #{bsal4_forward.1} parent=0 // pred_check
    _
  $region19: #{bsal4_forward.1} parent=0 // pred_check_branch
    %21 = sbr.rel (0) target = $region21
  $region20: #{bsal4_forward.1} parent=0 // pred_region
    _
  $region21: #{bsal4_forward.1} parent=0 // pred_fallthru
    _
  // Predicated region
  $region22: #{bsal4_forward.1} parent=0 // pred_check
    _
  $region23: #{bsal4_forward.1} parent=0 // pred_check_branch
    %23 = sbr.rel (0) target = $region25
  $region24: #{bsal4_forward.1} parent=0 // pred_region
    _
  $region25: #{bsal4_forward.1} parent=0 // pred_fallthru
    _
  // Predicated region
  $region26: #{bsal4_forward.1} parent=0 // pred_check
    _
  $region27: #{bsal4_forward.1} parent=0 // pred_check_branch
    %25 = sbr.rel (0) target = $region29
  $region28: #{bsal4_forward.1} parent=0 // pred_region
    _
  $region29: #{bsal4_forward.1} parent=0 // pred_fallthru
    _
  %v26 = vld [vmem:[%s0] sm:$0xff]
  %v27 = vld [vmem:[%s0 + $0x8] sm:$0xff]
  %v28 = vld [vmem:[%s0 + $0x10] sm:$0x7f]
  %v29 = vld [vmem:[%s4] sm:$0xff]
  %v30 = vld [vmem:[%s4 + $0x8] sm:$0xff]
  %v31 = vld [vmem:[%s4 + $0x10] sm:$0xff]
  %v32 = vld [vmem:[%s4 + $0x18] sm:$0xff]
  %v33 = vld [vmem:[%s4 + $0x20] sm:$0xff]
  %v34 = vld [vmem:[%s4 + $0x28] sm:$0xff]
  %v35 = vld [vmem:[%s4 + $0x30] sm:$0xff]
  %v36 = vld [vmem:[%s4 + $0x38] sm:$0xff]
  %40 = vrot.lane.b32.xlu0 %v26, 105
  %v41 = vpop.permute.xlu0 %40
  %42 = vrot.lane.b32.xlu0 %v27, 105
  %v43 = vpop.permute.xlu0 %42
  %44 = vrot.lane.b32.xlu0 %v28, 105
  %v45 = vpop.permute.xlu0 %44
  %vm46 = vcmask 31744
  %v47 = vsel %vm46, %v41, 0
  %v49 = vsel %vm46, %v43, 0
  %v51 = vsel %vm46, %v45, 0
  %vm53 = vcmask 1043456
  %v55 = vsel %vm53, %v29, 0
  %57 = vmatprep.subr.mxu0 0.0
  %58 = vmatpush1.msra.mxu0 0.0
  %59 = vmatprep.subr.mxu0 0.0
  %60 = vmatpush1.msra.mxu0 0.0
  %61 = vmatprep.subr.mxu0 0.0
  %62 = vmatpush1.msra.mxu0 0.0
  %63 = vmatprep.subr.mxu0 0.0
  %64 = vmatpush1.msra.mxu0 0.0
  %65 = vmatprep.subr.mxu0 0.0
  %66 = vmatpush1.msra.mxu0 0.0
  %67 = vmatprep.subr.mxu0 0.0
  %68 = vmatpush1.msra.mxu0 0.0
  %69 = vmatprep.subr.mxu0 0.0
  %70 = vmatpush1.msra.mxu0 0.0
  %71 = vmatprep.subr.mxu0 0.0
  %72 = vmatpush1.msra.mxu0 0.0
  %73 = vmatprep.subr.mxu0 0.0
  %74 = vmatpush1.msra.mxu0 0.0
  %75 = vmatprep.subr.mxu0 0.0
  %76 = vmatpush1.msra.mxu0 0.0
  %77 = vmatprep.subr.mxu0 0.0
  %78 = vmatpush1.msra.mxu0 0.0
  %79 = vmatprep.subr.mxu0 0.0
  %80 = vmatpush1.msra.mxu0 0.0
  %81 = vmatprep.subr.mxu0 0.0
  %82 = vmatpush1.msra.mxu0 0.0
  %83 = vmatprep.subr.mxu0 0.0
  %84 = vmatpush1.msra.mxu0 0.0
  %85 = vmatprep.subr.mxu0 0.0
  %86 = vmatpush1.msra.mxu0 0.0
  %87 = vmatprep.subr.mxu0 0.0
  %88 = vmatpush1.msra.mxu0 %v55
  %89 = vmatprep.subr.mxu0 0.0
  %90 = vmatpush2.msra.mxu0 0.0
  %91 = vmatprep.subr.mxu0 0.0
  %92 = vmatpush2.msra.mxu0 0.0
  %93 = vmatprep.subr.mxu0 0.0
  %94 = vmatpush2.msra.mxu0 0.0
  %95 = vmatprep.subr.mxu0 0.0
  %96 = vmatpush2.msra.mxu0 0.0
  %97 = vmatprep.subr.mxu0 0.0
  %98 = vmatpush2.msra.mxu0 0.0
  %99 = vmatprep.subr.mxu0 0.0
  %100 = vmatpush2.msra.mxu0 0.0
  %101 = vmatprep.subr.mxu0 0.0
  %102 = vmatpush2.msra.mxu0 0.0
  %103 = vmatprep.subr.mxu0 0.0
  %104 = vmatpush2.msra.mxu0 0.0
  %105 = vmatprep.subr.mxu0 0.0
  %106 = vmatpush2.msra.mxu0 0.0
  %107 = vmatprep.subr.mxu0 0.0
  %108 = vmatpush2.msra.mxu0 0.0
  %109 = vmatprep.subr.mxu0 0.0
  %110 = vmatpush2.msra.mxu0 0.0
  %111 = vmatprep.subr.mxu0 0.0
  %112 = vmatpush2.msra.mxu0 0.0
  %113 = vmatprep.subr.mxu0 0.0
  %114 = vmatpush2.msra.mxu0 0.0
  %115 = vmatprep.subr.mxu0 0.0
  %116 = vmatpush2.msra.mxu0 0.0
  %117 = vmatprep.subr.mxu0 0.0
  %118 = vmatpush2.msra.mxu0 0.0
  %119 = vmatprep.subr.mxu0 0.0
  %120 = vmatpush2.msra.mxu0 0.0
  %121 = vmatprep.mubr.f32.mxu0 0.0
  %122 = vmatmul.mubr.f32.gmra.mxu0 %v47
  %v123 = vpop.f32.mrf.mxu0
  %v124 = vadd.f32 0.0, %v123
  %v125 = vpop.f32.mrf.mxu0
  %126 = vmatprep.mubr.f32.mxu0 0.0
  %127 = vmatmul.mubr.f32.gmra.mxu0 %v49
  %v128 = vpop.f32.mrf.mxu0
  %v129 = vadd.f32 0.0, %v128
  %v130 = vpop.f32.mrf.mxu0
  %131 = vmatprep.mubr.f32.mxu0 0.0
  %132 = vmatmul.mubr.f32.gmra.mxu0 %v51
  %v133 = vpop.f32.mrf.mxu0
  %v134 = vadd.f32 0.0, %v133
  %v135 = vpop.f32.mrf.mxu0
  %136 = vdwg.mxu0
  %v137 = vlaneseq
  %v138 = vshrl.u32 %v137, 7
  %v139 = vsub.s32 0, %v138
  %v140 = vrot.slane %v30, %v139
  %vm141 = vcmask 187392
  %v142 = vsel %vm141, %v26, 0
  %v144 = vsel %vm141, %v27, 0
  %v146 = vsel %vm141, %v28, 0
  %vm148 = vcmask 1046528
  %v150 = vsel %vm148, %v134, 0
  %152 = vmatprep.subr.mxu0 0.0
  %153 = vmatpush1.msra.mxu0 0.0
  %154 = vmatprep.subr.mxu0 0.0
  %155 = vmatpush1.msra.mxu0 0.0
  %156 = vmatprep.subr.mxu0 0.0
  %157 = vmatpush1.msra.mxu0 0.0
  %158 = vmatprep.subr.mxu0 0.0
  %159 = vmatpush1.msra.mxu0 0.0
  %160 = vmatprep.subr.mxu0 0.0
  %161 = vmatpush1.msra.mxu0 0.0
  %162 = vmatprep.subr.mxu0 0.0
  %163 = vmatpush1.msra.mxu0 0.0
  %164 = vmatprep.subr.mxu0 0.0
  %165 = vmatpush1.msra.mxu0 0.0
  %166 = vmatprep.subr.mxu0 0.0
  %167 = vmatpush1.msra.mxu0 0.0
  %168 = vmatprep.subr.mxu0 0.0
  %169 = vmatpush1.msra.mxu0 0.0
  %170 = vmatprep.subr.mxu0 0.0
  %171 = vmatpush1.msra.mxu0 0.0
  %172 = vmatprep.subr.mxu0 0.0
  %173 = vmatpush1.msra.mxu0 0.0
  %174 = vmatprep.subr.mxu0 0.0
  %175 = vmatpush1.msra.mxu0 0.0
  %176 = vmatprep.subr.mxu0 0.0
  %177 = vmatpush1.msra.mxu0 0.0
  %178 = vmatprep.subr.mxu0 0.0
  %179 = vmatpush1.msra.mxu0 %v150
  %180 = vmatprep.subr.mxu0 0.0
  %181 = vmatpush1.msra.mxu0 %v129
  %182 = vmatprep.subr.mxu0 0.0
  %183 = vmatpush1.msra.mxu0 %v124
  %184 = vmatprep.subr.mxu0 0.0
  %185 = vmatpush2.msra.mxu0 0.0
  %186 = vmatprep.subr.mxu0 0.0
  %187 = vmatpush2.msra.mxu0 0.0
  %188 = vmatprep.subr.mxu0 0.0
  %189 = vmatpush2.msra.mxu0 0.0
  %190 = vmatprep.subr.mxu0 0.0
  %191 = vmatpush2.msra.mxu0 0.0
  %192 = vmatprep.subr.mxu0 0.0
  %193 = vmatpush2.msra.mxu0 0.0
  %194 = vmatprep.subr.mxu0 0.0
  %195 = vmatpush2.msra.mxu0 0.0
  %196 = vmatprep.subr.mxu0 0.0
  %197 = vmatpush2.msra.mxu0 0.0
  %198 = vmatprep.subr.mxu0 0.0
  %199 = vmatpush2.msra.mxu0 0.0
  %200 = vmatprep.subr.mxu0 0.0
  %201 = vmatpush2.msra.mxu0 0.0
  %202 = vmatprep.subr.mxu0 0.0
  %203 = vmatpush2.msra.mxu0 0.0
  %204 = vmatprep.subr.mxu0 0.0
  %205 = vmatpush2.msra.mxu0 0.0
  %206 = vmatprep.subr.mxu0 0.0
  %207 = vmatpush2.msra.mxu0 0.0
  %208 = vmatprep.subr.mxu0 0.0
  %209 = vmatpush2.msra.mxu0 0.0
  %210 = vmatprep.subr.mxu0 0.0
  %211 = vmatpush2.msra.mxu0 0.0
  %212 = vmatprep.subr.mxu0 0.0
  %213 = vmatpush2.msra.mxu0 0.0
  %214 = vmatprep.subr.mxu0 0.0
  %215 = vmatpush2.msra.mxu0 0.0
  %216 = vmatprep.mubr.f32.mxu0 0.0
  %217 = vmatmul.mubr.f32.gmra.mxu0 %v142
  %v218 = vpop.f32.mrf.mxu0
  %v219 = vadd.f32 %v140, %v218
  %v220 = vpop.f32.mrf.mxu0
  %221 = vmatprep.mubr.f32.mxu0 0.0
  %222 = vmatmul.mubr.f32.gmra.mxu0 %v144
  %v223 = vpop.f32.mrf.mxu0
  %v224 = vadd.f32 %v140, %v223
  %v225 = vpop.f32.mrf.mxu0
  %226 = vmatprep.mubr.f32.mxu0 0.0
  %227 = vmatmul.mubr.f32.gmra.mxu0 %v146
  %v228 = vpop.f32.mrf.mxu0
  %v229 = vadd.f32 %v140, %v228
  %v230 = vpop.f32.mrf.mxu0
  %231 = vdwg.mxu0
  %v232 = vtanh.pop %v219
  %v233 = vtanh.pop %v224
  %v234 = vtanh.pop %v229
  %vm235 = vcmask 64512
  %v237 = vsel %vm235, %v232, 0
  %v240 = vsel %vm235, %v233, 0
  %v243 = vsel %vm235, %v234, 0
  %245 = vmatprep.subr.mxu0 0.0
  %246 = vmatpush1.msra.mxu0 0.0
  %247 = vmatprep.subr.mxu0 0.0
  %248 = vmatpush1.msra.mxu0 0.0
  %249 = vmatprep.subr.mxu0 0.0
  %250 = vmatpush1.msra.mxu0 0.0
  %251 = vmatprep.subr.mxu0 0.0
  %252 = vmatpush1.msra.mxu0 0.0
  %253 = vmatprep.subr.mxu0 0.0
  %254 = vmatpush1.msra.mxu0 0.0
  %255 = vmatprep.subr.mxu0 0.0
  %256 = vmatpush1.msra.mxu0 0.0
  %257 = vmatprep.subr.mxu0 0.0
  %258 = vmatpush1.msra.mxu0 0.0
  %259 = vmatprep.subr.mxu0 0.0
  %260 = vmatpush1.msra.mxu0 0.0
  %261 = vmatprep.subr.mxu0 0.0
  %262 = vmatpush1.msra.mxu0 0.0
  %263 = vmatprep.subr.mxu0 0.0
  %264 = vmatpush1.msra.mxu0 0.0
  %265 = vmatprep.subr.mxu0 0.0
  %266 = vmatpush1.msra.mxu0 0.0
  %267 = vmatprep.subr.mxu0 0.0
  %268 = vmatpush1.msra.mxu0 0.0
  %269 = vmatprep.subr.mxu0 0.0
  %270 = vmatpush1.msra.mxu0 0.0
  %271 = vmatprep.subr.mxu0 0.0
  %272 = vmatpush1.msra.mxu0 0.0
  %273 = vmatprep.subr.mxu0 0.0
  %274 = vmatpush1.msra.mxu0 0.0
  %275 = vmatprep.subr.mxu0 0.0
  %276 = vmatpush1.msra.mxu0 %v31
  %277 = vmatprep.subr.mxu0 0.0
  %278 = vmatpush2.msra.mxu0 0.0
  %279 = vmatprep.subr.mxu0 0.0
  %280 = vmatpush2.msra.mxu0 0.0
  %281 = vmatprep.subr.mxu0 0.0
  %282 = vmatpush2.msra.mxu0 0.0
  %283 = vmatprep.subr.mxu0 0.0
  %284 = vmatpush2.msra.mxu0 0.0
  %285 = vmatprep.subr.mxu0 0.0
  %286 = vmatpush2.msra.mxu0 0.0
  %287 = vmatprep.subr.mxu0 0.0
  %288 = vmatpush2.msra.mxu0 0.0
  %289 = vmatprep.subr.mxu0 0.0
  %290 = vmatpush2.msra.mxu0 0.0
  %291 = vmatprep.subr.mxu0 0.0
  %292 = vmatpush2.msra.mxu0 0.0
  %293 = vmatprep.subr.mxu0 0.0
  %294 = vmatpush2.msra.mxu0 0.0
  %295 = vmatprep.subr.mxu0 0.0
  %296 = vmatpush2.msra.mxu0 0.0
  %297 = vmatprep.subr.mxu0 0.0
  %298 = vmatpush2.msra.mxu0 0.0
  %299 = vmatprep.subr.mxu0 0.0
  %300 = vmatpush2.msra.mxu0 0.0
  %301 = vmatprep.subr.mxu0 0.0
  %302 = vmatpush2.msra.mxu0 0.0
  %303 = vmatprep.subr.mxu0 0.0
  %304 = vmatpush2.msra.mxu0 0.0
  %305 = vmatprep.subr.mxu0 0.0
  %306 = vmatpush2.msra.mxu0 0.0
  %307 = vmatprep.subr.mxu0 0.0
  %308 = vmatpush2.msra.mxu0 0.0
  %309 = vmatprep.mubr.f32.mxu0 0.0
  %310 = vmatmul.mubr.f32.gmra.mxu0 %v237
  %v311 = vpop.f32.mrf.mxu0
  %v312 = vadd.f32 0.0, %v311
  %v313 = vpop.f32.mrf.mxu0
  %314 = vmatprep.mubr.f32.mxu0 0.0
  %315 = vmatmul.mubr.f32.gmra.mxu0 %v240
  %v316 = vpop.f32.mrf.mxu0
  %v317 = vadd.f32 0.0, %v316
  %v318 = vpop.f32.mrf.mxu0
  %319 = vmatprep.mubr.f32.mxu0 0.0
  %320 = vmatmul.mubr.f32.gmra.mxu0 %v243
  %v321 = vpop.f32.mrf.mxu0
  %v322 = vadd.f32 0.0, %v321
  %v323 = vpop.f32.mrf.mxu0
  %324 = vdwg.mxu0
  %v325 = vlaneseq
  %v326 = vshrl.u32 %v325, 7
  %v327 = vsub.s32 0, %v326
  %v328 = vrot.slane %v32, %v327
  %v330 = vsel %vm148, %v322, 0
  %332 = vmatprep.subr.mxu0 0.0
  %333 = vmatpush1.msra.mxu0 0.0
  %334 = vmatprep.subr.mxu0 0.0
  %335 = vmatpush1.msra.mxu0 0.0
  %336 = vmatprep.subr.mxu0 0.0
  %337 = vmatpush1.msra.mxu0 0.0
  %338 = vmatprep.subr.mxu0 0.0
  %339 = vmatpush1.msra.mxu0 0.0
  %340 = vmatprep.subr.mxu0 0.0
  %341 = vmatpush1.msra.mxu0 0.0
  %342 = vmatprep.subr.mxu0 0.0
  %343 = vmatpush1.msra.mxu0 0.0
  %344 = vmatprep.subr.mxu0 0.0
  %345 = vmatpush1.msra.mxu0 0.0
  %346 = vmatprep.subr.mxu0 0.0
  %347 = vmatpush1.msra.mxu0 0.0
  %348 = vmatprep.subr.mxu0 0.0
  %349 = vmatpush1.msra.mxu0 0.0
  %350 = vmatprep.subr.mxu0 0.0
  %351 = vmatpush1.msra.mxu0 0.0
  %352 = vmatprep.subr.mxu0 0.0
  %353 = vmatpush1.msra.mxu0 0.0
  %354 = vmatprep.subr.mxu0 0.0
  %355 = vmatpush1.msra.mxu0 0.0
  %356 = vmatprep.subr.mxu0 0.0
  %357 = vmatpush1.msra.mxu0 0.0
  %358 = vmatprep.subr.mxu0 0.0
  %359 = vmatpush1.msra.mxu0 %v330
  %360 = vmatprep.subr.mxu0 0.0
  %361 = vmatpush1.msra.mxu0 %v317
  %362 = vmatprep.subr.mxu0 0.0
  %363 = vmatpush1.msra.mxu0 %v312
  %364 = vmatprep.subr.mxu0 0.0
  %365 = vmatpush2.msra.mxu0 0.0
  %366 = vmatprep.subr.mxu0 0.0
  %367 = vmatpush2.msra.mxu0 0.0
  %368 = vmatprep.subr.mxu0 0.0
  %369 = vmatpush2.msra.mxu0 0.0
  %370 = vmatprep.subr.mxu0 0.0
  %371 = vmatpush2.msra.mxu0 0.0
  %372 = vmatprep.subr.mxu0 0.0
  %373 = vmatpush2.msra.mxu0 0.0
  %374 = vmatprep.subr.mxu0 0.0
  %375 = vmatpush2.msra.mxu0 0.0
  %376 = vmatprep.subr.mxu0 0.0
  %377 = vmatpush2.msra.mxu0 0.0
  %378 = vmatprep.subr.mxu0 0.0
  %379 = vmatpush2.msra.mxu0 0.0
  %380 = vmatprep.subr.mxu0 0.0
  %381 = vmatpush2.msra.mxu0 0.0
  %382 = vmatprep.subr.mxu0 0.0
  %383 = vmatpush2.msra.mxu0 0.0
  %384 = vmatprep.subr.mxu0 0.0
  %385 = vmatpush2.msra.mxu0 0.0
  %386 = vmatprep.subr.mxu0 0.0
  %387 = vmatpush2.msra.mxu0 0.0
  %388 = vmatprep.subr.mxu0 0.0
  %389 = vmatpush2.msra.mxu0 0.0
  %390 = vmatprep.subr.mxu0 0.0
  %391 = vmatpush2.msra.mxu0 0.0
  %392 = vmatprep.subr.mxu0 0.0
  %393 = vmatpush2.msra.mxu0 0.0
  %394 = vmatprep.subr.mxu0 0.0
  %395 = vmatpush2.msra.mxu0 0.0
  %396 = vmatprep.mubr.f32.mxu0 0.0
  %397 = vmatmul.mubr.f32.gmra.mxu0 %v142
  %v398 = vpop.f32.mrf.mxu0
  %v399 = vadd.f32 %v328, %v398
  %v400 = vpop.f32.mrf.mxu0
  %401 = vmatprep.mubr.f32.mxu0 0.0
  %402 = vmatmul.mubr.f32.gmra.mxu0 %v144
  %v403 = vpop.f32.mrf.mxu0
  %v404 = vadd.f32 %v328, %v403
  %v405 = vpop.f32.mrf.mxu0
  %406 = vmatprep.mubr.f32.mxu0 0.0
  %407 = vmatmul.mubr.f32.gmra.mxu0 %v146
  %v408 = vpop.f32.mrf.mxu0
  %v409 = vadd.f32 %v328, %v408
  %v410 = vpop.f32.mrf.mxu0
  %411 = vdwg.mxu0
  %v412 = vtanh.pop %v399
  %v413 = vtanh.pop %v404
  %v414 = vtanh.pop %v409
  %v416 = vsel %vm235, %v412, 0
  %v419 = vsel %vm235, %v413, 0
  %v422 = vsel %vm235, %v414, 0
  %424 = vmatprep.subr.mxu0 0.0
  %425 = vmatpush1.msra.mxu0 0.0
  %426 = vmatprep.subr.mxu0 0.0
  %427 = vmatpush1.msra.mxu0 0.0
  %428 = vmatprep.subr.mxu0 0.0
  %429 = vmatpush1.msra.mxu0 0.0
  %430 = vmatprep.subr.mxu0 0.0
  %431 = vmatpush1.msra.mxu0 0.0
  %432 = vmatprep.subr.mxu0 0.0
  %433 = vmatpush1.msra.mxu0 0.0
  %434 = vmatprep.subr.mxu0 0.0
  %435 = vmatpush1.msra.mxu0 0.0
  %436 = vmatprep.subr.mxu0 0.0
  %437 = vmatpush1.msra.mxu0 0.0
  %438 = vmatprep.subr.mxu0 0.0
  %439 = vmatpush1.msra.mxu0 0.0
  %440 = vmatprep.subr.mxu0 0.0
  %441 = vmatpush1.msra.mxu0 0.0
  %442 = vmatprep.subr.mxu0 0.0
  %443 = vmatpush1.msra.mxu0 0.0
  %444 = vmatprep.subr.mxu0 0.0
  %445 = vmatpush1.msra.mxu0 0.0
  %446 = vmatprep.subr.mxu0 0.0
  %447 = vmatpush1.msra.mxu0 0.0
  %448 = vmatprep.subr.mxu0 0.0
  %449 = vmatpush1.msra.mxu0 0.0
  %450 = vmatprep.subr.mxu0 0.0
  %451 = vmatpush1.msra.mxu0 0.0
  %452 = vmatprep.subr.mxu0 0.0
  %453 = vmatpush1.msra.mxu0 0.0
  %454 = vmatprep.subr.mxu0 0.0
  %455 = vmatpush1.msra.mxu0 %v33
  %456 = vmatprep.subr.mxu0 0.0
  %457 = vmatpush2.msra.mxu0 0.0
  %458 = vmatprep.subr.mxu0 0.0
  %459 = vmatpush2.msra.mxu0 0.0
  %460 = vmatprep.subr.mxu0 0.0
  %461 = vmatpush2.msra.mxu0 0.0
  %462 = vmatprep.subr.mxu0 0.0
  %463 = vmatpush2.msra.mxu0 0.0
  %464 = vmatprep.subr.mxu0 0.0
  %465 = vmatpush2.msra.mxu0 0.0
  %466 = vmatprep.subr.mxu0 0.0
  %467 = vmatpush2.msra.mxu0 0.0
  %468 = vmatprep.subr.mxu0 0.0
  %469 = vmatpush2.msra.mxu0 0.0
  %470 = vmatprep.subr.mxu0 0.0
  %471 = vmatpush2.msra.mxu0 0.0
  %472 = vmatprep.subr.mxu0 0.0
  %473 = vmatpush2.msra.mxu0 0.0
  %474 = vmatprep.subr.mxu0 0.0
  %475 = vmatpush2.msra.mxu0 0.0
  %476 = vmatprep.subr.mxu0 0.0
  %477 = vmatpush2.msra.mxu0 0.0
  %478 = vmatprep.subr.mxu0 0.0
  %479 = vmatpush2.msra.mxu0 0.0
  %480 = vmatprep.subr.mxu0 0.0
  %481 = vmatpush2.msra.mxu0 0.0
  %482 = vmatprep.subr.mxu0 0.0
  %483 = vmatpush2.msra.mxu0 0.0
  %484 = vmatprep.subr.mxu0 0.0
  %485 = vmatpush2.msra.mxu0 0.0
  %486 = vmatprep.subr.mxu0 0.0
  %487 = vmatpush2.msra.mxu0 0.0
  %488 = vmatprep.mubr.f32.mxu0 0.0
  %489 = vmatmul.mubr.f32.gmra.mxu0 %v416
  %v490 = vpop.f32.mrf.mxu0
  %v491 = vadd.f32 0.0, %v490
  %v492 = vpop.f32.mrf.mxu0
  %493 = vmatprep.mubr.f32.mxu0 0.0
  %494 = vmatmul.mubr.f32.gmra.mxu0 %v419
  %v495 = vpop.f32.mrf.mxu0
  %v496 = vadd.f32 0.0, %v495
  %v497 = vpop.f32.mrf.mxu0
  %498 = vmatprep.mubr.f32.mxu0 0.0
  %499 = vmatmul.mubr.f32.gmra.mxu0 %v422
  %v500 = vpop.f32.mrf.mxu0
  %v501 = vadd.f32 0.0, %v500
  %v502 = vpop.f32.mrf.mxu0
  %503 = vdwg.mxu0
  %v504 = vlaneseq
  %v505 = vshrl.u32 %v504, 7
  %v506 = vsub.s32 0, %v505
  %v507 = vrot.slane %v34, %v506
  %v509 = vsel %vm148, %v501, 0
  %511 = vmatprep.subr.mxu0 0.0
  %512 = vmatpush1.msra.mxu0 0.0
  %513 = vmatprep.subr.mxu0 0.0
  %514 = vmatpush1.msra.mxu0 0.0
  %515 = vmatprep.subr.mxu0 0.0
  %516 = vmatpush1.msra.mxu0 0.0
  %517 = vmatprep.subr.mxu0 0.0
  %518 = vmatpush1.msra.mxu0 0.0
  %519 = vmatprep.subr.mxu0 0.0
  %520 = vmatpush1.msra.mxu0 0.0
  %521 = vmatprep.subr.mxu0 0.0
  %522 = vmatpush1.msra.mxu0 0.0
  %523 = vmatprep.subr.mxu0 0.0
  %524 = vmatpush1.msra.mxu0 0.0
  %525 = vmatprep.subr.mxu0 0.0
  %526 = vmatpush1.msra.mxu0 0.0
  %527 = vmatprep.subr.mxu0 0.0
  %528 = vmatpush1.msra.mxu0 0.0
  %529 = vmatprep.subr.mxu0 0.0
  %530 = vmatpush1.msra.mxu0 0.0
  %531 = vmatprep.subr.mxu0 0.0
  %532 = vmatpush1.msra.mxu0 0.0
  %533 = vmatprep.subr.mxu0 0.0
  %534 = vmatpush1.msra.mxu0 0.0
  %535 = vmatprep.subr.mxu0 0.0
  %536 = vmatpush1.msra.mxu0 0.0
  %537 = vmatprep.subr.mxu0 0.0
  %538 = vmatpush1.msra.mxu0 %v509
  %539 = vmatprep.subr.mxu0 0.0
  %540 = vmatpush1.msra.mxu0 %v496
  %541 = vmatprep.subr.mxu0 0.0
  %542 = vmatpush1.msra.mxu0 %v491
  %543 = vmatprep.subr.mxu0 0.0
  %544 = vmatpush2.msra.mxu0 0.0
  %545 = vmatprep.subr.mxu0 0.0
  %546 = vmatpush2.msra.mxu0 0.0
  %547 = vmatprep.subr.mxu0 0.0
  %548 = vmatpush2.msra.mxu0 0.0
  %549 = vmatprep.subr.mxu0 0.0
  %550 = vmatpush2.msra.mxu0 0.0
  %551 = vmatprep.subr.mxu0 0.0
  %552 = vmatpush2.msra.mxu0 0.0
  %553 = vmatprep.subr.mxu0 0.0
  %554 = vmatpush2.msra.mxu0 0.0
  %555 = vmatprep.subr.mxu0 0.0
  %556 = vmatpush2.msra.mxu0 0.0
  %557 = vmatprep.subr.mxu0 0.0
  %558 = vmatpush2.msra.mxu0 0.0
  %559 = vmatprep.subr.mxu0 0.0
  %560 = vmatpush2.msra.mxu0 0.0
  %561 = vmatprep.subr.mxu0 0.0
  %562 = vmatpush2.msra.mxu0 0.0
  %563 = vmatprep.subr.mxu0 0.0
  %564 = vmatpush2.msra.mxu0 0.0
  %565 = vmatprep.subr.mxu0 0.0
  %566 = vmatpush2.msra.mxu0 0.0
  %567 = vmatprep.subr.mxu0 0.0
  %568 = vmatpush2.msra.mxu0 0.0
  %569 = vmatprep.subr.mxu0 0.0
  %570 = vmatpush2.msra.mxu0 0.0
  %571 = vmatprep.subr.mxu0 0.0
  %572 = vmatpush2.msra.mxu0 0.0
  %573 = vmatprep.subr.mxu0 0.0
  %574 = vmatpush2.msra.mxu0 0.0
  %575 = vmatprep.mubr.f32.mxu0 0.0
  %576 = vmatmul.mubr.f32.gmra.mxu0 %v142
  %v577 = vpop.f32.mrf.mxu0
  %v578 = vadd.f32 %v507, %v577
  %v579 = vpop.f32.mrf.mxu0
  %580 = vmatprep.mubr.f32.mxu0 0.0
  %581 = vmatmul.mubr.f32.gmra.mxu0 %v144
  %v582 = vpop.f32.mrf.mxu0
  %v583 = vadd.f32 %v507, %v582
  %v584 = vpop.f32.mrf.mxu0
  %585 = vmatprep.mubr.f32.mxu0 0.0
  %586 = vmatmul.mubr.f32.gmra.mxu0 %v146
  %v587 = vpop.f32.mrf.mxu0
  %v588 = vadd.f32 %v507, %v587
  %v589 = vpop.f32.mrf.mxu0
  %590 = vdwg.mxu0
  %v591 = vtanh.pop %v578
  %v592 = vtanh.pop %v583
  %v593 = vtanh.pop %v588
  %v595 = vsel %vm235, %v591, 0
  %v598 = vsel %vm235, %v592, 0
  %v601 = vsel %vm235, %v593, 0
  %603 = vmatprep.subr.mxu0 0.0
  %604 = vmatpush1.msra.mxu0 0.0
  %605 = vmatprep.subr.mxu0 0.0
  %606 = vmatpush1.msra.mxu0 0.0
  %607 = vmatprep.subr.mxu0 0.0
  %608 = vmatpush1.msra.mxu0 0.0
  %609 = vmatprep.subr.mxu0 0.0
  %610 = vmatpush1.msra.mxu0 0.0
  %611 = vmatprep.subr.mxu0 0.0
  %612 = vmatpush1.msra.mxu0 0.0
  %613 = vmatprep.subr.mxu0 0.0
  %614 = vmatpush1.msra.mxu0 0.0
  %615 = vmatprep.subr.mxu0 0.0
  %616 = vmatpush1.msra.mxu0 0.0
  %617 = vmatprep.subr.mxu0 0.0
  %618 = vmatpush1.msra.mxu0 0.0
  %619 = vmatprep.subr.mxu0 0.0
  %620 = vmatpush1.msra.mxu0 0.0
  %621 = vmatprep.subr.mxu0 0.0
  %622 = vmatpush1.msra.mxu0 0.0
  %623 = vmatprep.subr.mxu0 0.0
  %624 = vmatpush1.msra.mxu0 0.0
  %625 = vmatprep.subr.mxu0 0.0
  %626 = vmatpush1.msra.mxu0 0.0
  %627 = vmatprep.subr.mxu0 0.0
  %628 = vmatpush1.msra.mxu0 0.0
  %629 = vmatprep.subr.mxu0 0.0
  %630 = vmatpush1.msra.mxu0 0.0
  %631 = vmatprep.subr.mxu0 0.0
  %632 = vmatpush1.msra.mxu0 0.0
  %633 = vmatprep.subr.mxu0 0.0
  %634 = vmatpush1.msra.mxu0 %v35
  %635 = vmatprep.subr.mxu0 0.0
  %636 = vmatpush2.msra.mxu0 0.0
  %637 = vmatprep.subr.mxu0 0.0
  %638 = vmatpush2.msra.mxu0 0.0
  %639 = vmatprep.subr.mxu0 0.0
  %640 = vmatpush2.msra.mxu0 0.0
  %641 = vmatprep.subr.mxu0 0.0
  %642 = vmatpush2.msra.mxu0 0.0
  %643 = vmatprep.subr.mxu0 0.0
  %644 = vmatpush2.msra.mxu0 0.0
  %645 = vmatprep.subr.mxu0 0.0
  %646 = vmatpush2.msra.mxu0 0.0
  %647 = vmatprep.subr.mxu0 0.0
  %648 = vmatpush2.msra.mxu0 0.0
  %649 = vmatprep.subr.mxu0 0.0
  %650 = vmatpush2.msra.mxu0 0.0
  %651 = vmatprep.subr.mxu0 0.0
  %652 = vmatpush2.msra.mxu0 0.0
  %653 = vmatprep.subr.mxu0 0.0
  %654 = vmatpush2.msra.mxu0 0.0
  %655 = vmatprep.subr.mxu0 0.0
  %656 = vmatpush2.msra.mxu0 0.0
  %657 = vmatprep.subr.mxu0 0.0
  %658 = vmatpush2.msra.mxu0 0.0
  %659 = vmatprep.subr.mxu0 0.0
  %660 = vmatpush2.msra.mxu0 0.0
  %661 = vmatprep.subr.mxu0 0.0
  %662 = vmatpush2.msra.mxu0 0.0
  %663 = vmatprep.subr.mxu0 0.0
  %664 = vmatpush2.msra.mxu0 0.0
  %665 = vmatprep.subr.mxu0 0.0
  %666 = vmatpush2.msra.mxu0 0.0
  %667 = vmatprep.mubr.f32.mxu0 0.0
  %668 = vmatmul.mubr.f32.gmra.mxu0 %v595
  %v669 = vpop.f32.mrf.mxu0
  %v670 = vadd.f32 0.0, %v669
  %v671 = vpop.f32.mrf.mxu0
  %672 = vmatprep.mubr.f32.mxu0 0.0
  %673 = vmatmul.mubr.f32.gmra.mxu0 %v598
  %v674 = vpop.f32.mrf.mxu0
  %v675 = vadd.f32 0.0, %v674
  %v676 = vpop.f32.mrf.mxu0
  %677 = vmatprep.mubr.f32.mxu0 0.0
  %678 = vmatmul.mubr.f32.gmra.mxu0 %v601
  %v679 = vpop.f32.mrf.mxu0
  %v680 = vadd.f32 0.0, %v679
  %v681 = vpop.f32.mrf.mxu0
  %682 = vdwg.mxu0
  %v683 = vlaneseq
  %v684 = vshrl.u32 %v683, 7
  %v685 = vsub.s32 0, %v684
  %v686 = vrot.slane %v36, %v685
  %v688 = vsel %vm148, %v680, 0
  %690 = vmatprep.subr.mxu0 0.0
  %691 = vmatpush1.msra.mxu0 0.0
  %692 = vmatprep.subr.mxu0 0.0
  %693 = vmatpush1.msra.mxu0 0.0
  %694 = vmatprep.subr.mxu0 0.0
  %695 = vmatpush1.msra.mxu0 0.0
  %696 = vmatprep.subr.mxu0 0.0
  %697 = vmatpush1.msra.mxu0 0.0
  %698 = vmatprep.subr.mxu0 0.0
  %699 = vmatpush1.msra.mxu0 0.0
  %700 = vmatprep.subr.mxu0 0.0
  %701 = vmatpush1.msra.mxu0 0.0
  %702 = vmatprep.subr.mxu0 0.0
  %703 = vmatpush1.msra.mxu0 0.0
  %704 = vmatprep.subr.mxu0 0.0
  %705 = vmatpush1.msra.mxu0 0.0
  %706 = vmatprep.subr.mxu0 0.0
  %707 = vmatpush1.msra.mxu0 0.0
  %708 = vmatprep.subr.mxu0 0.0
  %709 = vmatpush1.msra.mxu0 0.0
  %710 = vmatprep.subr.mxu0 0.0
  %711 = vmatpush1.msra.mxu0 0.0
  %712 = vmatprep.subr.mxu0 0.0
  %713 = vmatpush1.msra.mxu0 0.0
  %714 = vmatprep.subr.mxu0 0.0
  %715 = vmatpush1.msra.mxu0 0.0
  %716 = vmatprep.subr.mxu0 0.0
  %717 = vmatpush1.msra.mxu0 %v688
  %718 = vmatprep.subr.mxu0 0.0
  %719 = vmatpush1.msra.mxu0 %v675
  %720 = vmatprep.subr.mxu0 0.0
  %721 = vmatpush1.msra.mxu0 %v670
  %722 = vmatprep.subr.mxu0 0.0
  %723 = vmatpush2.msra.mxu0 0.0
  %724 = vmatprep.subr.mxu0 0.0
  %725 = vmatpush2.msra.mxu0 0.0
  %726 = vmatprep.subr.mxu0 0.0
  %727 = vmatpush2.msra.mxu0 0.0
  %728 = vmatprep.subr.mxu0 0.0
  %729 = vmatpush2.msra.mxu0 0.0
  %730 = vmatprep.subr.mxu0 0.0
  %731 = vmatpush2.msra.mxu0 0.0
  %732 = vmatprep.subr.mxu0 0.0
  %733 = vmatpush2.msra.mxu0 0.0
  %734 = vmatprep.subr.mxu0 0.0
  %735 = vmatpush2.msra.mxu0 0.0
  %736 = vmatprep.subr.mxu0 0.0
  %737 = vmatpush2.msra.mxu0 0.0
  %738 = vmatprep.subr.mxu0 0.0
  %739 = vmatpush2.msra.mxu0 0.0
  %740 = vmatprep.subr.mxu0 0.0
  %741 = vmatpush2.msra.mxu0 0.0
  %742 = vmatprep.subr.mxu0 0.0
  %743 = vmatpush2.msra.mxu0 0.0
  %744 = vmatprep.subr.mxu0 0.0
  %745 = vmatpush2.msra.mxu0 0.0
  %746 = vmatprep.subr.mxu0 0.0
  %747 = vmatpush2.msra.mxu0 0.0
  %748 = vmatprep.subr.mxu0 0.0
  %749 = vmatpush2.msra.mxu0 0.0
  %750 = vmatprep.subr.mxu0 0.0
  %751 = vmatpush2.msra.mxu0 0.0
  %752 = vmatprep.subr.mxu0 0.0
  %753 = vmatpush2.msra.mxu0 0.0
  %754 = vmatprep.mubr.f32.mxu0 0.0
  %755 = vmatmul.mubr.f32.gmra.mxu0 %v142
  %v756 = vpop.f32.mrf.mxu0
  %v757 = vadd.f32 %v686, %v756
  %v758 = vpop.f32.mrf.mxu0
  %759 = vmatprep.mubr.f32.mxu0 0.0
  %760 = vmatmul.mubr.f32.gmra.mxu0 %v144
  %v761 = vpop.f32.mrf.mxu0
  %v762 = vadd.f32 %v686, %v761
  %v763 = vpop.f32.mrf.mxu0
  %764 = vmatprep.mubr.f32.mxu0 0.0
  %765 = vmatmul.mubr.f32.gmra.mxu0 %v146
  %v766 = vpop.f32.mrf.mxu0
  %v767 = vadd.f32 %v686, %v766
  %v768 = vpop.f32.mrf.mxu0
  %769 = vdwg.mxu0
  %v770 = vtanh.pop %v757
  %v771 = vtanh.pop %v762
  %v772 = vtanh.pop %v767
  %773 = vrot.lane.b32.xlu0 %v412, 8
  %v774 = vpop.permute.xlu0 %773
  %775 = vrot.lane.b32.xlu0 %v413, 8
  %v776 = vpop.permute.xlu0 %775
  %777 = vrot.lane.b32.xlu0 %v414, 8
  %v778 = vpop.permute.xlu0 %777
  %782 = vrot.lane.b32.xlu0 %v591, 16
  %v783 = vpop.permute.xlu0 %782
  %784 = vrot.lane.b32.xlu0 %v592, 16
  %v785 = vpop.permute.xlu0 %784
  %786 = vrot.lane.b32.xlu0 %v593, 16
  %v787 = vpop.permute.xlu0 %786
  %794 = vrot.lane.b32.xlu0 %v770, 24
  %v795 = vpop.permute.xlu0 %794
  %796 = vrot.lane.b32.xlu0 %v771, 24
  %v797 = vpop.permute.xlu0 %796
  %798 = vrot.lane.b32.xlu0 %v772, 24
  %v799 = vpop.permute.xlu0 %798
  %v803 = vsel %vm235, %v232, %v774
  %v804 = vsel %vm235, %v233, %v776
  %v805 = vsel %vm235, %v234, %v778
  %vm806 = vcmask 130048
  %v807 = vsel %vm806, %v803, %v783
  %v808 = vsel %vm806, %v804, %v785
  %v809 = vsel %vm806, %v805, %v787
  %vm810 = vcmask 195584
  %v811 = vsel %vm810, %v807, %v795
  %v812 = vsel %vm810, %v808, %v797
  %v813 = vsel %vm810, %v809, %v799
  %814 = vrot.lane.b32.xlu0 %v26, 101
  %v815 = vpop.permute.xlu0 %814
  %816 = vrot.lane.b32.xlu0 %v27, 101
  %v817 = vpop.permute.xlu0 %816
  %818 = vrot.lane.b32.xlu0 %v28, 101
  %v819 = vpop.permute.xlu0 %818
  %823 = vxpose.xlu0.b32.start [1/16] %v815, 128
  %824 = vxpose.xlu0.b32.cont [2/16] %v817, 128
  %825 = vxpose.xlu0.b32.cont [3/16] %v819, 128
  %826 = vxpose.xlu0.b32.cont [4/16] 0.0, 128
  %827 = vxpose.xlu0.b32.cont [5/16] 0.0, 128
  %828 = vxpose.xlu0.b32.cont [6/16] 0.0, 128
  %829 = vxpose.xlu0.b32.cont [7/16] 0.0, 128
  %830 = vxpose.xlu0.b32.cont [8/16] 0.0, 128
  %831 = vxpose.xlu0.b32.cont [9/16] 0.0, 128
  %832 = vxpose.xlu0.b32.cont [10/16] 0.0, 128
  %833 = vxpose.xlu0.b32.cont [11/16] 0.0, 128
  %834 = vxpose.xlu0.b32.cont [12/16] 0.0, 128
  %835 = vxpose.xlu0.b32.cont [13/16] 0.0, 128
  %836 = vxpose.xlu0.b32.cont [14/16] 0.0, 128
  %837 = vxpose.xlu0.b32.cont [15/16] 0.0, 128
  %838 = vxpose.xlu0.b32.end [16/16] 0.0, 128
  %v839 = vpop.trf.xlu0
  %v840 = vpop.trf.xlu0
  %v841 = vpop.trf.xlu0
  %v842 = vpop.trf.xlu0
  %v843 = vpop.trf.xlu0
  %v844 = vpop.trf.xlu0
  %v845 = vpop.trf.xlu0
  %v846 = vpop.trf.xlu0
  %v847 = vpop.trf.xlu0
  %v848 = vpop.trf.xlu0
  %v849 = vpop.trf.xlu0
  %v850 = vpop.trf.xlu0
  %v851 = vpop.trf.xlu0
  %v852 = vpop.trf.xlu0
  %v853 = vpop.trf.xlu0
  %v854 = vpop.trf.xlu0
  %855 = vxpose.xlu0.b32.start [1/16] %v770, 128
  %856 = vxpose.xlu0.b32.cont [2/16] %v771, 128
  %857 = vxpose.xlu0.b32.cont [3/16] %v772, 128
  %858 = vxpose.xlu0.b32.cont [4/16] 0.0, 128
  %859 = vxpose.xlu0.b32.cont [5/16] 0.0, 128
  %860 = vxpose.xlu0.b32.cont [6/16] 0.0, 128
  %861 = vxpose.xlu0.b32.cont [7/16] 0.0, 128
  %862 = vxpose.xlu0.b32.cont [8/16] 0.0, 128
  %863 = vxpose.xlu0.b32.cont [9/16] 0.0, 128
  %864 = vxpose.xlu0.b32.cont [10/16] 0.0, 128
  %865 = vxpose.xlu0.b32.cont [11/16] 0.0, 128
  %866 = vxpose.xlu0.b32.cont [12/16] 0.0, 128
  %867 = vxpose.xlu0.b32.cont [13/16] 0.0, 128
  %868 = vxpose.xlu0.b32.cont [14/16] 0.0, 128
  %869 = vxpose.xlu0.b32.cont [15/16] 0.0, 128
  %870 = vxpose.xlu0.b32.end [16/16] 0.0, 128
  %v871 = vpop.trf.xlu0
  %v872 = vpop.trf.xlu0
  %v873 = vpop.trf.xlu0
  %v874 = vpop.trf.xlu0
  %v875 = vpop.trf.xlu0
  %v876 = vpop.trf.xlu0
  %v877 = vpop.trf.xlu0
  %v878 = vpop.trf.xlu0
  %v879 = vpop.trf.xlu0
  %v880 = vpop.trf.xlu0
  %v881 = vpop.trf.xlu0
  %v882 = vpop.trf.xlu0
  %v883 = vpop.trf.xlu0
  %v884 = vpop.trf.xlu0
  %v885 = vpop.trf.xlu0
  %v886 = vpop.trf.xlu0
  %887 = vset.pattern.permute.xlu0 27
  %888 = vperm.xlu0 %887, %v26
  %v889 = vpop.permute.xlu0 %888
  %891 = vset.pattern.permute.xlu0 27
  %892 = vperm.xlu0 %891, %v27
  %v893 = vpop.permute.xlu0 %892
  %895 = vset.pattern.permute.xlu0 27
  %896 = vperm.xlu0 %895, %v28
  %v897 = vpop.permute.xlu0 %896
  %v899 = vlaneseq
  %v900 = vshrl.u32 %v899, 7
  %v901 = vsub.s32 0, %v900
  %v902 = vrot.slane %v839, %v901
  %vm903 = vcmp.eq.f32.partialorder %v889, %v902
  %vm904 = vcmp.eq.f32.partialorder %v893, %v902
  %vm905 = vcmp.eq.f32.partialorder %v897, %v902
  %v906 = vlaneseq
  %v907 = vshrl.u32 %v906, 7
  %v908 = vadd.s32 %v907, 8
  %v909 = vadd.s32 %v907, 16
  %v910 = vlaneseq
  %v911 = vand.u32 %v910, 127
  %912 = vset.pattern.permute.xlu0 0
  %913 = vperm.xlu0 %912, %v770
  %v914 = vpop.permute.xlu0 %913
  %916 = vset.pattern.permute.xlu0 0
  %917 = vperm.xlu0 %916, %v771
  %v918 = vpop.permute.xlu0 %917
  %920 = vset.pattern.permute.xlu0 0
  %921 = vperm.xlu0 %920, %v772
  %v922 = vpop.permute.xlu0 %921
  %v924 = vlaneseq
  %v925 = vshrl.u32 %v924, 7
  %v926 = vsub.s32 0, %v925
  %v927 = vrot.slane %v871, %v926
  %vm928 = vcmp.gt.f32.partialorder %v914, %v927
  %vm929 = vcmp.gt.f32.partialorder %v918, %v927
  %vm930 = vcmp.gt.f32.partialorder %v922, %v927
  %vm931 = vcmp.eq.f32.partialorder %v914, %v927
  %vm932 = vcmp.eq.f32.partialorder %v918, %v927
  %vm933 = vcmp.eq.f32.partialorder %v922, %v927
  %vm934 = vcmp.lt.s32.totalorder %v907, %v911
  %vm935 = vcmp.lt.s32.totalorder %v908, %v911
  %vm936 = vcmp.lt.s32.totalorder %v909, %v911
  %vm937 = vmand %vm931, %vm934
  %vm938 = vmand %vm932, %vm935
  %vm939 = vmand %vm933, %vm936
  %vm940 = vmor %vm928, %vm937
  %vm941 = vmor %vm929, %vm938
  %vm942 = vmor %vm930, %vm939
  %vm943 = vmand %vm903, %vm940
  %vm944 = vmand %vm904, %vm941
  %vm945 = vmand %vm905, %vm942
  %v946 = vsel %vm943, 1.0, 0.0
  %v947 = vsel %vm944, 1.0, 0.0
  %v948 = vsel %vm945, 1.0, 0.0
  %v950 = vsel %vm141, 1.0, 0
  %v953 = vsel %vm148, %v948, 0
  %955 = vmatprep.subr.mxu0 0.0
  %956 = vmatpush1.msra.mxu0 0.0
  %957 = vmatprep.subr.mxu0 0.0
  %958 = vmatpush1.msra.mxu0 0.0
  %959 = vmatprep.subr.mxu0 0.0
  %960 = vmatpush1.msra.mxu0 0.0
  %961 = vmatprep.subr.mxu0 0.0
  %962 = vmatpush1.msra.mxu0 0.0
  %963 = vmatprep.subr.mxu0 0.0
  %964 = vmatpush1.msra.mxu0 0.0
  %965 = vmatprep.subr.mxu0 0.0
  %966 = vmatpush1.msra.mxu0 0.0
  %967 = vmatprep.subr.mxu0 0.0
  %968 = vmatpush1.msra.mxu0 0.0
  %969 = vmatprep.subr.mxu0 0.0
  %970 = vmatpush1.msra.mxu0 0.0
  %971 = vmatprep.subr.mxu0 0.0
  %972 = vmatpush1.msra.mxu0 0.0
  %973 = vmatprep.subr.mxu0 0.0
  %974 = vmatpush1.msra.mxu0 0.0
  %975 = vmatprep.subr.mxu0 0.0
  %976 = vmatpush1.msra.mxu0 0.0
  %977 = vmatprep.subr.mxu0 0.0
  %978 = vmatpush1.msra.mxu0 0.0
  %979 = vmatprep.subr.mxu0 0.0
  %980 = vmatpush1.msra.mxu0 0.0
  %981 = vmatprep.subr.mxu0 0.0
  %982 = vmatpush1.msra.mxu0 %v953
  %983 = vmatprep.subr.mxu0 0.0
  %984 = vmatpush1.msra.mxu0 %v947
  %985 = vmatprep.subr.mxu0 0.0
  %986 = vmatpush1.msra.mxu0 %v946
  %987 = vmatprep.subr.mxu0 0.0
  %988 = vmatpush2.msra.mxu0 0.0
  %989 = vmatprep.subr.mxu0 0.0
  %990 = vmatpush2.msra.mxu0 0.0
  %991 = vmatprep.subr.mxu0 0.0
  %992 = vmatpush2.msra.mxu0 0.0
  %993 = vmatprep.subr.mxu0 0.0
  %994 = vmatpush2.msra.mxu0 0.0
  %995 = vmatprep.subr.mxu0 0.0
  %996 = vmatpush2.msra.mxu0 0.0
  %997 = vmatprep.subr.mxu0 0.0
  %998 = vmatpush2.msra.mxu0 0.0
  %999 = vmatprep.subr.mxu0 0.0
  %1000 = vmatpush2.msra.mxu0 0.0
  %1001 = vmatprep.subr.mxu0 0.0
  %1002 = vmatpush2.msra.mxu0 0.0
  %1003 = vmatprep.subr.mxu0 0.0
  %1004 = vmatpush2.msra.mxu0 0.0
  %1005 = vmatprep.subr.mxu0 0.0
  %1006 = vmatpush2.msra.mxu0 0.0
  %1007 = vmatprep.subr.mxu0 0.0
  %1008 = vmatpush2.msra.mxu0 0.0
  %1009 = vmatprep.subr.mxu0 0.0
  %1010 = vmatpush2.msra.mxu0 0.0
  %1011 = vmatprep.subr.mxu0 0.0
  %1012 = vmatpush2.msra.mxu0 0.0
  %1013 = vmatprep.subr.mxu0 0.0
  %1014 = vmatpush2.msra.mxu0 0.0
  %1015 = vmatprep.subr.mxu0 0.0
  %1016 = vmatpush2.msra.mxu0 0.0
  %1017 = vmatprep.subr.mxu0 0.0
  %1018 = vmatpush2.msra.mxu0 0.0
  %1019 = vmatprep.mubr.f32.mxu0 0.0
  %1020 = vmatmul.mubr.f32.gmra.mxu0 %v950
  %v1021 = vpop.f32.mrf.mxu0
  %v1022 = vadd.f32 0.0, %v1021
  %v1023 = vpop.f32.mrf.mxu0
  %1024 = vdwg.mxu0
  %v1025 = vld [vmem:[%s3] sm:$0xff]
  %v1026 = vld [vmem:[%s3 + $0x8] sm:$0xff]
  %v1027 = vld [vmem:[%s3 + $0x10] sm:$0xff]
  %v1028 = vld [vmem:[%s3 + $0x18] sm:$0xff]
  %v1029 = vld [vmem:[%s3 + $0x20] sm:$0xff]
  %1031 = vset.pattern.permute.xlu0 0
  %1032 = vperm.xlu0 %1031, %v1025
  %v1033 = vpop.permute.xlu0 %1032
  %1036 = vset.pattern.permute.xlu0 0
  %1037 = vperm.xlu0 %1036, %v1026
  %v1038 = vpop.permute.xlu0 %1037
  %1041 = vset.pattern.permute.xlu0 0
  %1042 = vperm.xlu0 %1041, %v1027
  %v1043 = vpop.permute.xlu0 %1042
  %1046 = vset.pattern.permute.xlu0 0
  %1047 = vperm.xlu0 %1046, %v1028
  %v1048 = vpop.permute.xlu0 %1047
  %1051 = vset.pattern.permute.xlu0 0
  %1052 = vperm.xlu0 %1051, %v1029
  %v1053 = vpop.permute.xlu0 %1052
  %vm1055 = vcmp.eq.f32.partialorder %v902, %v1033
  %vm1056 = vcmp.eq.f32.partialorder %v902, %v1038
  %vm1057 = vcmp.eq.f32.partialorder %v902, %v1043
  %vm1058 = vcmp.eq.f32.partialorder %v902, %v1048
  %vm1059 = vcmp.eq.f32.partialorder %v902, %v1053
  %v1060 = vlaneseq
  %v1061 = vshrl.u32 %v1060, 7
  %v1062 = vsub.s32 0, %v1061
  %v1063 = vrot.slane %v1022, %v1062
  %1064 = vset.pattern.permute.xlu0 1
  %1065 = vperm.xlu0 %1064, %v1025
  %v1066 = vpop.permute.xlu0 %1065
  %1068 = vset.pattern.permute.xlu0 1
  %1069 = vperm.xlu0 %1068, %v1026
  %v1070 = vpop.permute.xlu0 %1069
  %1072 = vset.pattern.permute.xlu0 1
  %1073 = vperm.xlu0 %1072, %v1027
  %v1074 = vpop.permute.xlu0 %1073
  %1076 = vset.pattern.permute.xlu0 1
  %1077 = vperm.xlu0 %1076, %v1028
  %v1078 = vpop.permute.xlu0 %1077
  %1080 = vset.pattern.permute.xlu0 1
  %1081 = vperm.xlu0 %1080, %v1029
  %v1082 = vpop.permute.xlu0 %1081
  %vm1084 = vcmp.eq.f32.partialorder %v1063, %v1066
  %vm1085 = vcmp.eq.f32.partialorder %v1063, %v1070
  %vm1086 = vcmp.eq.f32.partialorder %v1063, %v1074
  %vm1087 = vcmp.eq.f32.partialorder %v1063, %v1078
  %vm1088 = vcmp.eq.f32.partialorder %v1063, %v1082
  %vm1089 = vmand %vm1055, %vm1084
  %vm1090 = vmand %vm1056, %vm1085
  %vm1091 = vmand %vm1057, %vm1086
  %vm1092 = vmand %vm1058, %vm1087
  %vm1093 = vmand %vm1059, %vm1088
  %v1094 = vsel %vm1089, 1.0, 0.0
  %v1095 = vsel %vm1090, 1.0, 0.0
  %v1096 = vsel %vm1091, 1.0, 0.0
  %v1097 = vsel %vm1092, 1.0, 0.0
  %v1098 = vsel %vm1093, 1.0, 0.0
  %1099 = vset.pattern.permute.xlu0 2
  %1100 = vperm.xlu0 %1099, %v1025
  %v1101 = vpop.permute.xlu0 %1100
  %1103 = vset.pattern.permute.xlu0 2
  %1104 = vperm.xlu0 %1103, %v1026
  %v1105 = vpop.permute.xlu0 %1104
  %1107 = vset.pattern.permute.xlu0 2
  %1108 = vperm.xlu0 %1107, %v1027
  %v1109 = vpop.permute.xlu0 %1108
  %1111 = vset.pattern.permute.xlu0 2
  %1112 = vperm.xlu0 %1111, %v1028
  %v1113 = vpop.permute.xlu0 %1112
  %1115 = vset.pattern.permute.xlu0 2
  %1116 = vperm.xlu0 %1115, %v1029
  %v1117 = vpop.permute.xlu0 %1116
  %vm1119 = vcmp.eq.f32.partialorder %v1063, %v1101
  %vm1120 = vcmp.eq.f32.partialorder %v1063, %v1105
  %vm1121 = vcmp.eq.f32.partialorder %v1063, %v1109
  %vm1122 = vcmp.eq.f32.partialorder %v1063, %v1113
  %vm1123 = vcmp.eq.f32.partialorder %v1063, %v1117
  %vm1124 = vmand %vm1055, %vm1119
  %vm1125 = vmand %vm1056, %vm1120
  %vm1126 = vmand %vm1057, %vm1121
  %vm1127 = vmand %vm1058, %vm1122
  %vm1128 = vmand %vm1059, %vm1123
  %v1129 = vsel %vm1124, 1.0, 0.0
  %v1130 = vsel %vm1125, 1.0, 0.0
  %v1131 = vsel %vm1126, 1.0, 0.0
  %v1132 = vsel %vm1127, 1.0, 0.0
  %v1133 = vsel %vm1128, 1.0, 0.0
  %v1134 = vld [vmem:[%s6] sm:$0xff]
  %v1135 = vld [vmem:[%s6 + $0x8] sm:$0xff]
  %v1136 = vld [vmem:[%s6 + $0x10] sm:$0xff]
  %v1137 = vld [vmem:[%s6 + $0x18] sm:$0xff]
  %v1138 = vld [vmem:[%s6 + $0x20] sm:$0xff]
  %v1139 = vld [vmem:[%s6 + $0x28] sm:$0xff]
  %v1140 = vld [vmem:[%s6 + $0x30] sm:$0xff]
  %v1141 = vld [vmem:[%s6 + $0x38] sm:$0xff]
  %v1142 = vld [vmem:[%s6 + $0x40] sm:$0xff]
  %v1143 = vld [vmem:[%s6 + $0x48] sm:$0xff]
  %v1144 = vld [vmem:[%s6 + $0x50] sm:$0xff]
  %v1145 = vld [vmem:[%s6 + $0x58] sm:$0xff]
  %v1146 = vld [vmem:[%s6 + $0x60] sm:$0xff]
  %v1147 = vld [vmem:[%s6 + $0x68] sm:$0xff]
  %v1148 = vld [vmem:[%s6 + $0x70] sm:$0xff]
  %v1149 = vld [vmem:[%s6 + $0x78] sm:$0xff]
  %v1150 = vld [vmem:[%s6 + $0x80] sm:$0xff]
  %v1151 = vld [vmem:[%s6 + $0x88] sm:$0xff]
  %v1152 = vld [vmem:[%s6 + $0x90] sm:$0xff]
  %v1153 = vld [vmem:[%s6 + $0x98] sm:$0xff]
  %v1154 = vld [vmem:[%s6 + $0xa0] sm:$0xff]
  %v1155 = vld [vmem:[%s6 + $0xa8] sm:$0xff]
  %v1156 = vld [vmem:[%s6 + $0xb0] sm:$0xff]
  %v1157 = vld [vmem:[%s6 + $0xb8] sm:$0xff]
  %v1158 = vld [vmem:[%s6 + $0xc0] sm:$0xff]
  %v1159 = vld [vmem:[%s6 + $0xc8] sm:$0xff]
  %v1160 = vld [vmem:[%s6 + $0xd0] sm:$0xff]
  %v1161 = vld [vmem:[%s6 + $0xd8] sm:$0xff]
  %v1162 = vld [vmem:[%s6 + $0xe0] sm:$0xff]
  %v1163 = vld [vmem:[%s6 + $0xe8] sm:$0xff]
  %v1164 = vld [vmem:[%s6 + $0xf0] sm:$0xff]
  %v1165 = vld [vmem:[%s6 + $0xf8] sm:$0xff]
  %v1166 = vld [vmem:[%s6 + $0x100] sm:$0xff]
  %v1167 = vld [vmem:[%s6 + $0x108] sm:$0xff]
  %v1168 = vld [vmem:[%s6 + $0x110] sm:$0xff]
  %v1169 = vld [vmem:[%s6 + $0x118] sm:$0xff]
  %v1170 = vld [vmem:[%s6 + $0x120] sm:$0xff]
  %vm1171 = vcmask 261120
  %v1173 = vsel %vm1171, %v811, 0
  %v1176 = vsel %vm1171, %v812, 0
  %v1179 = vsel %vm1171, %v813, 0
  %1181 = vmatprep.subr.mxu0 0.0
  %1182 = vmatpush1.msra.mxu0 0.0
  %1183 = vmatprep.subr.mxu0 0.0
  %1184 = vmatpush1.msra.mxu0 0.0
  %1185 = vmatprep.subr.mxu0 0.0
  %1186 = vmatpush1.msra.mxu0 0.0
  %1187 = vmatprep.subr.mxu0 0.0
  %1188 = vmatpush1.msra.mxu0 0.0
  %1189 = vmatprep.subr.mxu0 0.0
  %1190 = vmatpush1.msra.mxu0 0.0
  %1191 = vmatprep.subr.mxu0 0.0
  %1192 = vmatpush1.msra.mxu0 0.0
  %1193 = vmatprep.subr.mxu0 0.0
  %1194 = vmatpush1.msra.mxu0 0.0
  %1195 = vmatprep.subr.mxu0 0.0
  %1196 = vmatpush1.msra.mxu0 0.0
  %1197 = vmatprep.subr.mxu0 0.0
  %1198 = vmatpush1.msra.mxu0 0.0
  %1199 = vmatprep.subr.mxu0 0.0
  %1200 = vmatpush1.msra.mxu0 0.0
  %1201 = vmatprep.subr.mxu0 0.0
  %1202 = vmatpush1.msra.mxu0 0.0
  %1203 = vmatprep.subr.mxu0 0.0
  %1204 = vmatpush1.msra.mxu0 0.0
  %1205 = vmatprep.subr.mxu0 0.0
  %1206 = vmatpush1.msra.mxu0 %v1137
  %1207 = vmatprep.subr.mxu0 0.0
  %1208 = vmatpush1.msra.mxu0 %v1136
  %1209 = vmatprep.subr.mxu0 0.0
  %1210 = vmatpush1.msra.mxu0 %v1135
  %1211 = vmatprep.subr.mxu0 0.0
  %1212 = vmatpush1.msra.mxu0 %v1134
  %1213 = vmatprep.subr.mxu0 0.0
  %1214 = vmatpush2.msra.mxu0 0.0
  %1215 = vmatprep.subr.mxu0 0.0
  %1216 = vmatpush2.msra.mxu0 0.0
  %1217 = vmatprep.subr.mxu0 0.0
  %1218 = vmatpush2.msra.mxu0 0.0
  %1219 = vmatprep.subr.mxu0 0.0
  %1220 = vmatpush2.msra.mxu0 0.0
  %1221 = vmatprep.subr.mxu0 0.0
  %1222 = vmatpush2.msra.mxu0 0.0
  %1223 = vmatprep.subr.mxu0 0.0
  %1224 = vmatpush2.msra.mxu0 0.0
  %1225 = vmatprep.subr.mxu0 0.0
  %1226 = vmatpush2.msra.mxu0 0.0
  %1227 = vmatprep.subr.mxu0 0.0
  %1228 = vmatpush2.msra.mxu0 0.0
  %1229 = vmatprep.subr.mxu0 0.0
  %1230 = vmatpush2.msra.mxu0 0.0
  %1231 = vmatprep.subr.mxu0 0.0
  %1232 = vmatpush2.msra.mxu0 0.0
  %1233 = vmatprep.subr.mxu0 0.0
  %1234 = vmatpush2.msra.mxu0 0.0
  %1235 = vmatprep.subr.mxu0 0.0
  %1236 = vmatpush2.msra.mxu0 0.0
  %1237 = vmatprep.subr.mxu0 0.0
  %1238 = vmatpush2.msra.mxu0 0.0
  %1239 = vmatprep.subr.mxu0 0.0
  %1240 = vmatpush2.msra.mxu0 0.0
  %1241 = vmatprep.subr.mxu0 0.0
  %1242 = vmatpush2.msra.mxu0 0.0
  %1243 = vmatprep.subr.mxu0 0.0
  %1244 = vmatpush2.msra.mxu0 0.0
  %1245 = vmatprep.mubr.f32.mxu0 0.0
  %1246 = vmatmul.mubr.f32.gmra.mxu0 %v1173
  %v1247 = vpop.f32.mrf.mxu0
  %v1248 = vadd.f32 0.0, %v1247
  %v1249 = vpop.f32.mrf.mxu0
  %1250 = vmatprep.mubr.f32.mxu0 0.0
  %1251 = vmatmul.mubr.f32.gmra.mxu0 %v1176
  %v1252 = vpop.f32.mrf.mxu0
  %v1253 = vadd.f32 0.0, %v1252
  %v1254 = vpop.f32.mrf.mxu0
  %1255 = vmatprep.mubr.f32.mxu0 0.0
  %1256 = vmatmul.mubr.f32.gmra.mxu0 %v1179
  %v1257 = vpop.f32.mrf.mxu0
  %v1258 = vadd.f32 0.0, %v1257
  %v1259 = vpop.f32.mrf.mxu0
  %1260 = vdwg.mxu0
  %v1262 = vsel %vm141, %v1094, 0
  %v1265 = vsel %vm141, %v1095, 0
  %v1268 = vsel %vm141, %v1096, 0
  %v1271 = vsel %vm141, %v1097, 0
  %v1274 = vsel %vm141, %v1098, 0
  %v1277 = vsel %vm148, %v1258, 0
  %1279 = vmatprep.subr.mxu0 0.0
  %1280 = vmatpush1.msra.mxu0 0.0
  %1281 = vmatprep.subr.mxu0 0.0
  %1282 = vmatpush1.msra.mxu0 0.0
  %1283 = vmatprep.subr.mxu0 0.0
  %1284 = vmatpush1.msra.mxu0 0.0
  %1285 = vmatprep.subr.mxu0 0.0
  %1286 = vmatpush1.msra.mxu0 0.0
  %1287 = vmatprep.subr.mxu0 0.0
  %1288 = vmatpush1.msra.mxu0 0.0
  %1289 = vmatprep.subr.mxu0 0.0
  %1290 = vmatpush1.msra.mxu0 0.0
  %1291 = vmatprep.subr.mxu0 0.0
  %1292 = vmatpush1.msra.mxu0 0.0
  %1293 = vmatprep.subr.mxu0 0.0
  %1294 = vmatpush1.msra.mxu0 0.0
  %1295 = vmatprep.subr.mxu0 0.0
  %1296 = vmatpush1.msra.mxu0 0.0
  %1297 = vmatprep.subr.mxu0 0.0
  %1298 = vmatpush1.msra.mxu0 0.0
  %1299 = vmatprep.subr.mxu0 0.0
  %1300 = vmatpush1.msra.mxu0 0.0
  %1301 = vmatprep.subr.mxu0 0.0
  %1302 = vmatpush1.msra.mxu0 0.0
  %1303 = vmatprep.subr.mxu0 0.0
  %1304 = vmatpush1.msra.mxu0 0.0
  %1305 = vmatprep.subr.mxu0 0.0
  %1306 = vmatpush1.msra.mxu0 %v1277
  %1307 = vmatprep.subr.mxu0 0.0
  %1308 = vmatpush1.msra.mxu0 %v1253
  %1309 = vmatprep.subr.mxu0 0.0
  %1310 = vmatpush1.msra.mxu0 %v1248
  %1311 = vmatprep.subr.mxu0 0.0
  %1312 = vmatpush2.msra.mxu0 0.0
  %1313 = vmatprep.subr.mxu0 0.0
  %1314 = vmatpush2.msra.mxu0 0.0
  %1315 = vmatprep.subr.mxu0 0.0
  %1316 = vmatpush2.msra.mxu0 0.0
  %1317 = vmatprep.subr.mxu0 0.0
  %1318 = vmatpush2.msra.mxu0 0.0
  %1319 = vmatprep.subr.mxu0 0.0
  %1320 = vmatpush2.msra.mxu0 0.0
  %1321 = vmatprep.subr.mxu0 0.0
  %1322 = vmatpush2.msra.mxu0 0.0
  %1323 = vmatprep.subr.mxu0 0.0
  %1324 = vmatpush2.msra.mxu0 0.0
  %1325 = vmatprep.subr.mxu0 0.0
  %1326 = vmatpush2.msra.mxu0 0.0
  %1327 = vmatprep.subr.mxu0 0.0
  %1328 = vmatpush2.msra.mxu0 0.0
  %1329 = vmatprep.subr.mxu0 0.0
  %1330 = vmatpush2.msra.mxu0 0.0
  %1331 = vmatprep.subr.mxu0 0.0
  %1332 = vmatpush2.msra.mxu0 0.0
  %1333 = vmatprep.subr.mxu0 0.0
  %1334 = vmatpush2.msra.mxu0 0.0
  %1335 = vmatprep.subr.mxu0 0.0
  %1336 = vmatpush2.msra.mxu0 0.0
  %1337 = vmatprep.subr.mxu0 0.0
  %1338 = vmatpush2.msra.mxu0 0.0
  %1339 = vmatprep.subr.mxu0 0.0
  %1340 = vmatpush2.msra.mxu0 0.0
  %1341 = vmatprep.subr.mxu0 0.0
  %1342 = vmatpush2.msra.mxu0 0.0
  %1343 = vmatprep.mubr.f32.mxu0 0.0
  %1344 = vmatmul.mubr.f32.gmra.mxu0 %v1262
  %v1345 = vpop.f32.mrf.mxu0
  %v1346 = vadd.f32 0.0, %v1345
  %v1347 = vpop.f32.mrf.mxu0
  %1348 = vmatprep.mubr.f32.mxu0 0.0
  %1349 = vmatmul.mubr.f32.gmra.mxu0 %v1265
  %v1350 = vpop.f32.mrf.mxu0
  %v1351 = vadd.f32 0.0, %v1350
  %v1352 = vpop.f32.mrf.mxu0
  %1353 = vmatprep.mubr.f32.mxu0 0.0
  %1354 = vmatmul.mubr.f32.gmra.mxu0 %v1268
  %v1355 = vpop.f32.mrf.mxu0
  %v1356 = vadd.f32 0.0, %v1355
  %v1357 = vpop.f32.mrf.mxu0
  %1358 = vmatprep.mubr.f32.mxu0 0.0
  %1359 = vmatmul.mubr.f32.gmra.mxu0 %v1271
  %v1360 = vpop.f32.mrf.mxu0
  %v1361 = vadd.f32 0.0, %v1360
  %v1362 = vpop.f32.mrf.mxu0
  %1363 = vmatprep.mubr.f32.mxu0 0.0
  %1364 = vmatmul.mubr.f32.gmra.mxu0 %v1274
  %v1365 = vpop.f32.mrf.mxu0
  %v1366 = vadd.f32 0.0, %v1365
  %v1367 = vpop.f32.mrf.mxu0
  %1368 = vdwg.mxu0
  %v1370 = vsel %vm141, %v1129, 0
  %v1373 = vsel %vm141, %v1130, 0
  %v1376 = vsel %vm141, %v1131, 0
  %v1379 = vsel %vm141, %v1132, 0
  %v1382 = vsel %vm141, %v1133, 0
  %1384 = vmatprep.subr.mxu0 0.0
  %1385 = vmatpush1.msra.mxu0 0.0
  %1386 = vmatprep.subr.mxu0 0.0
  %1387 = vmatpush1.msra.mxu0 0.0
  %1388 = vmatprep.subr.mxu0 0.0
  %1389 = vmatpush1.msra.mxu0 0.0
  %1390 = vmatprep.subr.mxu0 0.0
  %1391 = vmatpush1.msra.mxu0 0.0
  %1392 = vmatprep.subr.mxu0 0.0
  %1393 = vmatpush1.msra.mxu0 0.0
  %1394 = vmatprep.subr.mxu0 0.0
  %1395 = vmatpush1.msra.mxu0 0.0
  %1396 = vmatprep.subr.mxu0 0.0
  %1397 = vmatpush1.msra.mxu0 0.0
  %1398 = vmatprep.subr.mxu0 0.0
  %1399 = vmatpush1.msra.mxu0 0.0
  %1400 = vmatprep.subr.mxu0 0.0
  %1401 = vmatpush1.msra.mxu0 0.0
  %1402 = vmatprep.subr.mxu0 0.0
  %1403 = vmatpush1.msra.mxu0 0.0
  %1404 = vmatprep.subr.mxu0 0.0
  %1405 = vmatpush1.msra.mxu0 0.0
  %1406 = vmatprep.subr.mxu0 0.0
  %1407 = vmatpush1.msra.mxu0 0.0
  %1408 = vmatprep.subr.mxu0 0.0
  %1409 = vmatpush1.msra.mxu0 0.0
  %1410 = vmatprep.subr.mxu0 0.0
  %1411 = vmatpush1.msra.mxu0 %v1277
  %1412 = vmatprep.subr.mxu0 0.0
  %1413 = vmatpush1.msra.mxu0 %v1253
  %1414 = vmatprep.subr.mxu0 0.0
  %1415 = vmatpush1.msra.mxu0 %v1248
  %1416 = vmatprep.subr.mxu0 0.0
  %1417 = vmatpush2.msra.mxu0 0.0
  %1418 = vmatprep.subr.mxu0 0.0
  %1419 = vmatpush2.msra.mxu0 0.0
  %1420 = vmatprep.subr.mxu0 0.0
  %1421 = vmatpush2.msra.mxu0 0.0
  %1422 = vmatprep.subr.mxu0 0.0
  %1423 = vmatpush2.msra.mxu0 0.0
  %1424 = vmatprep.subr.mxu0 0.0
  %1425 = vmatpush2.msra.mxu0 0.0
  %1426 = vmatprep.subr.mxu0 0.0
  %1427 = vmatpush2.msra.mxu0 0.0
  %1428 = vmatprep.subr.mxu0 0.0
  %1429 = vmatpush2.msra.mxu0 0.0
  %1430 = vmatprep.subr.mxu0 0.0
  %1431 = vmatpush2.msra.mxu0 0.0
  %1432 = vmatprep.subr.mxu0 0.0
  %1433 = vmatpush2.msra.mxu0 0.0
  %1434 = vmatprep.subr.mxu0 0.0
  %1435 = vmatpush2.msra.mxu0 0.0
  %1436 = vmatprep.subr.mxu0 0.0
  %1437 = vmatpush2.msra.mxu0 0.0
  %1438 = vmatprep.subr.mxu0 0.0
  %1439 = vmatpush2.msra.mxu0 0.0
  %1440 = vmatprep.subr.mxu0 0.0
  %1441 = vmatpush2.msra.mxu0 0.0
  %1442 = vmatprep.subr.mxu0 0.0
  %1443 = vmatpush2.msra.mxu0 0.0
  %1444 = vmatprep.subr.mxu0 0.0
  %1445 = vmatpush2.msra.mxu0 0.0
  %1446 = vmatprep.subr.mxu0 0.0
  %1447 = vmatpush2.msra.mxu0 0.0
  %1448 = vmatprep.mubr.f32.mxu0 0.0
  %1449 = vmatmul.mubr.f32.gmra.mxu0 %v1370
  %v1450 = vpop.f32.mrf.mxu0
  %v1451 = vadd.f32 0.0, %v1450
  %v1452 = vpop.f32.mrf.mxu0
  %1453 = vmatprep.mubr.f32.mxu0 0.0
  %1454 = vmatmul.mubr.f32.gmra.mxu0 %v1373
  %v1455 = vpop.f32.mrf.mxu0
  %v1456 = vadd.f32 0.0, %v1455
  %v1457 = vpop.f32.mrf.mxu0
  %1458 = vmatprep.mubr.f32.mxu0 0.0
  %1459 = vmatmul.mubr.f32.gmra.mxu0 %v1376
  %v1460 = vpop.f32.mrf.mxu0
  %v1461 = vadd.f32 0.0, %v1460
  %v1462 = vpop.f32.mrf.mxu0
  %1463 = vmatprep.mubr.f32.mxu0 0.0
  %1464 = vmatmul.mubr.f32.gmra.mxu0 %v1379
  %v1465 = vpop.f32.mrf.mxu0
  %v1466 = vadd.f32 0.0, %v1465
  %v1467 = vpop.f32.mrf.mxu0
  %1468 = vmatprep.mubr.f32.mxu0 0.0
  %1469 = vmatmul.mubr.f32.gmra.mxu0 %v1382
  %v1470 = vpop.f32.mrf.mxu0
  %v1471 = vadd.f32 0.0, %v1470
  %v1472 = vpop.f32.mrf.mxu0
  %1473 = vdwg.mxu0
  %v1474 = vmax.f32 %v1346, %v1451
  %v1475 = vmax.f32 %v1351, %v1456
  %v1476 = vmax.f32 %v1356, %v1461
  %v1477 = vmax.f32 %v1361, %v1466
  %v1478 = vmax.f32 %v1366, %v1471
  %v1479 = vlaneseq
  %v1480 = vshrl.u32 %v1479, 7
  %v1481 = vsub.s32 0, %v1480
  %v1482 = vrot.slane %v1138, %v1481
  %v1483 = vadd.f32 %v1474, %v1482
  %v1484 = vadd.f32 %v1475, %v1482
  %v1485 = vadd.f32 %v1476, %v1482
  %v1486 = vadd.f32 %v1477, %v1482
  %v1487 = vadd.f32 %v1478, %v1482
  %v1488 = vmax.f32 %v1483, 0.0
  %v1489 = vmax.f32 %v1484, 0.0
  %v1490 = vmax.f32 %v1485, 0.0
  %v1491 = vmax.f32 %v1486, 0.0
  %v1492 = vmax.f32 %v1487, 0.0
  %1494 = vrot.lane.b32.xlu0 %v1489, 16
  %v1495 = vpop.permute.xlu0 %1494
  %1498 = vrot.lane.b32.xlu0 %v1490, 32
  %v1499 = vpop.permute.xlu0 %1498
  %1502 = vrot.lane.b32.xlu0 %v1491, 48
  %v1503 = vpop.permute.xlu0 %1502
  %1506 = vrot.lane.b32.xlu0 %v1492, 64
  %v1507 = vpop.permute.xlu0 %1506
  %v1509 = vsel %vm806, %v1488, %v1495
  %v1510 = vsel %vm1171, %v1509, %v1499
  %vm1511 = vcmask 392192
  %v1512 = vsel %vm1511, %v1510, %v1503
  %vm1513 = vcmask 523264
  %v1514 = vsel %vm1513, %v1512, %v1507
  %v1515 = vlaneseq
  %v1516 = vshrl.u32 %v1515, 7
  %v1517 = vsub.s32 0, %v1516
  %v1518 = vrot.slane %v1149, %v1517
  %vm1519 = vcmask 654336
  %v1521 = vsel %vm1519, %v1514, 0
  %1523 = vmatprep.subr.mxu0 0.0
  %1524 = vmatpush1.msra.mxu0 0.0
  %1525 = vmatprep.subr.mxu0 0.0
  %1526 = vmatpush1.msra.mxu0 0.0
  %1527 = vmatprep.subr.mxu0 0.0
  %1528 = vmatpush1.msra.mxu0 0.0
  %1529 = vmatprep.subr.mxu0 0.0
  %1530 = vmatpush1.msra.mxu0 0.0
  %1531 = vmatprep.subr.mxu0 0.0
  %1532 = vmatpush1.msra.mxu0 0.0
  %1533 = vmatprep.subr.mxu0 0.0
  %1534 = vmatpush1.msra.mxu0 0.0
  %1535 = vmatprep.subr.mxu0 0.0
  %1536 = vmatpush1.msra.mxu0 %v1148
  %1537 = vmatprep.subr.mxu0 0.0
  %1538 = vmatpush1.msra.mxu0 %v1147
  %1539 = vmatprep.subr.mxu0 0.0
  %1540 = vmatpush1.msra.mxu0 %v1146
  %1541 = vmatprep.subr.mxu0 0.0
  %1542 = vmatpush1.msra.mxu0 %v1145
  %1543 = vmatprep.subr.mxu0 0.0
  %1544 = vmatpush1.msra.mxu0 %v1144
  %1545 = vmatprep.subr.mxu0 0.0
  %1546 = vmatpush1.msra.mxu0 %v1143
  %1547 = vmatprep.subr.mxu0 0.0
  %1548 = vmatpush1.msra.mxu0 %v1142
  %1549 = vmatprep.subr.mxu0 0.0
  %1550 = vmatpush1.msra.mxu0 %v1141
  %1551 = vmatprep.subr.mxu0 0.0
  %1552 = vmatpush1.msra.mxu0 %v1140
  %1553 = vmatprep.subr.mxu0 0.0
  %1554 = vmatpush1.msra.mxu0 %v1139
  %1555 = vmatprep.subr.mxu0 0.0
  %1556 = vmatpush2.msra.mxu0 0.0
  %1557 = vmatprep.subr.mxu0 0.0
  %1558 = vmatpush2.msra.mxu0 0.0
  %1559 = vmatprep.subr.mxu0 0.0
  %1560 = vmatpush2.msra.mxu0 0.0
  %1561 = vmatprep.subr.mxu0 0.0
  %1562 = vmatpush2.msra.mxu0 0.0
  %1563 = vmatprep.subr.mxu0 0.0
  %1564 = vmatpush2.msra.mxu0 0.0
  %1565 = vmatprep.subr.mxu0 0.0
  %1566 = vmatpush2.msra.mxu0 0.0
  %1567 = vmatprep.subr.mxu0 0.0
  %1568 = vmatpush2.msra.mxu0 0.0
  %1569 = vmatprep.subr.mxu0 0.0
  %1570 = vmatpush2.msra.mxu0 0.0
  %1571 = vmatprep.subr.mxu0 0.0
  %1572 = vmatpush2.msra.mxu0 0.0
  %1573 = vmatprep.subr.mxu0 0.0
  %1574 = vmatpush2.msra.mxu0 0.0
  %1575 = vmatprep.subr.mxu0 0.0
  %1576 = vmatpush2.msra.mxu0 0.0
  %1577 = vmatprep.subr.mxu0 0.0
  %1578 = vmatpush2.msra.mxu0 0.0
  %1579 = vmatprep.subr.mxu0 0.0
  %1580 = vmatpush2.msra.mxu0 0.0
  %1581 = vmatprep.subr.mxu0 0.0
  %1582 = vmatpush2.msra.mxu0 0.0
  %1583 = vmatprep.subr.mxu0 0.0
  %1584 = vmatpush2.msra.mxu0 0.0
  %1585 = vmatprep.subr.mxu0 0.0
  %1586 = vmatpush2.msra.mxu0 0.0
  %1587 = vmatprep.mubr.f32.mxu0 0.0
  %1588 = vmatmul.mubr.f32.gmra.mxu0 %v1521
  %v1589 = vpop.f32.mrf.mxu0
  %v1590 = vadd.f32 %v1518, %v1589
  %v1591 = vpop.f32.mrf.mxu0
  %1592 = vdwg.mxu0
  %v1593 = vmax.f32 %v1590, 0.0
  %v1594 = vlaneseq
  %v1595 = vshrl.u32 %v1594, 7
  %v1596 = vsub.s32 0, %v1595
  %v1597 = vrot.slane %v1154, %v1596
  %v1599 = vsel %vm1171, %v1593, 0
  %1601 = vmatprep.subr.mxu0 0.0
  %1602 = vmatpush1.msra.mxu0 0.0
  %1603 = vmatprep.subr.mxu0 0.0
  %1604 = vmatpush1.msra.mxu0 0.0
  %1605 = vmatprep.subr.mxu0 0.0
  %1606 = vmatpush1.msra.mxu0 0.0
  %1607 = vmatprep.subr.mxu0 0.0
  %1608 = vmatpush1.msra.mxu0 0.0
  %1609 = vmatprep.subr.mxu0 0.0
  %1610 = vmatpush1.msra.mxu0 0.0
  %1611 = vmatprep.subr.mxu0 0.0
  %1612 = vmatpush1.msra.mxu0 0.0
  %1613 = vmatprep.subr.mxu0 0.0
  %1614 = vmatpush1.msra.mxu0 0.0
  %1615 = vmatprep.subr.mxu0 0.0
  %1616 = vmatpush1.msra.mxu0 0.0
  %1617 = vmatprep.subr.mxu0 0.0
  %1618 = vmatpush1.msra.mxu0 0.0
  %1619 = vmatprep.subr.mxu0 0.0
  %1620 = vmatpush1.msra.mxu0 0.0
  %1621 = vmatprep.subr.mxu0 0.0
  %1622 = vmatpush1.msra.mxu0 0.0
  %1623 = vmatprep.subr.mxu0 0.0
  %1624 = vmatpush1.msra.mxu0 0.0
  %1625 = vmatprep.subr.mxu0 0.0
  %1626 = vmatpush1.msra.mxu0 %v1153
  %1627 = vmatprep.subr.mxu0 0.0
  %1628 = vmatpush1.msra.mxu0 %v1152
  %1629 = vmatprep.subr.mxu0 0.0
  %1630 = vmatpush1.msra.mxu0 %v1151
  %1631 = vmatprep.subr.mxu0 0.0
  %1632 = vmatpush1.msra.mxu0 %v1150
  %1633 = vmatprep.subr.mxu0 0.0
  %1634 = vmatpush2.msra.mxu0 0.0
  %1635 = vmatprep.subr.mxu0 0.0
  %1636 = vmatpush2.msra.mxu0 0.0
  %1637 = vmatprep.subr.mxu0 0.0
  %1638 = vmatpush2.msra.mxu0 0.0
  %1639 = vmatprep.subr.mxu0 0.0
  %1640 = vmatpush2.msra.mxu0 0.0
  %1641 = vmatprep.subr.mxu0 0.0
  %1642 = vmatpush2.msra.mxu0 0.0
  %1643 = vmatprep.subr.mxu0 0.0
  %1644 = vmatpush2.msra.mxu0 0.0
  %1645 = vmatprep.subr.mxu0 0.0
  %1646 = vmatpush2.msra.mxu0 0.0
  %1647 = vmatprep.subr.mxu0 0.0
  %1648 = vmatpush2.msra.mxu0 0.0
  %1649 = vmatprep.subr.mxu0 0.0
  %1650 = vmatpush2.msra.mxu0 0.0
  %1651 = vmatprep.subr.mxu0 0.0
  %1652 = vmatpush2.msra.mxu0 0.0
  %1653 = vmatprep.subr.mxu0 0.0
  %1654 = vmatpush2.msra.mxu0 0.0
  %1655 = vmatprep.subr.mxu0 0.0
  %1656 = vmatpush2.msra.mxu0 0.0
  %1657 = vmatprep.subr.mxu0 0.0
  %1658 = vmatpush2.msra.mxu0 0.0
  %1659 = vmatprep.subr.mxu0 0.0
  %1660 = vmatpush2.msra.mxu0 0.0
  %1661 = vmatprep.subr.mxu0 0.0
  %1662 = vmatpush2.msra.mxu0 0.0
  %1663 = vmatprep.subr.mxu0 0.0
  %1664 = vmatpush2.msra.mxu0 0.0
  %1665 = vmatprep.mubr.f32.mxu0 0.0
  %1666 = vmatmul.mubr.f32.gmra.mxu0 %v1599
  %v1667 = vpop.f32.mrf.mxu0
  %v1668 = vadd.f32 %v1597, %v1667
  %v1669 = vpop.f32.mrf.mxu0
  %1670 = vdwg.mxu0
  %v1671 = vld [vmem:[%s1] sm:$0xff]
  %v1672 = vld [vmem:[%s1 + $0x8] sm:$0xf]
  %v1673 = vld [vmem:[%s5] sm:$0xff]
  %v1674 = vld [vmem:[%s5 + $0x8] sm:$0xff]
  %v1675 = vld [vmem:[%s5 + $0x10] sm:$0xff]
  %v1676 = vld [vmem:[%s5 + $0x18] sm:$0xff]
  %v1677 = vld [vmem:[%s5 + $0x20] sm:$0xff]
  %v1678 = vld [vmem:[%s5 + $0x28] sm:$0xff]
  %v1679 = vld [vmem:[%s5 + $0x30] sm:$0xff]
  %v1680 = vld [vmem:[%s5 + $0x38] sm:$0xff]
  %v1681 = vld [vmem:[%s5 + $0x40] sm:$0xff]
  %v1682 = vld [vmem:[%s5 + $0x48] sm:$0xff]
  %v1684 = vsel %vm1171, %v1671, 0
  %v1687 = vsel %vm1171, %v1672, 0
  %1689 = vmatprep.subr.mxu0 0.0
  %1690 = vmatpush1.msra.mxu0 0.0
  %1691 = vmatprep.subr.mxu0 0.0
  %1692 = vmatpush1.msra.mxu0 0.0
  %1693 = vmatprep.subr.mxu0 0.0
  %1694 = vmatpush1.msra.mxu0 0.0
  %1695 = vmatprep.subr.mxu0 0.0
  %1696 = vmatpush1.msra.mxu0 0.0
  %1697 = vmatprep.subr.mxu0 0.0
  %1698 = vmatpush1.msra.mxu0 0.0
  %1699 = vmatprep.subr.mxu0 0.0
  %1700 = vmatpush1.msra.mxu0 0.0
  %1701 = vmatprep.subr.mxu0 0.0
  %1702 = vmatpush1.msra.mxu0 0.0
  %1703 = vmatprep.subr.mxu0 0.0
  %1704 = vmatpush1.msra.mxu0 0.0
  %1705 = vmatprep.subr.mxu0 0.0
  %1706 = vmatpush1.msra.mxu0 0.0
  %1707 = vmatprep.subr.mxu0 0.0
  %1708 = vmatpush1.msra.mxu0 0.0
  %1709 = vmatprep.subr.mxu0 0.0
  %1710 = vmatpush1.msra.mxu0 0.0
  %1711 = vmatprep.subr.mxu0 0.0
  %1712 = vmatpush1.msra.mxu0 0.0
  %1713 = vmatprep.subr.mxu0 0.0
  %1714 = vmatpush1.msra.mxu0 %v1676
  %1715 = vmatprep.subr.mxu0 0.0
  %1716 = vmatpush1.msra.mxu0 %v1675
  %1717 = vmatprep.subr.mxu0 0.0
  %1718 = vmatpush1.msra.mxu0 %v1674
  %1719 = vmatprep.subr.mxu0 0.0
  %1720 = vmatpush1.msra.mxu0 %v1673
  %1721 = vmatprep.subr.mxu0 0.0
  %1722 = vmatpush2.msra.mxu0 0.0
  %1723 = vmatprep.subr.mxu0 0.0
  %1724 = vmatpush2.msra.mxu0 0.0
  %1725 = vmatprep.subr.mxu0 0.0
  %1726 = vmatpush2.msra.mxu0 0.0
  %1727 = vmatprep.subr.mxu0 0.0
  %1728 = vmatpush2.msra.mxu0 0.0
  %1729 = vmatprep.subr.mxu0 0.0
  %1730 = vmatpush2.msra.mxu0 0.0
  %1731 = vmatprep.subr.mxu0 0.0
  %1732 = vmatpush2.msra.mxu0 0.0
  %1733 = vmatprep.subr.mxu0 0.0
  %1734 = vmatpush2.msra.mxu0 0.0
  %1735 = vmatprep.subr.mxu0 0.0
  %1736 = vmatpush2.msra.mxu0 0.0
  %1737 = vmatprep.subr.mxu0 0.0
  %1738 = vmatpush2.msra.mxu0 0.0
  %1739 = vmatprep.subr.mxu0 0.0
  %1740 = vmatpush2.msra.mxu0 0.0
  %1741 = vmatprep.subr.mxu0 0.0
  %1742 = vmatpush2.msra.mxu0 0.0
  %1743 = vmatprep.subr.mxu0 0.0
  %1744 = vmatpush2.msra.mxu0 0.0
  %1745 = vmatprep.subr.mxu0 0.0
  %1746 = vmatpush2.msra.mxu0 0.0
  %1747 = vmatprep.subr.mxu0 0.0
  %1748 = vmatpush2.msra.mxu0 0.0
  %1749 = vmatprep.subr.mxu0 0.0
  %1750 = vmatpush2.msra.mxu0 0.0
  %1751 = vmatprep.subr.mxu0 0.0
  %1752 = vmatpush2.msra.mxu0 0.0
  %1753 = vmatprep.mubr.f32.mxu0 0.0
  %1754 = vmatmul.mubr.f32.gmra.mxu0 %v1684
  %v1755 = vpop.f32.mrf.mxu0
  %v1756 = vadd.f32 0.0, %v1755
  %v1757 = vpop.f32.mrf.mxu0
  %1758 = vmatprep.mubr.f32.mxu0 0.0
  %1759 = vmatmul.mubr.f32.gmra.mxu0 %v1687
  %v1760 = vpop.f32.mrf.mxu0
  %v1761 = vadd.f32 0.0, %v1760
  %v1762 = vpop.f32.mrf.mxu0
  %1763 = vdwg.mxu0
  %v1765 = vsel %vm235, %v1756, 0
  %v1768 = vsel %vm235, %v1761, 0
  %1770 = vmatprep.subr.mxu0 0.0
  %1771 = vmatpush1.msra.mxu0 0.0
  %1772 = vmatprep.subr.mxu0 0.0
  %1773 = vmatpush1.msra.mxu0 0.0
  %1774 = vmatprep.subr.mxu0 0.0
  %1775 = vmatpush1.msra.mxu0 0.0
  %1776 = vmatprep.subr.mxu0 0.0
  %1777 = vmatpush1.msra.mxu0 0.0
  %1778 = vmatprep.subr.mxu0 0.0
  %1779 = vmatpush1.msra.mxu0 0.0
  %1780 = vmatprep.subr.mxu0 0.0
  %1781 = vmatpush1.msra.mxu0 0.0
  %1782 = vmatprep.subr.mxu0 0.0
  %1783 = vmatpush1.msra.mxu0 0.0
  %1784 = vmatprep.subr.mxu0 0.0
  %1785 = vmatpush1.msra.mxu0 0.0
  %1786 = vmatprep.subr.mxu0 0.0
  %1787 = vmatpush1.msra.mxu0 0.0
  %1788 = vmatprep.subr.mxu0 0.0
  %1789 = vmatpush1.msra.mxu0 0.0
  %1790 = vmatprep.subr.mxu0 0.0
  %1791 = vmatpush1.msra.mxu0 0.0
  %1792 = vmatprep.subr.mxu0 0.0
  %1793 = vmatpush1.msra.mxu0 0.0
  %1794 = vmatprep.subr.mxu0 0.0
  %1795 = vmatpush1.msra.mxu0 0.0
  %1796 = vmatprep.subr.mxu0 0.0
  %1797 = vmatpush1.msra.mxu0 0.0
  %1798 = vmatprep.subr.mxu0 0.0
  %1799 = vmatpush1.msra.mxu0 0.0
  %1800 = vmatprep.subr.mxu0 0.0
  %1801 = vmatpush1.msra.mxu0 %v1677
  %1802 = vmatprep.subr.mxu0 0.0
  %1803 = vmatpush2.msra.mxu0 0.0
  %1804 = vmatprep.subr.mxu0 0.0
  %1805 = vmatpush2.msra.mxu0 0.0
  %1806 = vmatprep.subr.mxu0 0.0
  %1807 = vmatpush2.msra.mxu0 0.0
  %1808 = vmatprep.subr.mxu0 0.0
  %1809 = vmatpush2.msra.mxu0 0.0
  %1810 = vmatprep.subr.mxu0 0.0
  %1811 = vmatpush2.msra.mxu0 0.0
  %1812 = vmatprep.subr.mxu0 0.0
  %1813 = vmatpush2.msra.mxu0 0.0
  %1814 = vmatprep.subr.mxu0 0.0
  %1815 = vmatpush2.msra.mxu0 0.0
  %1816 = vmatprep.subr.mxu0 0.0
  %1817 = vmatpush2.msra.mxu0 0.0
  %1818 = vmatprep.subr.mxu0 0.0
  %1819 = vmatpush2.msra.mxu0 0.0
  %1820 = vmatprep.subr.mxu0 0.0
  %1821 = vmatpush2.msra.mxu0 0.0
  %1822 = vmatprep.subr.mxu0 0.0
  %1823 = vmatpush2.msra.mxu0 0.0
  %1824 = vmatprep.subr.mxu0 0.0
  %1825 = vmatpush2.msra.mxu0 0.0
  %1826 = vmatprep.subr.mxu0 0.0
  %1827 = vmatpush2.msra.mxu0 0.0
  %1828 = vmatprep.subr.mxu0 0.0
  %1829 = vmatpush2.msra.mxu0 0.0
  %1830 = vmatprep.subr.mxu0 0.0
  %1831 = vmatpush2.msra.mxu0 0.0
  %1832 = vmatprep.subr.mxu0 0.0
  %1833 = vmatpush2.msra.mxu0 0.0
  %1834 = vmatprep.mubr.f32.mxu0 0.0
  %1835 = vmatmul.mubr.f32.gmra.mxu0 %v1765
  %v1836 = vpop.f32.mrf.mxu0
  %v1837 = vadd.f32 0.0, %v1836
  %v1838 = vpop.f32.mrf.mxu0
  %1839 = vmatprep.mubr.f32.mxu0 0.0
  %1840 = vmatmul.mubr.f32.gmra.mxu0 %v1768
  %v1841 = vpop.f32.mrf.mxu0
  %v1842 = vadd.f32 0.0, %v1841
  %v1843 = vpop.f32.mrf.mxu0
  %1844 = vdwg.mxu0
  %1845 = vxpose.xlu0.b32.start [1/16] %v1837, 128
  %1846 = vxpose.xlu0.b32.cont [2/16] %v1842, 128
  %1847 = vxpose.xlu0.b32.cont [3/16] 0.0, 128
  %1848 = vxpose.xlu0.b32.cont [4/16] 0.0, 128
  %1849 = vxpose.xlu0.b32.cont [5/16] 0.0, 128
  %1850 = vxpose.xlu0.b32.cont [6/16] 0.0, 128
  %1851 = vxpose.xlu0.b32.cont [7/16] 0.0, 128
  %1852 = vxpose.xlu0.b32.cont [8/16] 0.0, 128
  %1853 = vxpose.xlu0.b32.cont [9/16] 0.0, 128
  %1854 = vxpose.xlu0.b32.cont [10/16] 0.0, 128
  %1855 = vxpose.xlu0.b32.cont [11/16] 0.0, 128
  %1856 = vxpose.xlu0.b32.cont [12/16] 0.0, 128
  %1857 = vxpose.xlu0.b32.cont [13/16] 0.0, 128
  %1858 = vxpose.xlu0.b32.cont [14/16] 0.0, 128
  %1859 = vxpose.xlu0.b32.cont [15/16] 0.0, 128
  %1860 = vxpose.xlu0.b32.end [16/16] 0.0, 128
  %v1861 = vpop.trf.xlu0
  %v1862 = vpop.trf.xlu0
  %v1863 = vpop.trf.xlu0
  %v1864 = vpop.trf.xlu0
  %v1865 = vpop.trf.xlu0
  %v1866 = vpop.trf.xlu0
  %v1867 = vpop.trf.xlu0
  %v1868 = vpop.trf.xlu0
  %v1869 = vpop.trf.xlu0
  %v1870 = vpop.trf.xlu0
  %v1871 = vpop.trf.xlu0
  %v1872 = vpop.trf.xlu0
  %v1873 = vpop.trf.xlu0
  %v1874 = vpop.trf.xlu0
  %v1875 = vpop.trf.xlu0
  %v1876 = vpop.trf.xlu0
  %1878 = vset.pattern.permute.xlu0 1
  %1879 = vperm.xlu0 %1878, %v1837
  %v1880 = vpop.permute.xlu0 %1879
  %1883 = vset.pattern.permute.xlu0 1
  %1884 = vperm.xlu0 %1883, %v1842
  %v1885 = vpop.permute.xlu0 %1884
  %v1887 = vlaneseq
  %v1888 = vshrl.u32 %v1887, 7
  %v1889 = vsub.s32 0, %v1888
  %v1890 = vrot.slane %v1861, %v1889
  %v1891 = vadd.f32 %v1880, %v1890
  %v1892 = vadd.f32 %v1885, %v1890
  %vm1893 = vcmp.gt.f32.partialorder %v1891, 0.0
  %vm1894 = vcmp.gt.f32.partialorder %v1892, 0.0
  %v1895 = vmul.f32 %v1891, 0.2
  %v1896 = vmul.f32 %v1892, 0.2
  %v1897 = vsel %vm1893, %v1891, %v1895
  %v1898 = vsel %vm1894, %v1892, %v1896
  %1899 = vrot.lane.b32.xlu0 %v1671, 96
  %v1900 = vpop.permute.xlu0 %1899
  %1901 = vrot.lane.b32.xlu0 %v1672, 96
  %v1902 = vpop.permute.xlu0 %1901
  %v1905 = vadd.f32 %v1897, %v1900
  %v1906 = vadd.f32 %v1898, %v1902
  %vm1907 = vcmask 97280
  %v1908 = vsel %vm1907, %v1905, -inf
  %1909 = vmax.xlane.f32.xlu0 %v1908
  %v1910 = vpop.xlane.xlu0 %1909
  %vm1911 = vcmask 93184
  %v1912 = vsel %vm1911, %v1906, -inf
  %1913 = vmax.xlane.f32.xlu0 %v1912
  %v1914 = vpop.xlane.xlu0 %1913
  %v1915 = vsub.f32 %v1905, %v1910
  %v1916 = vsub.f32 %v1906, %v1914
  %v1917 = vmul.f32 %v1915, 1.442695
  %v1918 = vpow.pop %v1917
  %v1919 = vmul.f32 %v1916, 1.442695
  %v1920 = vpow.pop %v1919
  %v1921 = vsel %vm1907, %v1918, 0.0
  %1922 = vadd.xlane.f32.xlu0 %v1921
  %v1923 = vpop.xlane.xlu0 %1922
  %v1924 = vsel %vm1911, %v1920, 0.0
  %1925 = vadd.xlane.f32.xlu0 %v1924
  %v1926 = vpop.xlane.xlu0 %1925
  %v1927 = vrcp.pop %v1923
  %v1928 = vmul.f32 %v1918, %v1927
  %v1929 = vrcp.pop %v1926
  %v1930 = vmul.f32 %v1920, %v1929
  %v1931 = vlaneseq
  %v1932 = vshrl.u32 %v1931, 7
  %v1933 = vsub.s32 0, %v1932
  %v1934 = vrot.slane %v1678, %v1933
  %v1936 = vsel %vm1907, %v1928, 0
  %v1939 = vsel %vm1907, %v1930, 0
  %v1941 = vsel %vm53, %v1761, 0
  %1943 = vmatprep.subr.mxu0 0.0
  %1944 = vmatpush1.msra.mxu0 0.0
  %1945 = vmatprep.subr.mxu0 0.0
  %1946 = vmatpush1.msra.mxu0 0.0
  %1947 = vmatprep.subr.mxu0 0.0
  %1948 = vmatpush1.msra.mxu0 0.0
  %1949 = vmatprep.subr.mxu0 0.0
  %1950 = vmatpush1.msra.mxu0 0.0
  %1951 = vmatprep.subr.mxu0 0.0
  %1952 = vmatpush1.msra.mxu0 0.0
  %1953 = vmatprep.subr.mxu0 0.0
  %1954 = vmatpush1.msra.mxu0 0.0
  %1955 = vmatprep.subr.mxu0 0.0
  %1956 = vmatpush1.msra.mxu0 0.0
  %1957 = vmatprep.subr.mxu0 0.0
  %1958 = vmatpush1.msra.mxu0 0.0
  %1959 = vmatprep.subr.mxu0 0.0
  %1960 = vmatpush1.msra.mxu0 0.0
  %1961 = vmatprep.subr.mxu0 0.0
  %1962 = vmatpush1.msra.mxu0 0.0
  %1963 = vmatprep.subr.mxu0 0.0
  %1964 = vmatpush1.msra.mxu0 0.0
  %1965 = vmatprep.subr.mxu0 0.0
  %1966 = vmatpush1.msra.mxu0 0.0
  %1967 = vmatprep.subr.mxu0 0.0
  %1968 = vmatpush1.msra.mxu0 0.0
  %1969 = vmatprep.subr.mxu0 0.0
  %1970 = vmatpush1.msra.mxu0 0.0
  %1971 = vmatprep.subr.mxu0 0.0
  %1972 = vmatpush1.msra.mxu0 %v1941
  %1973 = vmatprep.subr.mxu0 0.0
  %1974 = vmatpush1.msra.mxu0 %v1756
  %1975 = vmatprep.subr.mxu0 0.0
  %1976 = vmatpush2.msra.mxu0 0.0
  %1977 = vmatprep.subr.mxu0 0.0
  %1978 = vmatpush2.msra.mxu0 0.0
  %1979 = vmatprep.subr.mxu0 0.0
  %1980 = vmatpush2.msra.mxu0 0.0
  %1981 = vmatprep.subr.mxu0 0.0
  %1982 = vmatpush2.msra.mxu0 0.0
  %1983 = vmatprep.subr.mxu0 0.0
  %1984 = vmatpush2.msra.mxu0 0.0
  %1985 = vmatprep.subr.mxu0 0.0
  %1986 = vmatpush2.msra.mxu0 0.0
  %1987 = vmatprep.subr.mxu0 0.0
  %1988 = vmatpush2.msra.mxu0 0.0
  %1989 = vmatprep.subr.mxu0 0.0
  %1990 = vmatpush2.msra.mxu0 0.0
  %1991 = vmatprep.subr.mxu0 0.0
  %1992 = vmatpush2.msra.mxu0 0.0
  %1993 = vmatprep.subr.mxu0 0.0
  %1994 = vmatpush2.msra.mxu0 0.0
  %1995 = vmatprep.subr.mxu0 0.0
  %1996 = vmatpush2.msra.mxu0 0.0
  %1997 = vmatprep.subr.mxu0 0.0
  %1998 = vmatpush2.msra.mxu0 0.0
  %1999 = vmatprep.subr.mxu0 0.0
  %2000 = vmatpush2.msra.mxu0 0.0
  %2001 = vmatprep.subr.mxu0 0.0
  %2002 = vmatpush2.msra.mxu0 0.0
  %2003 = vmatprep.subr.mxu0 0.0
  %2004 = vmatpush2.msra.mxu0 0.0
  %2005 = vmatprep.subr.mxu0 0.0
  %2006 = vmatpush2.msra.mxu0 0.0
  %2007 = vmatprep.mubr.f32.mxu0 0.0
  %2008 = vmatmul.mubr.f32.gmra.mxu0 %v1936
  %v2009 = vpop.f32.mrf.mxu0
  %v2010 = vadd.f32 %v1934, %v2009
  %v2011 = vpop.f32.mrf.mxu0
  %2012 = vmatprep.mubr.f32.mxu0 0.0
  %2013 = vmatmul.mubr.f32.gmra.mxu0 %v1939
  %v2014 = vpop.f32.mrf.mxu0
  %v2015 = vadd.f32 %v1934, %v2014
  %v2016 = vpop.f32.mrf.mxu0
  %2017 = vdwg.mxu0
  %v2018 = vmax.f32 %v2010, 0.0
  %v2019 = vmax.f32 %v2015, 0.0
  %v2021 = vsel %vm235, %v2018, 0
  %v2024 = vsel %vm235, %v2019, 0
  %2026 = vmatprep.subr.mxu0 0.0
  %2027 = vmatpush1.msra.mxu0 0.0
  %2028 = vmatprep.subr.mxu0 0.0
  %2029 = vmatpush1.msra.mxu0 0.0
  %2030 = vmatprep.subr.mxu0 0.0
  %2031 = vmatpush1.msra.mxu0 0.0
  %2032 = vmatprep.subr.mxu0 0.0
  %2033 = vmatpush1.msra.mxu0 0.0
  %2034 = vmatprep.subr.mxu0 0.0
  %2035 = vmatpush1.msra.mxu0 0.0
  %2036 = vmatprep.subr.mxu0 0.0
  %2037 = vmatpush1.msra.mxu0 0.0
  %2038 = vmatprep.subr.mxu0 0.0
  %2039 = vmatpush1.msra.mxu0 0.0
  %2040 = vmatprep.subr.mxu0 0.0
  %2041 = vmatpush1.msra.mxu0 0.0
  %2042 = vmatprep.subr.mxu0 0.0
  %2043 = vmatpush1.msra.mxu0 0.0
  %2044 = vmatprep.subr.mxu0 0.0
  %2045 = vmatpush1.msra.mxu0 0.0
  %2046 = vmatprep.subr.mxu0 0.0
  %2047 = vmatpush1.msra.mxu0 0.0
  %2048 = vmatprep.subr.mxu0 0.0
  %2049 = vmatpush1.msra.mxu0 0.0
  %2050 = vmatprep.subr.mxu0 0.0
  %2051 = vmatpush1.msra.mxu0 0.0
  %2052 = vmatprep.subr.mxu0 0.0
  %2053 = vmatpush1.msra.mxu0 0.0
  %2054 = vmatprep.subr.mxu0 0.0
  %2055 = vmatpush1.msra.mxu0 0.0
  %2056 = vmatprep.subr.mxu0 0.0
  %2057 = vmatpush1.msra.mxu0 %v1679
  %2058 = vmatprep.subr.mxu0 0.0
  %2059 = vmatpush2.msra.mxu0 0.0
  %2060 = vmatprep.subr.mxu0 0.0
  %2061 = vmatpush2.msra.mxu0 0.0
  %2062 = vmatprep.subr.mxu0 0.0
  %2063 = vmatpush2.msra.mxu0 0.0
  %2064 = vmatprep.subr.mxu0 0.0
  %2065 = vmatpush2.msra.mxu0 0.0
  %2066 = vmatprep.subr.mxu0 0.0
  %2067 = vmatpush2.msra.mxu0 0.0
  %2068 = vmatprep.subr.mxu0 0.0
  %2069 = vmatpush2.msra.mxu0 0.0
  %2070 = vmatprep.subr.mxu0 0.0
  %2071 = vmatpush2.msra.mxu0 0.0
  %2072 = vmatprep.subr.mxu0 0.0
  %2073 = vmatpush2.msra.mxu0 0.0
  %2074 = vmatprep.subr.mxu0 0.0
  %2075 = vmatpush2.msra.mxu0 0.0
  %2076 = vmatprep.subr.mxu0 0.0
  %2077 = vmatpush2.msra.mxu0 0.0
  %2078 = vmatprep.subr.mxu0 0.0
  %2079 = vmatpush2.msra.mxu0 0.0
  %2080 = vmatprep.subr.mxu0 0.0
  %2081 = vmatpush2.msra.mxu0 0.0
  %2082 = vmatprep.subr.mxu0 0.0
  %2083 = vmatpush2.msra.mxu0 0.0
  %2084 = vmatprep.subr.mxu0 0.0
  %2085 = vmatpush2.msra.mxu0 0.0
  %2086 = vmatprep.subr.mxu0 0.0
  %2087 = vmatpush2.msra.mxu0 0.0
  %2088 = vmatprep.subr.mxu0 0.0
  %2089 = vmatpush2.msra.mxu0 0.0
  %2090 = vmatprep.mubr.f32.mxu0 0.0
  %2091 = vmatmul.mubr.f32.gmra.mxu0 %v2021
  %v2092 = vpop.f32.mrf.mxu0
  %v2093 = vadd.f32 0.0, %v2092
  %v2094 = vpop.f32.mrf.mxu0
  %2095 = vmatprep.mubr.f32.mxu0 0.0
  %2096 = vmatmul.mubr.f32.gmra.mxu0 %v2024
  %v2097 = vpop.f32.mrf.mxu0
  %v2098 = vadd.f32 0.0, %v2097
  %v2099 = vpop.f32.mrf.mxu0
  %2100 = vdwg.mxu0
  %v2102 = vsel %vm806, %v2093, 0
  %v2105 = vsel %vm806, %v2098, 0
  %2107 = vmatprep.subr.mxu0 0.0
  %2108 = vmatpush1.msra.mxu0 0.0
  %2109 = vmatprep.subr.mxu0 0.0
  %2110 = vmatpush1.msra.mxu0 0.0
  %2111 = vmatprep.subr.mxu0 0.0
  %2112 = vmatpush1.msra.mxu0 0.0
  %2113 = vmatprep.subr.mxu0 0.0
  %2114 = vmatpush1.msra.mxu0 0.0
  %2115 = vmatprep.subr.mxu0 0.0
  %2116 = vmatpush1.msra.mxu0 0.0
  %2117 = vmatprep.subr.mxu0 0.0
  %2118 = vmatpush1.msra.mxu0 0.0
  %2119 = vmatprep.subr.mxu0 0.0
  %2120 = vmatpush1.msra.mxu0 0.0
  %2121 = vmatprep.subr.mxu0 0.0
  %2122 = vmatpush1.msra.mxu0 0.0
  %2123 = vmatprep.subr.mxu0 0.0
  %2124 = vmatpush1.msra.mxu0 0.0
  %2125 = vmatprep.subr.mxu0 0.0
  %2126 = vmatpush1.msra.mxu0 0.0
  %2127 = vmatprep.subr.mxu0 0.0
  %2128 = vmatpush1.msra.mxu0 0.0
  %2129 = vmatprep.subr.mxu0 0.0
  %2130 = vmatpush1.msra.mxu0 0.0
  %2131 = vmatprep.subr.mxu0 0.0
  %2132 = vmatpush1.msra.mxu0 0.0
  %2133 = vmatprep.subr.mxu0 0.0
  %2134 = vmatpush1.msra.mxu0 0.0
  %2135 = vmatprep.subr.mxu0 0.0
  %2136 = vmatpush1.msra.mxu0 %v1681
  %2137 = vmatprep.subr.mxu0 0.0
  %2138 = vmatpush1.msra.mxu0 %v1680
  %2139 = vmatprep.subr.mxu0 0.0
  %2140 = vmatpush2.msra.mxu0 0.0
  %2141 = vmatprep.subr.mxu0 0.0
  %2142 = vmatpush2.msra.mxu0 0.0
  %2143 = vmatprep.subr.mxu0 0.0
  %2144 = vmatpush2.msra.mxu0 0.0
  %2145 = vmatprep.subr.mxu0 0.0
  %2146 = vmatpush2.msra.mxu0 0.0
  %2147 = vmatprep.subr.mxu0 0.0
  %2148 = vmatpush2.msra.mxu0 0.0
  %2149 = vmatprep.subr.mxu0 0.0
  %2150 = vmatpush2.msra.mxu0 0.0
  %2151 = vmatprep.subr.mxu0 0.0
  %2152 = vmatpush2.msra.mxu0 0.0
  %2153 = vmatprep.subr.mxu0 0.0
  %2154 = vmatpush2.msra.mxu0 0.0
  %2155 = vmatprep.subr.mxu0 0.0
  %2156 = vmatpush2.msra.mxu0 0.0
  %2157 = vmatprep.subr.mxu0 0.0
  %2158 = vmatpush2.msra.mxu0 0.0
  %2159 = vmatprep.subr.mxu0 0.0
  %2160 = vmatpush2.msra.mxu0 0.0
  %2161 = vmatprep.subr.mxu0 0.0
  %2162 = vmatpush2.msra.mxu0 0.0
  %2163 = vmatprep.subr.mxu0 0.0
  %2164 = vmatpush2.msra.mxu0 0.0
  %2165 = vmatprep.subr.mxu0 0.0
  %2166 = vmatpush2.msra.mxu0 0.0
  %2167 = vmatprep.subr.mxu0 0.0
  %2168 = vmatpush2.msra.mxu0 0.0
  %2169 = vmatprep.subr.mxu0 0.0
  %2170 = vmatpush2.msra.mxu0 0.0
  %2171 = vmatprep.mubr.f32.mxu0 0.0
  %2172 = vmatmul.mubr.f32.gmra.mxu0 %v2102
  %v2173 = vpop.f32.mrf.mxu0
  %v2174 = vadd.f32 0.0, %v2173
  %v2175 = vpop.f32.mrf.mxu0
  %2176 = vmatprep.mubr.f32.mxu0 0.0
  %2177 = vmatmul.mubr.f32.gmra.mxu0 %v2105
  %v2178 = vpop.f32.mrf.mxu0
  %v2179 = vadd.f32 0.0, %v2178
  %v2180 = vpop.f32.mrf.mxu0
  %2181 = vdwg.mxu0
  %2182 = vxpose.xlu0.b32.start [1/16] %v2174, 128
  %2183 = vxpose.xlu0.b32.cont [2/16] %v2179, 128
  %2184 = vxpose.xlu0.b32.cont [3/16] 0.0, 128
  %2185 = vxpose.xlu0.b32.cont [4/16] 0.0, 128
  %2186 = vxpose.xlu0.b32.cont [5/16] 0.0, 128
  %2187 = vxpose.xlu0.b32.cont [6/16] 0.0, 128
  %2188 = vxpose.xlu0.b32.cont [7/16] 0.0, 128
  %2189 = vxpose.xlu0.b32.cont [8/16] 0.0, 128
  %2190 = vxpose.xlu0.b32.cont [9/16] 0.0, 128
  %2191 = vxpose.xlu0.b32.cont [10/16] 0.0, 128
  %2192 = vxpose.xlu0.b32.cont [11/16] 0.0, 128
  %2193 = vxpose.xlu0.b32.cont [12/16] 0.0, 128
  %2194 = vxpose.xlu0.b32.cont [13/16] 0.0, 128
  %2195 = vxpose.xlu0.b32.cont [14/16] 0.0, 128
  %2196 = vxpose.xlu0.b32.cont [15/16] 0.0, 128
  %2197 = vxpose.xlu0.b32.end [16/16] 0.0, 128
  %v2198 = vpop.trf.xlu0
  %v2199 = vpop.trf.xlu0
  %v2200 = vpop.trf.xlu0
  %v2201 = vpop.trf.xlu0
  %v2202 = vpop.trf.xlu0
  %v2203 = vpop.trf.xlu0
  %v2204 = vpop.trf.xlu0
  %v2205 = vpop.trf.xlu0
  %v2206 = vpop.trf.xlu0
  %v2207 = vpop.trf.xlu0
  %v2208 = vpop.trf.xlu0
  %v2209 = vpop.trf.xlu0
  %v2210 = vpop.trf.xlu0
  %v2211 = vpop.trf.xlu0
  %v2212 = vpop.trf.xlu0
  %v2213 = vpop.trf.xlu0
  %2215 = vset.pattern.permute.xlu0 1
  %2216 = vperm.xlu0 %2215, %v2174
  %v2217 = vpop.permute.xlu0 %2216
  %2220 = vset.pattern.permute.xlu0 1
  %2221 = vperm.xlu0 %2220, %v2179
  %v2222 = vpop.permute.xlu0 %2221
  %v2224 = vlaneseq
  %v2225 = vshrl.u32 %v2224, 7
  %v2226 = vsub.s32 0, %v2225
  %v2227 = vrot.slane %v2198, %v2226
  %v2228 = vadd.f32 %v2217, %v2227
  %v2229 = vadd.f32 %v2222, %v2227
  %vm2230 = vcmp.gt.f32.partialorder %v2228, 0.0
  %vm2231 = vcmp.gt.f32.partialorder %v2229, 0.0
  %v2232 = vmul.f32 %v2228, 0.2
  %v2233 = vmul.f32 %v2229, 0.2
  %v2234 = vsel %vm2230, %v2228, %v2232
  %v2235 = vsel %vm2231, %v2229, %v2233
  %v2236 = vadd.f32 %v2234, %v1900
  %v2237 = vadd.f32 %v2235, %v1902
  %v2238 = vsel %vm1907, %v2236, -inf
  %2239 = vmax.xlane.f32.xlu0 %v2238
  %v2240 = vpop.xlane.xlu0 %2239
  %v2241 = vsel %vm1911, %v2237, -inf
  %2242 = vmax.xlane.f32.xlu0 %v2241
  %v2243 = vpop.xlane.xlu0 %2242
  %v2244 = vsub.f32 %v2236, %v2240
  %v2245 = vsub.f32 %v2237, %v2243
  %v2246 = vmul.f32 %v2244, 1.442695
  %v2247 = vpow.pop %v2246
  %v2248 = vmul.f32 %v2245, 1.442695
  %v2249 = vpow.pop %v2248
  %v2250 = vsel %vm1907, %v2247, 0.0
  %2251 = vadd.xlane.f32.xlu0 %v2250
  %v2252 = vpop.xlane.xlu0 %2251
  %v2253 = vsel %vm1911, %v2249, 0.0
  %2254 = vadd.xlane.f32.xlu0 %v2253
  %v2255 = vpop.xlane.xlu0 %2254
  %v2256 = vrcp.pop %v2252
  %v2257 = vmul.f32 %v2247, %v2256
  %v2258 = vrcp.pop %v2255
  %v2259 = vmul.f32 %v2249, %v2258
  %v2260 = vlaneseq
  %v2261 = vshrl.u32 %v2260, 7
  %v2262 = vsub.s32 0, %v2261
  %v2263 = vrot.slane %v1682, %v2262
  %v2265 = vsel %vm1907, %v2257, 0
  %v2268 = vsel %vm1907, %v2259, 0
  %v2270 = vsel %vm53, %v2098, 0
  %2272 = vmatprep.subr.mxu0 0.0
  %2273 = vmatpush1.msra.mxu0 0.0
  %2274 = vmatprep.subr.mxu0 0.0
  %2275 = vmatpush1.msra.mxu0 0.0
  %2276 = vmatprep.subr.mxu0 0.0
  %2277 = vmatpush1.msra.mxu0 0.0
  %2278 = vmatprep.subr.mxu0 0.0
  %2279 = vmatpush1.msra.mxu0 0.0
  %2280 = vmatprep.subr.mxu0 0.0
  %2281 = vmatpush1.msra.mxu0 0.0
  %2282 = vmatprep.subr.mxu0 0.0
  %2283 = vmatpush1.msra.mxu0 0.0
  %2284 = vmatprep.subr.mxu0 0.0
  %2285 = vmatpush1.msra.mxu0 0.0
  %2286 = vmatprep.subr.mxu0 0.0
  %2287 = vmatpush1.msra.mxu0 0.0
  %2288 = vmatprep.subr.mxu0 0.0
  %2289 = vmatpush1.msra.mxu0 0.0
  %2290 = vmatprep.subr.mxu0 0.0
  %2291 = vmatpush1.msra.mxu0 0.0
  %2292 = vmatprep.subr.mxu0 0.0
  %2293 = vmatpush1.msra.mxu0 0.0
  %2294 = vmatprep.subr.mxu0 0.0
  %2295 = vmatpush1.msra.mxu0 0.0
  %2296 = vmatprep.subr.mxu0 0.0
  %2297 = vmatpush1.msra.mxu0 0.0
  %2298 = vmatprep.subr.mxu0 0.0
  %2299 = vmatpush1.msra.mxu0 0.0
  %2300 = vmatprep.subr.mxu0 0.0
  %2301 = vmatpush1.msra.mxu0 %v2270
  %2302 = vmatprep.subr.mxu0 0.0
  %2303 = vmatpush1.msra.mxu0 %v2093
  %2304 = vmatprep.subr.mxu0 0.0
  %2305 = vmatpush2.msra.mxu0 0.0
  %2306 = vmatprep.subr.mxu0 0.0
  %2307 = vmatpush2.msra.mxu0 0.0
  %2308 = vmatprep.subr.mxu0 0.0
  %2309 = vmatpush2.msra.mxu0 0.0
  %2310 = vmatprep.subr.mxu0 0.0
  %2311 = vmatpush2.msra.mxu0 0.0
  %2312 = vmatprep.subr.mxu0 0.0
  %2313 = vmatpush2.msra.mxu0 0.0
  %2314 = vmatprep.subr.mxu0 0.0
  %2315 = vmatpush2.msra.mxu0 0.0
  %2316 = vmatprep.subr.mxu0 0.0
  %2317 = vmatpush2.msra.mxu0 0.0
  %2318 = vmatprep.subr.mxu0 0.0
  %2319 = vmatpush2.msra.mxu0 0.0
  %2320 = vmatprep.subr.mxu0 0.0
  %2321 = vmatpush2.msra.mxu0 0.0
  %2322 = vmatprep.subr.mxu0 0.0
  %2323 = vmatpush2.msra.mxu0 0.0
  %2324 = vmatprep.subr.mxu0 0.0
  %2325 = vmatpush2.msra.mxu0 0.0
  %2326 = vmatprep.subr.mxu0 0.0
  %2327 = vmatpush2.msra.mxu0 0.0
  %2328 = vmatprep.subr.mxu0 0.0
  %2329 = vmatpush2.msra.mxu0 0.0
  %2330 = vmatprep.subr.mxu0 0.0
  %2331 = vmatpush2.msra.mxu0 0.0
  %2332 = vmatprep.subr.mxu0 0.0
  %2333 = vmatpush2.msra.mxu0 0.0
  %2334 = vmatprep.subr.mxu0 0.0
  %2335 = vmatpush2.msra.mxu0 0.0
  %2336 = vmatprep.mubr.f32.mxu0 0.0
  %2337 = vmatmul.mubr.f32.gmra.mxu0 %v2265
  %v2338 = vpop.f32.mrf.mxu0
  %v2339 = vadd.f32 %v2263, %v2338
  %v2340 = vpop.f32.mrf.mxu0
  %2341 = vmatprep.mubr.f32.mxu0 0.0
  %2342 = vmatmul.mubr.f32.gmra.mxu0 %v2268
  %v2343 = vpop.f32.mrf.mxu0
  %v2344 = vadd.f32 %v2263, %v2343
  %v2345 = vpop.f32.mrf.mxu0
  %2346 = vdwg.mxu0
  %v2347 = vld [vmem:[%s2] sm:$0x3]
  %v2349 = vsel %vm1907, %v2347, 0
  %v2352 = vsel %vm53, %v2344, 0
  %2354 = vmatprep.subr.mxu0 0.0
  %2355 = vmatpush1.msra.mxu0 0.0
  %2356 = vmatprep.subr.mxu0 0.0
  %2357 = vmatpush1.msra.mxu0 0.0
  %2358 = vmatprep.subr.mxu0 0.0
  %2359 = vmatpush1.msra.mxu0 0.0
  %2360 = vmatprep.subr.mxu0 0.0
  %2361 = vmatpush1.msra.mxu0 0.0
  %2362 = vmatprep.subr.mxu0 0.0
  %2363 = vmatpush1.msra.mxu0 0.0
  %2364 = vmatprep.subr.mxu0 0.0
  %2365 = vmatpush1.msra.mxu0 0.0
  %2366 = vmatprep.subr.mxu0 0.0
  %2367 = vmatpush1.msra.mxu0 0.0
  %2368 = vmatprep.subr.mxu0 0.0
  %2369 = vmatpush1.msra.mxu0 0.0
  %2370 = vmatprep.subr.mxu0 0.0
  %2371 = vmatpush1.msra.mxu0 0.0
  %2372 = vmatprep.subr.mxu0 0.0
  %2373 = vmatpush1.msra.mxu0 0.0
  %2374 = vmatprep.subr.mxu0 0.0
  %2375 = vmatpush1.msra.mxu0 0.0
  %2376 = vmatprep.subr.mxu0 0.0
  %2377 = vmatpush1.msra.mxu0 0.0
  %2378 = vmatprep.subr.mxu0 0.0
  %2379 = vmatpush1.msra.mxu0 0.0
  %2380 = vmatprep.subr.mxu0 0.0
  %2381 = vmatpush1.msra.mxu0 0.0
  %2382 = vmatprep.subr.mxu0 0.0
  %2383 = vmatpush1.msra.mxu0 %v2352
  %2384 = vmatprep.subr.mxu0 0.0
  %2385 = vmatpush1.msra.mxu0 %v2339
  %2386 = vmatprep.subr.mxu0 0.0
  %2387 = vmatpush2.msra.mxu0 0.0
  %2388 = vmatprep.subr.mxu0 0.0
  %2389 = vmatpush2.msra.mxu0 0.0
  %2390 = vmatprep.subr.mxu0 0.0
  %2391 = vmatpush2.msra.mxu0 0.0
  %2392 = vmatprep.subr.mxu0 0.0
  %2393 = vmatpush2.msra.mxu0 0.0
  %2394 = vmatprep.subr.mxu0 0.0
  %2395 = vmatpush2.msra.mxu0 0.0
  %2396 = vmatprep.subr.mxu0 0.0
  %2397 = vmatpush2.msra.mxu0 0.0
  %2398 = vmatprep.subr.mxu0 0.0
  %2399 = vmatpush2.msra.mxu0 0.0
  %2400 = vmatprep.subr.mxu0 0.0
  %2401 = vmatpush2.msra.mxu0 0.0
  %2402 = vmatprep.subr.mxu0 0.0
  %2403 = vmatpush2.msra.mxu0 0.0
  %2404 = vmatprep.subr.mxu0 0.0
  %2405 = vmatpush2.msra.mxu0 0.0
  %2406 = vmatprep.subr.mxu0 0.0
  %2407 = vmatpush2.msra.mxu0 0.0
  %2408 = vmatprep.subr.mxu0 0.0
  %2409 = vmatpush2.msra.mxu0 0.0
  %2410 = vmatprep.subr.mxu0 0.0
  %2411 = vmatpush2.msra.mxu0 0.0
  %2412 = vmatprep.subr.mxu0 0.0
  %2413 = vmatpush2.msra.mxu0 0.0
  %2414 = vmatprep.subr.mxu0 0.0
  %2415 = vmatpush2.msra.mxu0 0.0
  %2416 = vmatprep.subr.mxu0 0.0
  %2417 = vmatpush2.msra.mxu0 0.0
  %2418 = vmatprep.mubr.f32.mxu0 0.0
  %2419 = vmatmul.mubr.f32.gmra.mxu0 %v2349
  %v2420 = vpop.f32.mrf.mxu0
  %v2421 = vadd.f32 0.0, %v2420
  %v2422 = vpop.f32.mrf.mxu0
  %2423 = vdwg.mxu0
  %v2424 = vlaneseq
  %v2425 = vshrl.u32 %v2424, 7
  %v2426 = vsub.s32 0, %v2425
  %v2427 = vrot.slane %v1157, %v2426
  %v2429 = vsel %vm806, %v1668, 0
  %2431 = vmatprep.subr.mxu0 0.0
  %2432 = vmatpush1.msra.mxu0 0.0
  %2433 = vmatprep.subr.mxu0 0.0
  %2434 = vmatpush1.msra.mxu0 0.0
  %2435 = vmatprep.subr.mxu0 0.0
  %2436 = vmatpush1.msra.mxu0 0.0
  %2437 = vmatprep.subr.mxu0 0.0
  %2438 = vmatpush1.msra.mxu0 0.0
  %2439 = vmatprep.subr.mxu0 0.0
  %2440 = vmatpush1.msra.mxu0 0.0
  %2441 = vmatprep.subr.mxu0 0.0
  %2442 = vmatpush1.msra.mxu0 0.0
  %2443 = vmatprep.subr.mxu0 0.0
  %2444 = vmatpush1.msra.mxu0 0.0
  %2445 = vmatprep.subr.mxu0 0.0
  %2446 = vmatpush1.msra.mxu0 0.0
  %2447 = vmatprep.subr.mxu0 0.0
  %2448 = vmatpush1.msra.mxu0 0.0
  %2449 = vmatprep.subr.mxu0 0.0
  %2450 = vmatpush1.msra.mxu0 0.0
  %2451 = vmatprep.subr.mxu0 0.0
  %2452 = vmatpush1.msra.mxu0 0.0
  %2453 = vmatprep.subr.mxu0 0.0
  %2454 = vmatpush1.msra.mxu0 0.0
  %2455 = vmatprep.subr.mxu0 0.0
  %2456 = vmatpush1.msra.mxu0 0.0
  %2457 = vmatprep.subr.mxu0 0.0
  %2458 = vmatpush1.msra.mxu0 0.0
  %2459 = vmatprep.subr.mxu0 0.0
  %2460 = vmatpush1.msra.mxu0 %v1156
  %2461 = vmatprep.subr.mxu0 0.0
  %2462 = vmatpush1.msra.mxu0 %v1155
  %2463 = vmatprep.subr.mxu0 0.0
  %2464 = vmatpush2.msra.mxu0 0.0
  %2465 = vmatprep.subr.mxu0 0.0
  %2466 = vmatpush2.msra.mxu0 0.0
  %2467 = vmatprep.subr.mxu0 0.0
  %2468 = vmatpush2.msra.mxu0 0.0
  %2469 = vmatprep.subr.mxu0 0.0
  %2470 = vmatpush2.msra.mxu0 0.0
  %2471 = vmatprep.subr.mxu0 0.0
  %2472 = vmatpush2.msra.mxu0 0.0
  %2473 = vmatprep.subr.mxu0 0.0
  %2474 = vmatpush2.msra.mxu0 0.0
  %2475 = vmatprep.subr.mxu0 0.0
  %2476 = vmatpush2.msra.mxu0 0.0
  %2477 = vmatprep.subr.mxu0 0.0
  %2478 = vmatpush2.msra.mxu0 0.0
  %2479 = vmatprep.subr.mxu0 0.0
  %2480 = vmatpush2.msra.mxu0 0.0
  %2481 = vmatprep.subr.mxu0 0.0
  %2482 = vmatpush2.msra.mxu0 0.0
  %2483 = vmatprep.subr.mxu0 0.0
  %2484 = vmatpush2.msra.mxu0 0.0
  %2485 = vmatprep.subr.mxu0 0.0
  %2486 = vmatpush2.msra.mxu0 0.0
  %2487 = vmatprep.subr.mxu0 0.0
  %2488 = vmatpush2.msra.mxu0 0.0
  %2489 = vmatprep.subr.mxu0 0.0
  %2490 = vmatpush2.msra.mxu0 0.0
  %2491 = vmatprep.subr.mxu0 0.0
  %2492 = vmatpush2.msra.mxu0 0.0
  %2493 = vmatprep.subr.mxu0 0.0
  %2494 = vmatpush2.msra.mxu0 0.0
  %2495 = vmatprep.mubr.f32.mxu0 0.0
  %2496 = vmatmul.mubr.f32.gmra.mxu0 %v2429
  %v2497 = vpop.f32.mrf.mxu0
  %v2498 = vadd.f32 %v2427, %v2497
  %v2499 = vpop.f32.mrf.mxu0
  %2500 = vdwg.mxu0
  %v2501 = vtanh.pop %v2498
  %v2502 = vlaneseq
  %v2503 = vshrl.u32 %v2502, 7
  %v2504 = vsub.s32 0, %v2503
  %v2505 = vrot.slane %v1160, %v2504
  %v2507 = vsel %vm806, %v2421, 0
  %2509 = vmatprep.subr.mxu0 0.0
  %2510 = vmatpush1.msra.mxu0 0.0
  %2511 = vmatprep.subr.mxu0 0.0
  %2512 = vmatpush1.msra.mxu0 0.0
  %2513 = vmatprep.subr.mxu0 0.0
  %2514 = vmatpush1.msra.mxu0 0.0
  %2515 = vmatprep.subr.mxu0 0.0
  %2516 = vmatpush1.msra.mxu0 0.0
  %2517 = vmatprep.subr.mxu0 0.0
  %2518 = vmatpush1.msra.mxu0 0.0
  %2519 = vmatprep.subr.mxu0 0.0
  %2520 = vmatpush1.msra.mxu0 0.0
  %2521 = vmatprep.subr.mxu0 0.0
  %2522 = vmatpush1.msra.mxu0 0.0
  %2523 = vmatprep.subr.mxu0 0.0
  %2524 = vmatpush1.msra.mxu0 0.0
  %2525 = vmatprep.subr.mxu0 0.0
  %2526 = vmatpush1.msra.mxu0 0.0
  %2527 = vmatprep.subr.mxu0 0.0
  %2528 = vmatpush1.msra.mxu0 0.0
  %2529 = vmatprep.subr.mxu0 0.0
  %2530 = vmatpush1.msra.mxu0 0.0
  %2531 = vmatprep.subr.mxu0 0.0
  %2532 = vmatpush1.msra.mxu0 0.0
  %2533 = vmatprep.subr.mxu0 0.0
  %2534 = vmatpush1.msra.mxu0 0.0
  %2535 = vmatprep.subr.mxu0 0.0
  %2536 = vmatpush1.msra.mxu0 0.0
  %2537 = vmatprep.subr.mxu0 0.0
  %2538 = vmatpush1.msra.mxu0 %v1159
  %2539 = vmatprep.subr.mxu0 0.0
  %2540 = vmatpush1.msra.mxu0 %v1158
  %2541 = vmatprep.subr.mxu0 0.0
  %2542 = vmatpush2.msra.mxu0 0.0
  %2543 = vmatprep.subr.mxu0 0.0
  %2544 = vmatpush2.msra.mxu0 0.0
  %2545 = vmatprep.subr.mxu0 0.0
  %2546 = vmatpush2.msra.mxu0 0.0
  %2547 = vmatprep.subr.mxu0 0.0
  %2548 = vmatpush2.msra.mxu0 0.0
  %2549 = vmatprep.subr.mxu0 0.0
  %2550 = vmatpush2.msra.mxu0 0.0
  %2551 = vmatprep.subr.mxu0 0.0
  %2552 = vmatpush2.msra.mxu0 0.0
  %2553 = vmatprep.subr.mxu0 0.0
  %2554 = vmatpush2.msra.mxu0 0.0
  %2555 = vmatprep.subr.mxu0 0.0
  %2556 = vmatpush2.msra.mxu0 0.0
  %2557 = vmatprep.subr.mxu0 0.0
  %2558 = vmatpush2.msra.mxu0 0.0
  %2559 = vmatprep.subr.mxu0 0.0
  %2560 = vmatpush2.msra.mxu0 0.0
  %2561 = vmatprep.subr.mxu0 0.0
  %2562 = vmatpush2.msra.mxu0 0.0
  %2563 = vmatprep.subr.mxu0 0.0
  %2564 = vmatpush2.msra.mxu0 0.0
  %2565 = vmatprep.subr.mxu0 0.0
  %2566 = vmatpush2.msra.mxu0 0.0
  %2567 = vmatprep.subr.mxu0 0.0
  %2568 = vmatpush2.msra.mxu0 0.0
  %2569 = vmatprep.subr.mxu0 0.0
  %2570 = vmatpush2.msra.mxu0 0.0
  %2571 = vmatprep.subr.mxu0 0.0
  %2572 = vmatpush2.msra.mxu0 0.0
  %2573 = vmatprep.mubr.f32.mxu0 0.0
  %2574 = vmatmul.mubr.f32.gmra.mxu0 %v2507
  %v2575 = vpop.f32.mrf.mxu0
  %v2576 = vadd.f32 %v2505, %v2575
  %v2577 = vpop.f32.mrf.mxu0
  %2578 = vdwg.mxu0
  %v2579 = vtanh.pop %v2576
  %v2580 = vlaneseq
  %v2581 = vshrl.u32 %v2580, 7
  %v2582 = vsub.s32 0, %v2581
  %v2583 = vrot.slane %v1163, %v2582
  %v2585 = vsel %vm806, %v2501, 0
  %2587 = vmatprep.subr.mxu0 0.0
  %2588 = vmatpush1.msra.mxu0 0.0
  %2589 = vmatprep.subr.mxu0 0.0
  %2590 = vmatpush1.msra.mxu0 0.0
  %2591 = vmatprep.subr.mxu0 0.0
  %2592 = vmatpush1.msra.mxu0 0.0
  %2593 = vmatprep.subr.mxu0 0.0
  %2594 = vmatpush1.msra.mxu0 0.0
  %2595 = vmatprep.subr.mxu0 0.0
  %2596 = vmatpush1.msra.mxu0 0.0
  %2597 = vmatprep.subr.mxu0 0.0
  %2598 = vmatpush1.msra.mxu0 0.0
  %2599 = vmatprep.subr.mxu0 0.0
  %2600 = vmatpush1.msra.mxu0 0.0
  %2601 = vmatprep.subr.mxu0 0.0
  %2602 = vmatpush1.msra.mxu0 0.0
  %2603 = vmatprep.subr.mxu0 0.0
  %2604 = vmatpush1.msra.mxu0 0.0
  %2605 = vmatprep.subr.mxu0 0.0
  %2606 = vmatpush1.msra.mxu0 0.0
  %2607 = vmatprep.subr.mxu0 0.0
  %2608 = vmatpush1.msra.mxu0 0.0
  %2609 = vmatprep.subr.mxu0 0.0
  %2610 = vmatpush1.msra.mxu0 0.0
  %2611 = vmatprep.subr.mxu0 0.0
  %2612 = vmatpush1.msra.mxu0 0.0
  %2613 = vmatprep.subr.mxu0 0.0
  %2614 = vmatpush1.msra.mxu0 0.0
  %2615 = vmatprep.subr.mxu0 0.0
  %2616 = vmatpush1.msra.mxu0 %v1162
  %2617 = vmatprep.subr.mxu0 0.0
  %2618 = vmatpush1.msra.mxu0 %v1161
  %2619 = vmatprep.subr.mxu0 0.0
  %2620 = vmatpush2.msra.mxu0 0.0
  %2621 = vmatprep.subr.mxu0 0.0
  %2622 = vmatpush2.msra.mxu0 0.0
  %2623 = vmatprep.subr.mxu0 0.0
  %2624 = vmatpush2.msra.mxu0 0.0
  %2625 = vmatprep.subr.mxu0 0.0
  %2626 = vmatpush2.msra.mxu0 0.0
  %2627 = vmatprep.subr.mxu0 0.0
  %2628 = vmatpush2.msra.mxu0 0.0
  %2629 = vmatprep.subr.mxu0 0.0
  %2630 = vmatpush2.msra.mxu0 0.0
  %2631 = vmatprep.subr.mxu0 0.0
  %2632 = vmatpush2.msra.mxu0 0.0
  %2633 = vmatprep.subr.mxu0 0.0
  %2634 = vmatpush2.msra.mxu0 0.0
  %2635 = vmatprep.subr.mxu0 0.0
  %2636 = vmatpush2.msra.mxu0 0.0
  %2637 = vmatprep.subr.mxu0 0.0
  %2638 = vmatpush2.msra.mxu0 0.0
  %2639 = vmatprep.subr.mxu0 0.0
  %2640 = vmatpush2.msra.mxu0 0.0
  %2641 = vmatprep.subr.mxu0 0.0
  %2642 = vmatpush2.msra.mxu0 0.0
  %2643 = vmatprep.subr.mxu0 0.0
  %2644 = vmatpush2.msra.mxu0 0.0
  %2645 = vmatprep.subr.mxu0 0.0
  %2646 = vmatpush2.msra.mxu0 0.0
  %2647 = vmatprep.subr.mxu0 0.0
  %2648 = vmatpush2.msra.mxu0 0.0
  %2649 = vmatprep.subr.mxu0 0.0
  %2650 = vmatpush2.msra.mxu0 0.0
  %2651 = vmatprep.mubr.f32.mxu0 0.0
  %2652 = vmatmul.mubr.f32.gmra.mxu0 %v2585
  %v2653 = vpop.f32.mrf.mxu0
  %v2654 = vadd.f32 %v2583, %v2653
  %v2655 = vpop.f32.mrf.mxu0
  %2656 = vdwg.mxu0
  %v2658 = vsel %vm806, %v2579, 0
  %2660 = vmatprep.subr.mxu0 0.0
  %2661 = vmatpush1.msra.mxu0 0.0
  %2662 = vmatprep.subr.mxu0 0.0
  %2663 = vmatpush1.msra.mxu0 0.0
  %2664 = vmatprep.subr.mxu0 0.0
  %2665 = vmatpush1.msra.mxu0 0.0
  %2666 = vmatprep.subr.mxu0 0.0
  %2667 = vmatpush1.msra.mxu0 0.0
  %2668 = vmatprep.subr.mxu0 0.0
  %2669 = vmatpush1.msra.mxu0 0.0
  %2670 = vmatprep.subr.mxu0 0.0
  %2671 = vmatpush1.msra.mxu0 0.0
  %2672 = vmatprep.subr.mxu0 0.0
  %2673 = vmatpush1.msra.mxu0 0.0
  %2674 = vmatprep.subr.mxu0 0.0
  %2675 = vmatpush1.msra.mxu0 0.0
  %2676 = vmatprep.subr.mxu0 0.0
  %2677 = vmatpush1.msra.mxu0 0.0
  %2678 = vmatprep.subr.mxu0 0.0
  %2679 = vmatpush1.msra.mxu0 0.0
  %2680 = vmatprep.subr.mxu0 0.0
  %2681 = vmatpush1.msra.mxu0 0.0
  %2682 = vmatprep.subr.mxu0 0.0
  %2683 = vmatpush1.msra.mxu0 0.0
  %2684 = vmatprep.subr.mxu0 0.0
  %2685 = vmatpush1.msra.mxu0 0.0
  %2686 = vmatprep.subr.mxu0 0.0
  %2687 = vmatpush1.msra.mxu0 0.0
  %2688 = vmatprep.subr.mxu0 0.0
  %2689 = vmatpush1.msra.mxu0 %v1162
  %2690 = vmatprep.subr.mxu0 0.0
  %2691 = vmatpush1.msra.mxu0 %v1161
  %2692 = vmatprep.subr.mxu0 0.0
  %2693 = vmatpush2.msra.mxu0 0.0
  %2694 = vmatprep.subr.mxu0 0.0
  %2695 = vmatpush2.msra.mxu0 0.0
  %2696 = vmatprep.subr.mxu0 0.0
  %2697 = vmatpush2.msra.mxu0 0.0
  %2698 = vmatprep.subr.mxu0 0.0
  %2699 = vmatpush2.msra.mxu0 0.0
  %2700 = vmatprep.subr.mxu0 0.0
  %2701 = vmatpush2.msra.mxu0 0.0
  %2702 = vmatprep.subr.mxu0 0.0
  %2703 = vmatpush2.msra.mxu0 0.0
  %2704 = vmatprep.subr.mxu0 0.0
  %2705 = vmatpush2.msra.mxu0 0.0
  %2706 = vmatprep.subr.mxu0 0.0
  %2707 = vmatpush2.msra.mxu0 0.0
  %2708 = vmatprep.subr.mxu0 0.0
  %2709 = vmatpush2.msra.mxu0 0.0
  %2710 = vmatprep.subr.mxu0 0.0
  %2711 = vmatpush2.msra.mxu0 0.0
  %2712 = vmatprep.subr.mxu0 0.0
  %2713 = vmatpush2.msra.mxu0 0.0
  %2714 = vmatprep.subr.mxu0 0.0
  %2715 = vmatpush2.msra.mxu0 0.0
  %2716 = vmatprep.subr.mxu0 0.0
  %2717 = vmatpush2.msra.mxu0 0.0
  %2718 = vmatprep.subr.mxu0 0.0
  %2719 = vmatpush2.msra.mxu0 0.0
  %2720 = vmatprep.subr.mxu0 0.0
  %2721 = vmatpush2.msra.mxu0 0.0
  %2722 = vmatprep.subr.mxu0 0.0
  %2723 = vmatpush2.msra.mxu0 0.0
  %2724 = vmatprep.mubr.f32.mxu0 0.0
  %2725 = vmatmul.mubr.f32.gmra.mxu0 %v2658
  %v2726 = vpop.f32.mrf.mxu0
  %v2727 = vadd.f32 %v2583, %v2726
  %v2728 = vpop.f32.mrf.mxu0
  %2729 = vdwg.mxu0
  %v2730 = vmax.f32 %v2654, %v2727
  %v2731 = vsub.f32 %v2654, %v2730
  %v2732 = vmul.f32 %v2731, 1.442695
  %v2733 = vpow.pop %v2732
  %v2734 = vsub.f32 %v2727, %v2730
  %v2735 = vmul.f32 %v2734, 1.442695
  %v2736 = vpow.pop %v2735
  %v2737 = vadd.f32 %v2733, %v2736
  %v2738 = vrcp.pop %v2737
  %v2739 = vmul.f32 1.0, %v2738
  %v2740 = vmul.f32 %v2733, %v2739
  %2742 = vset.pattern.permute.xlu0 0
  %2743 = vperm.xlu0 %2742, %v2740
  %v2744 = vpop.permute.xlu0 %2743
  %v2746 = vmul.f32 %v2744, %v1668
  %v2747 = vmul.f32 %v2736, %v2739
  %2749 = vset.pattern.permute.xlu0 0
  %2750 = vperm.xlu0 %2749, %v2747
  %v2751 = vpop.permute.xlu0 %2750
  %v2753 = vmul.f32 %v2751, %v2421
  %v2754 = vadd.f32 %v2746, %v2753
  %2755 = vrot.lane.b32.xlu0 %v2421, 16
  %v2756 = vpop.permute.xlu0 %2755
  %2759 = vrot.lane.b32.xlu0 %v2754, 32
  %v2760 = vpop.permute.xlu0 %2759
  %v2762 = vsel %vm806, %v1668, %v2756
  %v2763 = vsel %vm1171, %v2762, %v2760
  %v2764 = vlaneseq
  %v2765 = vshrl.u32 %v2764, 7
  %v2766 = vsub.s32 0, %v2765
  %v2767 = vrot.slane %v1170, %v2766
  %v2769 = vsel %vm1511, %v2763, 0
  %2771 = vmatprep.subr.mxu0 0.0
  %2772 = vmatpush1.msra.mxu0 0.0
  %2773 = vmatprep.subr.mxu0 0.0
  %2774 = vmatpush1.msra.mxu0 0.0
  %2775 = vmatprep.subr.mxu0 0.0
  %2776 = vmatpush1.msra.mxu0 0.0
  %2777 = vmatprep.subr.mxu0 0.0
  %2778 = vmatpush1.msra.mxu0 0.0
  %2779 = vmatprep.subr.mxu0 0.0
  %2780 = vmatpush1.msra.mxu0 0.0
  %2781 = vmatprep.subr.mxu0 0.0
  %2782 = vmatpush1.msra.mxu0 0.0
  %2783 = vmatprep.subr.mxu0 0.0
  %2784 = vmatpush1.msra.mxu0 0.0
  %2785 = vmatprep.subr.mxu0 0.0
  %2786 = vmatpush1.msra.mxu0 0.0
  %2787 = vmatprep.subr.mxu0 0.0
  %2788 = vmatpush1.msra.mxu0 0.0
  %2789 = vmatprep.subr.mxu0 0.0
  %2790 = vmatpush1.msra.mxu0 0.0
  %2791 = vmatprep.subr.mxu0 0.0
  %2792 = vmatpush1.msra.mxu0 %v1169
  %2793 = vmatprep.subr.mxu0 0.0
  %2794 = vmatpush1.msra.mxu0 %v1168
  %2795 = vmatprep.subr.mxu0 0.0
  %2796 = vmatpush1.msra.mxu0 %v1167
  %2797 = vmatprep.subr.mxu0 0.0
  %2798 = vmatpush1.msra.mxu0 %v1166
  %2799 = vmatprep.subr.mxu0 0.0
  %2800 = vmatpush1.msra.mxu0 %v1165
  %2801 = vmatprep.subr.mxu0 0.0
  %2802 = vmatpush1.msra.mxu0 %v1164
  %2803 = vmatprep.subr.mxu0 0.0
  %2804 = vmatpush2.msra.mxu0 0.0
  %2805 = vmatprep.subr.mxu0 0.0
  %2806 = vmatpush2.msra.mxu0 0.0
  %2807 = vmatprep.subr.mxu0 0.0
  %2808 = vmatpush2.msra.mxu0 0.0
  %2809 = vmatprep.subr.mxu0 0.0
  %2810 = vmatpush2.msra.mxu0 0.0
  %2811 = vmatprep.subr.mxu0 0.0
  %2812 = vmatpush2.msra.mxu0 0.0
  %2813 = vmatprep.subr.mxu0 0.0
  %2814 = vmatpush2.msra.mxu0 0.0
  %2815 = vmatprep.subr.mxu0 0.0
  %2816 = vmatpush2.msra.mxu0 0.0
  %2817 = vmatprep.subr.mxu0 0.0
  %2818 = vmatpush2.msra.mxu0 0.0
  %2819 = vmatprep.subr.mxu0 0.0
  %2820 = vmatpush2.msra.mxu0 0.0
  %2821 = vmatprep.subr.mxu0 0.0
  %2822 = vmatpush2.msra.mxu0 0.0
  %2823 = vmatprep.subr.mxu0 0.0
  %2824 = vmatpush2.msra.mxu0 0.0
  %2825 = vmatprep.subr.mxu0 0.0
  %2826 = vmatpush2.msra.mxu0 0.0
  %2827 = vmatprep.subr.mxu0 0.0
  %2828 = vmatpush2.msra.mxu0 0.0
  %2829 = vmatprep.subr.mxu0 0.0
  %2830 = vmatpush2.msra.mxu0 0.0
  %2831 = vmatprep.subr.mxu0 0.0
  %2832 = vmatpush2.msra.mxu0 0.0
  %2833 = vmatprep.subr.mxu0 0.0
  %2834 = vmatpush2.msra.mxu0 0.0
  %2835 = vmatprep.mubr.f32.mxu0 0.0
  %2836 = vmatmul.mubr.f32.gmra.mxu0 %v2769
  %v2837 = vpop.f32.mrf.mxu0
  %v2838 = vadd.f32 %v2767, %v2837
  %v2839 = vpop.f32.mrf.mxu0
  %2840 = vdwg.mxu0
  %vm2841 = vcmask 17408
  %2842 = vst.msk [vmem:[%s7] sm:$0x3] %vm2841, %v2838
  // Predicated region
  $region30: #{bsal4_forward.1} parent=0 // pred_check
    _
  $region31: #{bsal4_forward.1} parent=0 // pred_check_branch
    %2844 = sbr.rel (0) target = $region33
  $region32: #{bsal4_forward.1} parent=0 // pred_region
    _
  $region33: #{bsal4_forward.1} parent=0 // pred_fallthru
    _
  // Predicated region
  $region34: #{bsal4_forward.1} parent=0 // pred_check
    _
  $region35: #{bsal4_forward.1} parent=0 // pred_check_branch
    %2846 = sbr.rel (0) target = $region37
  $region36: #{bsal4_forward.1} parent=0 // pred_region
    _
  $region37: #{bsal4_forward.1} parent=0 // pred_fallthru
    _

</llo_original>
